<compile_context>
chip_gen: v5e
topology: v5e:2x2
jax: 0.10.0
libtpu: 0.0.40
codegen_flags: <defaults>
</compile_context>

<pallas_src>
import math
from functools import lru_cache, partial

import jax
import jax.numpy as jnp
from jax.experimental import pallas as pl
from jax.experimental.pallas import tpu as pltpu


# ---------------------------------------------------------------------------
# chip-conditional tiling / VMEM defaults
# ---------------------------------------------------------------------------
@lru_cache(maxsize=1)
def _chip_defaults():
    kind = ""
    try:
        kind = jax.devices()[0].device_kind.lower()
    except Exception:  # pragma: no cover - defensive
        pass
    has_128mib_vmem = ("v5" in kind) or ("v6" in kind)
    if has_128mib_vmem:
        return dict(
            vmem_limit=96 * 1024 * 1024,
            gemm_tm=512, gemm_tn=1024, lm_tm=1024,
            moe_tm=512, moe_tf=2048,
            attn_tq=128, attn_tk=128 if "v5" in kind else 256,
        )
    # v7x (64 MiB VMEM per TensorCore) or unknown: stay conservative.
    return dict(
        vmem_limit=40 * 1024 * 1024,
        gemm_tm=256, gemm_tn=512, lm_tm=512,
        moe_tm=256, moe_tf=1024,
        attn_tq=128, attn_tk=256,
    )


def _pick_tile(dim, target, align):
    """Largest `align`-multiple divisor of dim that is <= target (full dim if
    dim <= target).  Never silently explodes to the full dim unless no aligned
    divisor exists at all (BlockSpec last-two-dims constraint)."""
    if dim <= target:
        return dim
    t = (min(target, dim) // align) * align
    while t >= align:
        if dim % t == 0:
            return t
        t -= align
    return dim  # pathological (no aligned divisor): full dim keeps BlockSpec legal


# ----------------------------------------------------------------------------
# Kernel 1: fused LayerNorm + matmul + bias  (LN1->QKV and final-LN->lm_head)
#   LN result is computed once per row tile (j == 0) and cached in VMEM.
# ----------------------------------------------------------------------------
def _ln_matmul_kernel(x_ref, g_ref, b_ref, w_ref, bias_ref, o_ref, xn_scr, *, eps):
    @pl.when(pl.program_id(1) == 0)
    def _norm():
        x = x_ref[...].astype(jnp.float32)
        mu = jnp.mean(x, axis=-1, keepdims=True)
        var = jnp.mean(jnp.square(x - mu), axis=-1, keepdims=True)
        xn = (x - mu) * jax.lax.rsqrt(var + eps) * g_ref[...] + b_ref[...]
        xn_scr[...] = xn.astype(jnp.bfloat16)

    o_ref[...] = (
        jnp.dot(xn_scr[...], w_ref[...], preferred_element_type=jnp.float32)
        + bias_ref[...]
    ).astype(o_ref.dtype)


def ln_matmul(x2d, gamma, beta, w_bf16, bias, *, tm, tn, eps=1e-5,
              out_dtype=jnp.bfloat16, vmem_limit=48 * 1024 * 1024):
    M, K = x2d.shape
    N = w_bf16.shape[1]
    tm = _pick_tile(M, tm, 8)
    tn = _pick_tile(N, tn, 128)
    return pl.pallas_call(
        partial(_ln_matmul_kernel, eps=eps),
        grid=(M // tm, N // tn),
        in_specs=[
            pl.BlockSpec((tm, K), lambda i, j: (i, 0)),
            pl.BlockSpec((1, K), lambda i, j: (0, 0)),
            pl.BlockSpec((1, K), lambda i, j: (0, 0)),
            pl.BlockSpec((K, tn), lambda i, j: (0, j)),
            pl.BlockSpec((1, tn), lambda i, j: (0, j)),
        ],
        out_specs=pl.BlockSpec((tm, tn), lambda i, j: (i, j)),
        out_shape=jax.ShapeDtypeStruct((M, N), out_dtype),
        scratch_shapes=[pltpu.VMEM((tm, K), jnp.bfloat16)],
        compiler_params=pltpu.CompilerParams(
            dimension_semantics=("parallel", "arbitrary"),  # j reuses the LN cache
            vmem_limit_bytes=vmem_limit),
    )(x2d, gamma.reshape(1, K), beta.reshape(1, K), w_bf16, bias.reshape(1, N))


# ----------------------------------------------------------------------------
# Kernel 2: matmul + bias + residual add (attention out-projection), bf16 out
# ----------------------------------------------------------------------------
def _matmul_residual_kernel(x_ref, w_ref, b_ref, r_ref, o_ref):
    acc = jnp.dot(x_ref[...], w_ref[...], preferred_element_type=jnp.float32)
    o_ref[...] = (r_ref[...].astype(jnp.float32) + acc + b_ref[...]).astype(o_ref.dtype)


def matmul_bias_residual(x2d, w_bf16, bias, resid, *, tm, tn,
                         out_dtype=jnp.bfloat16, vmem_limit=48 * 1024 * 1024):
    M, K = x2d.shape
    N = w_bf16.shape[1]
    tm = _pick_tile(M, tm, 8)
    tn = _pick_tile(N, tn, 128)
    return pl.pallas_call(
        _matmul_residual_kernel,
        grid=(M // tm, N // tn),
        in_specs=[
            pl.BlockSpec((tm, K), lambda i, j: (i, 0)),
            pl.BlockSpec((K, tn), lambda i, j: (0, j)),
            pl.BlockSpec((1, tn), lambda i, j: (0, j)),
            pl.BlockSpec((tm, tn), lambda i, j: (i, j)),
        ],
        out_specs=pl.BlockSpec((tm, tn), lambda i, j: (i, j)),
        out_shape=jax.ShapeDtypeStruct((M, N), out_dtype),
        compiler_params=pltpu.CompilerParams(
            dimension_semantics=("parallel", "parallel"),
            vmem_limit_bytes=vmem_limit),
    )(x2d, w_bf16, bias.reshape(1, N), resid)


# ----------------------------------------------------------------------------
# Kernel 3: flash attention with a scalar-prefetched (q-block, kv-block)
#           schedule: only KV tiles inside the causal/sliding-window band (plus
#           the full causal range for q tiles that contain global rows) are ever
#           DMAed or computed.  Online softmax in VMEM scratch.
# ----------------------------------------------------------------------------
def _flash_attn_kernel(qblk_ref, kblk_ref, q_ref, k_ref, v_ref, o_ref,
                       m_scr, l_scr, acc_scr, *,
                       scale, tq, tk, window_size, global_idx):
    t = pl.program_id(1)
    nt = pl.num_programs(1)
    qb = qblk_ref[t]
    kb = kblk_ref[t]
    is_first = jnp.logical_or(t == 0, qblk_ref[jnp.maximum(t - 1, 0)] != qb)
    is_last = jnp.logical_or(t == nt - 1, qblk_ref[jnp.minimum(t + 1, nt - 1)] != qb)

    @pl.when(is_first)
    def _init():
        m_scr[...] = jnp.full(m_scr.shape, -jnp.inf, jnp.float32)
        l_scr[...] = jnp.zeros(l_scr.shape, jnp.float32)
        acc_scr[...] = jnp.zeros(acc_scr.shape, jnp.float32)

    q = q_ref[0]                                   # (nh, tq, hd) bf16
    k = k_ref[0]
    v = v_ref[0]
    s = jnp.einsum("hqd,hkd->hqk", q, k,
                   preferred_element_type=jnp.float32) * scale

    r_min = qb * tq
    c_min = kb * tk
    rows = r_min + jax.lax.broadcasted_iota(jnp.int32, (tq, tk), 0)
    cols = c_min + jax.lax.broadcasted_iota(jnp.int32, (tq, tk), 1)
    causal = cols > rows
    local = (rows - cols) >= window_size
    if global_idx:                                 # global query rows ignore window
        is_global = rows == global_idx[0]
        for g in global_idx[1:]:
            is_global = jnp.logical_or(is_global, rows == g)
        win = jnp.logical_and(local, jnp.logical_not(is_global))
    else:
        win = local
    mask = jnp.logical_or(causal, win)
    s = jnp.where(mask[None, :, :], -1e9, s)       # matches torch masked_fill(-1e9)

    m_prev = m_scr[...]
    m_new = jnp.maximum(m_prev, jnp.max(s, axis=-1, keepdims=True))
    alpha = jnp.exp(m_prev - m_new)
    p = jnp.exp(s - m_new)
    p = jnp.where(mask[None, :, :], 0.0, p)        # no transient masked contributions
    l_scr[...] = alpha * l_scr[...] + jnp.sum(p, axis=-1, keepdims=True)
    acc_scr[...] = alpha * acc_scr[...] + jnp.einsum(
        "hqk,hkd->hqd", p.astype(v.dtype), v, preferred_element_type=jnp.float32)
    m_scr[...] = m_new

    @pl.when(is_last)
    def _finalize():
        o_ref[0] = (acc_scr[...] *
                    pl.reciprocal(l_scr[...], approx=True)).astype(o_ref.dtype)


def _build_attention_schedule(T, tq, tk, window_size, global_idx):
    """Static list of (q block, kv block) pairs covering only the live band."""
    nq = T // tq
    nk = T // tk
    q_blocks, kv_blocks = [], []
    for qi in range(nq):
        r_min = qi * tq
        r_max = r_min + tq - 1
        has_global = any(r_min <= g <= r_max for g in global_idx)
        start = 0 if has_global else max(0, r_min - window_size + 1) // tk
        last = min(r_max // tk, nk - 1)
        for ki in range(start, last + 1):
            q_blocks.append(qi)
            kv_blocks.append(ki)
    return (jnp.asarray(q_blocks, jnp.int32), jnp.asarray(kv_blocks, jnp.int32))


def flash_attention(q, k, v, *, scale, window_size, global_idx,
                    tq=128, tk=128, vmem_limit=48 * 1024 * 1024):
    B, nh, T, hd = q.shape
    tq = _pick_tile(T, tq, 8)
    tk = _pick_tile(T, tk, 8)
    q_blocks, kv_blocks = _build_attention_schedule(T, tq, tk, window_size, global_idx)
    n_active = int(q_blocks.shape[0])

    q_spec = pl.BlockSpec((1, nh, tq, hd), lambda b, t, qb, kb: (b, 0, qb[t], 0))
    kv_spec = pl.BlockSpec((1, nh, tk, hd), lambda b, t, qb, kb: (b, 0, kb[t], 0))
    return pl.pallas_call(
        partial(_flash_attn_kernel, scale=scale, tq=tq, tk=tk,
                window_size=window_size, global_idx=global_idx),
        grid_spec=pltpu.PrefetchScalarGridSpec(
            num_scalar_prefetch=2,
            grid=(B, n_active),
            in_specs=[q_spec, kv_spec, kv_spec],
            out_specs=q_spec,
            scratch_shapes=[
                pltpu.VMEM((nh, tq, 1), jnp.float32),    # running max m
                pltpu.VMEM((nh, tq, 1), jnp.float32),    # running denom l
                pltpu.VMEM((nh, tq, hd), jnp.float32),   # accumulator
            ]),
        out_shape=jax.ShapeDtypeStruct((B, nh, T, hd), jnp.bfloat16),
        compiler_params=pltpu.CompilerParams(
            dimension_semantics=("parallel", "arbitrary"),
            vmem_limit_bytes=vmem_limit),
    )(q_blocks, kv_blocks, q, k, v)


# ----------------------------------------------------------------------------
# Kernel 4: fused LN2 + top-1-routed GEGLU experts + residual.
#   Routing (gate + argmax) is a tiny XLA op; SMEM-prefetched per-(tile,expert)
#   flags let the kernel skip the expert matmuls for experts with no tokens in
#   the tile.  The expert inner dimension Fd is tiled (grid axis f) so no
#   full (H, Fd) weight block is ever required in VMEM (v7x-safe).
# ----------------------------------------------------------------------------
def _moe_kernel(flags_ref, x_ref, g_ref, bt_ref, top_ref,
                w1_ref, b1_ref, w2_ref, b2_ref, wo_ref, bo_ref,
                o_ref, xn_scr, acc_scr, *, eps, num_experts):
    m = pl.program_id(0)
    e = pl.program_id(1)
    f = pl.program_id(2)
    nf = pl.num_programs(2)

    @pl.when(jnp.logical_and(e == 0, f == 0))
    def _prep():                                   # LN2 computed once per tile
        x = x_ref[...].astype(jnp.float32)
        mu = jnp.mean(x, axis=-1, keepdims=True)
        var = jnp.mean(jnp.square(x - mu), axis=-1, keepdims=True)
        xn = (x - mu) * jax.lax.rsqrt(var + eps) * g_ref[...] + bt_ref[...]
        xn_scr[...] = xn.astype(jnp.bfloat16)
        acc_scr[...] = x                           # residual, fp32 accumulator

    has_tokens = flags_ref[m, e] > 0

    @pl.when(has_tokens)
    def _expert():
        # top-1 softmax gate score is exactly 1.0 -> routing select only.
        gate = jnp.where(top_ref[...] == e, 1.0, 0.0)          # (tm, 1)

        @pl.when(f == 0)
        def _bias():
            acc_scr[...] += gate * bo_ref[0]

        xb = xn_scr[...]
        x1 = jnp.dot(xb, w1_ref[0], preferred_element_type=jnp.float32) + b1_ref[0]
        x2 = jnp.dot(xb, w2_ref[0], preferred_element_type=jnp.float32) + b2_ref[0]
        # TODO(synk): PyTorch F.gelu defaults to exact erf GELU; tanh approximation
        # is used here since erf lowering is not guaranteed in Mosaic.
        h = x1 * jax.nn.gelu(x2, approximate=True)
        acc_scr[...] += gate * jnp.dot(h.astype(jnp.bfloat16), wo_ref[0],
                                       preferred_element_type=jnp.float32)

    @pl.when(jnp.logical_and(e == num_experts - 1, f == nf - 1))
    def _write():
        o_ref[...] = acc_scr[...].astype(o_ref.dtype)


def moe_ffn(x2d, blk, num_experts, *, tm, tf, eps=1e-5,
            vmem_limit=48 * 1024 * 1024):
    """x + routed_expert(LN2(x)); returns (bf16 activations, per-expert usage)."""
    M, H = x2d.shape
    moe = blk["moe"]
    Fd = moe["w1"].shape[-1]
    E = num_experts
    tm = _pick_tile(M, tm, 8)
    tf = _pick_tile(Fd, tf, 128)
    n_m, nf = M // tm, Fd // tf

    # Routing in XLA (tiny): LN2 + gate + first-argmax (== torch.topk k=1 tie rule).
    xf = x2d.astype(jnp.float32)
    mu = jnp.mean(xf, axis=-1, keepdims=True)
    var = jnp.mean(jnp.square(xf - mu), axis=-1, keepdims=True)
    xn = (xf - mu) * jax.lax.rsqrt(var + eps) * blk["ln2_g"] + blk["ln2_b"]
    logits = xn @ moe["gate_w"] + moe["gate_b"]
    top_idx = jnp.argmax(logits, axis=-1).astype(jnp.int32)           # (M,)
    onehot = jax.nn.one_hot(top_idx, E, dtype=jnp.int32)              # (M, E)
    flags = (onehot.reshape(n_m, tm, E).sum(axis=1) > 0).astype(jnp.int32)
    usage = (onehot.sum(axis=0) > 0).astype(jnp.float32)              # gate score == 1

    out = pl.pallas_call(
        partial(_moe_kernel, eps=eps, num_experts=E),
        grid_spec=pltpu.PrefetchScalarGridSpec(
            num_scalar_prefetch=1,
            grid=(n_m, E, nf),
            in_specs=[
                pl.BlockSpec((tm, H), lambda m, e, f, fl: (m, 0)),      # residual x
                pl.BlockSpec((1, H), lambda m, e, f, fl: (0, 0)),       # ln2 gamma
                pl.BlockSpec((1, H), lambda m, e, f, fl: (0, 0)),       # ln2 beta
                pl.BlockSpec((tm, 1), lambda m, e, f, fl: (m, 0)),      # top-1 ids
                pl.BlockSpec((1, H, tf), lambda m, e, f, fl: (e, 0, f)),   # W1
                pl.BlockSpec((1, 1, tf), lambda m, e, f, fl: (e, 0, f)),   # b1
                pl.BlockSpec((1, H, tf), lambda m, e, f, fl: (e, 0, f)),   # W2
                pl.BlockSpec((1, 1, tf), lambda m, e, f, fl: (e, 0, f)),   # b2
                pl.BlockSpec((1, tf, H), lambda m, e, f, fl: (e, f, 0)),   # Wo
                pl.BlockSpec((1, 1, H), lambda m, e, f, fl: (e, 0, 0)),    # bo
            ],
            out_specs=pl.BlockSpec((tm, H), lambda m, e, f, fl: (m, 0)),
            scratch_shapes=[
                pltpu.VMEM((tm, H), jnp.bfloat16),    # LN2 output cache
                pltpu.VMEM((tm, H), jnp.float32),     # residual + expert accumulator
            ]),
        out_shape=jax.ShapeDtypeStruct((M, H), jnp.bfloat16),
        compiler_params=pltpu.CompilerParams(
            dimension_semantics=("parallel", "arbitrary", "arbitrary"),
            vmem_limit_bytes=vmem_limit),
    )(flags, x2d, blk["ln2_g"].reshape(1, H), blk["ln2_b"].reshape(1, H),
      top_idx.reshape(M, 1),
      moe["w1"], moe["b1"], moe["w2"], moe["b2"], moe["wo"], moe["bo"])
    return out, usage


# ----------------------------------------------------------------------------
# Model glue (RoPE, head layout, routing stats) — stays in XLA, on bf16 tensors
# ----------------------------------------------------------------------------
def apply_rotary(x, cos, sin, rope_dim):
    """x: (B, nh, T, hd); cos/sin: (T, rope_dim//2) — matches train.py apply_rotary."""
    x_rot = x[..., :rope_dim].reshape(*x.shape[:-1], rope_dim // 2, 2)
    x1, x2 = x_rot[..., 0], x_rot[..., 1]
    rotated = jnp.stack([x1 * cos - x2 * sin, x1 * sin + x2 * cos], axis=-1)
    rotated = rotated.reshape(*x.shape[:-1], rope_dim)
    return jnp.concatenate([rotated, x[..., rope_dim:]], axis=-1)


def self_attention_block(x2d, blk, cfg, B, T, cos, sin, global_idx, chip):
    nh, hd, rd = cfg["num_heads"], cfg["head_dim"], cfg["rope_dim"]
    attn_p = blk["attn"]
    # Fused LayerNorm1 + QKV projection, bf16 out (half the glue HBM traffic).
    qkv = ln_matmul(x2d, blk["ln1_g"], blk["ln1_b"],
                    attn_p["qkv_w"], attn_p["qkv_b"],
                    tm=chip["gemm_tm"], tn=chip["gemm_tn"],
                    out_dtype=jnp.bfloat16, vmem_limit=chip["vmem_limit"])
    qkv = qkv.reshape(B, T, 3, nh, hd)
    # TODO(synk): head-major transpose + RoPE pair rotation still run as XLA
    # relayouts (now on bf16); folding them into Pallas needs a lane-splitting
    # reshape that is not robust in Mosaic.
    q = jnp.transpose(qkv[:, :, 0], (0, 2, 1, 3)).astype(jnp.float32)
    k = jnp.transpose(qkv[:, :, 1], (0, 2, 1, 3)).astype(jnp.float32)
    v = jnp.transpose(qkv[:, :, 2], (0, 2, 1, 3))
    if rd > 0:
        q = apply_rotary(q, cos, sin, rd)
        k = apply_rotary(k, cos, sin, rd)
    attn = flash_attention(
        q.astype(jnp.bfloat16), k.astype(jnp.bfloat16), v.astype(jnp.bfloat16),
        scale=1.0 / math.sqrt(hd), window_size=cfg["window_size"],
        global_idx=global_idx, tq=chip["attn_tq"], tk=chip["attn_tk"],
        vmem_limit=chip["vmem_limit"])
    attn2d = jnp.transpose(attn, (0, 2, 1, 3)).reshape(B * T, nh * hd)
    # Fused out-projection + bias + residual add (bf16 residual stream).
    return matmul_bias_residual(attn2d, attn_p["out_w"], attn_p["out_b"], x2d,
                                tm=chip["gemm_tm"], tn=chip["gemm_tn"],
                                out_dtype=jnp.bfloat16,
                                vmem_limit=chip["vmem_limit"])


def chat_model_forward(input_ids, params, cfg):
    B, T = input_ids.shape
    H, E, rd = cfg["hidden_size"], cfg["num_experts"], cfg["rope_dim"]
    chip = _chip_defaults()
    x2d = params["embed"][input_ids].reshape(B * T, H).astype(jnp.bfloat16)

    # Static mask parameters (baked into the attention kernel; no (T,T) HBM mask).
    global_idx = tuple(int(g) for g in cfg["global_token_indices"] if g < T)

    # RoPE caches.
    inv_freq = 1.0 / (10000.0 ** (jnp.arange(0, rd, 2, dtype=jnp.float32) / rd))
    freqs = jnp.arange(T, dtype=jnp.float32)[:, None] * inv_freq[None, :]
    cos, sin = jnp.cos(freqs), jnp.sin(freqs)

    moe_losses = 0.0
    for blk in params["blocks"]:
        x2d = self_attention_block(x2d, blk, cfg, B, T, cos, sin, global_idx, chip)
        x2d, usage = moe_ffn(x2d, blk, E, tm=chip["moe_tm"], tf=chip["moe_tf"],
                             vmem_limit=chip["vmem_limit"])
        moe_losses = moe_losses + jnp.sum((usage - 1.0 / E) ** 2) + 1e-8
    moe_losses = moe_losses / len(params["blocks"])

    # Fused final LayerNorm + lm_head (large tm -> fewer lm_head weight re-reads).
    logits = ln_matmul(x2d, params["ln_g"], params["ln_b"],
                       params["lm_w"], params["lm_b"],
                       tm=chip["lm_tm"], tn=chip["gemm_tn"],
                       out_dtype=jnp.float32, vmem_limit=chip["vmem_limit"])
    # labels=None path: loss is None; moe aux loss returned for completeness.
    return logits.reshape(B, T, cfg["vocab_size"]), moe_losses


# ----------------------------------------------------------------------------
# Deterministic parameter init (synthetic; shapes match the PyTorch module,
# matmul weights stored pre-transposed in bf16, gate/LN/biases in fp32)
# ----------------------------------------------------------------------------
def init_params(key, cfg):
    H, V, E = cfg["hidden_size"], cfg["vocab_size"], cfg["num_experts"]
    Fd, nh, hd = cfg["feed_forward_dim"], cfg["num_heads"], cfg["head_dim"]
    keys = iter(jax.random.split(key, 256))

    def dense(shape, scale=0.02, dtype=jnp.float32):
        w = scale * jax.random.normal(next(keys), shape, jnp.float32)
        return w.astype(dtype)

    params = {
        "embed": dense((V, H), 1.0),
        "blocks": [],
        "ln_g": jnp.ones((H,), jnp.float32),
        "ln_b": jnp.zeros((H,), jnp.float32),
        "lm_w": dense((H, V), dtype=jnp.bfloat16),
        "lm_b": jnp.zeros((V,), jnp.float32),
    }
    for _ in range(cfg["num_layers"]):
        blk = {
            "ln1_g": jnp.ones((H,), jnp.float32), "ln1_b": jnp.zeros((H,), jnp.float32),
            "ln2_g": jnp.ones((H,), jnp.float32), "ln2_b": jnp.zeros((H,), jnp.float32),
            "attn": {
                "qkv_w": dense((H, 3 * nh * hd), dtype=jnp.bfloat16),
                "qkv_b": jnp.zeros((3 * nh * hd,), jnp.float32),
                "out_w": dense((nh * hd, H), dtype=jnp.bfloat16),
                "out_b": jnp.zeros((H,), jnp.float32),
            },
            "moe": {
                "gate_w": dense((H, E)),               # fp32 gate for routing
                "gate_b": jnp.zeros((E,), jnp.float32),
                "w1": dense((E, H, Fd), dtype=jnp.bfloat16),
                "b1": jnp.zeros((E, 1, Fd), jnp.float32),
                "w2": dense((E, H, Fd), dtype=jnp.bfloat16),
                "b2": jnp.zeros((E, 1, Fd), jnp.float32),
                "wo": dense((E, Fd, H), dtype=jnp.bfloat16),
                "bo": jnp.zeros((E, 1, H), jnp.float32),
            },
        }
        params["blocks"].append(blk)
    return params


if __name__ == "__main__":
    cfg = dict(
        vocab_size=64,
        hidden_size=32,
        num_heads=4,
        head_dim=8,
        rope_dim=4,
        num_layers=2,
        feed_forward_dim=48,   # expert_dim for the MoE GEGLU experts
        num_experts=2,
        window_size=4,
        max_seq_length=16,
        global_token_indices=(2, 3, 4, 5),
    )
    key = jax.random.PRNGKey(0)
    pkey, dkey = jax.random.split(key)
    params = init_params(pkey, cfg)

    B, T = 2, 8
    input_ids = jax.random.randint(dkey, (B, T), 0, cfg["vocab_size"], dtype=jnp.int32)

    fwd = jax.jit(partial(chat_model_forward, cfg=cfg))
    logits, moe_loss = fwd(input_ids, params)
    jax.block_until_ready((logits, moe_loss))
    assert logits.shape == (B, T, cfg["vocab_size"])
    assert bool(jnp.all(jnp.isfinite(logits)))
    print("KERNEL_OK")
</pallas_src>

<mosaic_0001>
module attributes {stable_mosaic.version = 11 : i64} {
  func.func @_ln_matmul_kernel(%arg0: i32, %arg1: i32, %arg2: memref<16x32xbf16, #tpu.memory_space<vmem>>, %arg3: memref<1x32xf32, #tpu.memory_space<vmem>>, %arg4: memref<1x32xf32, #tpu.memory_space<vmem>>, %arg5: memref<32x96xbf16, #tpu.memory_space<vmem>>, %arg6: memref<1x96xf32, #tpu.memory_space<vmem>>, %arg7: memref<16x96xbf16, #tpu.memory_space<vmem>>, %arg8: memref<16x32xbf16, #tpu.memory_space<vmem>>) attributes {dimension_semantics = [#tpu.dimension_semantics<parallel>, #tpu.dimension_semantics<arbitrary>], iteration_bounds = array<i64: 1, 1>, scalar_prefetch = 0 : i64, scratch_operands = 1 : i64, tpu.core_type = #tpu.core_type<tc>, window_params = [{transform_indices = @transform_0, window_bounds = array<i64: 16, 32>}, {pipeline_mode = #tpu.pipeline_mode<synchronous>, transform_indices = @transform_1, window_bounds = array<i64: 1, 32>}, {pipeline_mode = #tpu.pipeline_mode<synchronous>, transform_indices = @transform_2, window_bounds = array<i64: 1, 32>}, {transform_indices = @transform_3, window_bounds = array<i64: 32, 96>}, {transform_indices = @transform_4, window_bounds = array<i64: 1, 96>}, {transform_indices = @transform_5, window_bounds = array<i64: 16, 96>}]} {
    %c0_i32 = arith.constant 0 : i32
    %0 = arith.cmpi eq, %arg1, %c0_i32 : i32
    %1 = arith.extui %0 : i1 to i32
    %c0_i32_0 = arith.constant 0 : i32
    %2 = arith.cmpi ne, %1, %c0_i32_0 : i32
    scf.if %2 {
      %c0_8 = arith.constant 0 : index
      %c0_9 = arith.constant 0 : index
      %11 = vector.load %arg2[%c0_8, %c0_9] : memref<16x32xbf16, #tpu.memory_space<vmem>>, vector<16x32xbf16>
      %12 = arith.extf %11 : vector<16x32xbf16> to vector<16x32xf32>
      %cst_10 = arith.constant dense<0.000000e+00> : vector<16xf32>
      %13 = vector.multi_reduction <add>, %12, %cst_10 [1] : vector<16x32xf32> to vector<16xf32>
      %14 = vector.shape_cast %13 : vector<16xf32> to vector<16x1xf32>
      %cst_11 = arith.constant 3.200000e+01 : f32
      %15 = vector.broadcast %cst_11 : f32 to vector<16x1xf32>
      %16 = arith.divf %14, %15 : vector<16x1xf32>
      %17 = vector.broadcast %16 : vector<16x1xf32> to vector<16x32xf32>
      %18 = arith.subf %12, %17 : vector<16x32xf32>
      %19 = arith.mulf %18, %18 : vector<16x32xf32>
      %cst_12 = arith.constant dense<0.000000e+00> : vector<16xf32>
      %20 = vector.multi_reduction <add>, %19, %cst_12 [1] : vector<16x32xf32> to vector<16xf32>
      %21 = vector.shape_cast %20 : vector<16xf32> to vector<16x1xf32>
      %cst_13 = arith.constant 3.200000e+01 : f32
      %22 = vector.broadcast %cst_13 : f32 to vector<16x1xf32>
      %23 = arith.divf %21, %22 : vector<16x1xf32>
      %24 = vector.broadcast %16 : vector<16x1xf32> to vector<16x32xf32>
      %25 = arith.subf %12, %24 : vector<16x32xf32>
      %cst_14 = arith.constant 9.99999974E-6 : f32
      %26 = vector.broadcast %cst_14 : f32 to vector<16x1xf32>
      %27 = arith.addf %23, %26 : vector<16x1xf32>
      %28 = math.rsqrt %27 : vector<16x1xf32>
      %29 = vector.broadcast %28 : vector<16x1xf32> to vector<16x32xf32>
      %30 = arith.mulf %25, %29 : vector<16x32xf32>
      %c0_15 = arith.constant 0 : index
      %c0_16 = arith.constant 0 : index
      %31 = vector.load %arg3[%c0_15, %c0_16] : memref<1x32xf32, #tpu.memory_space<vmem>>, vector<1x32xf32>
      %32 = vector.broadcast %31 : vector<1x32xf32> to vector<16x32xf32>
      %33 = arith.mulf %30, %32 : vector<16x32xf32>
      %c0_17 = arith.constant 0 : index
      %c0_18 = arith.constant 0 : index
      %34 = vector.load %arg4[%c0_17, %c0_18] : memref<1x32xf32, #tpu.memory_space<vmem>>, vector<1x32xf32>
      %35 = vector.broadcast %34 : vector<1x32xf32> to vector<16x32xf32>
      %36 = arith.addf %33, %35 : vector<16x32xf32>
      %37 = arith.truncf %36 : vector<16x32xf32> to vector<16x32xbf16>
      %c0_19 = arith.constant 0 : index
      %c0_20 = arith.constant 0 : index
      %38 = vector.load %arg8[%c0_19, %c0_20] : memref<16x32xbf16, #tpu.memory_space<vmem>>, vector<16x32xbf16>
      tpu.vector_store %arg8[%c0_19, %c0_20], %37 {strides = array<i32>} : memref<16x32xbf16, #tpu.memory_space<vmem>>, vector<16x32xbf16>,
    } else {
    }
    %c0 = arith.constant 0 : index
    %c0_1 = arith.constant 0 : index
    %3 = vector.load %arg8[%c0, %c0_1] : memref<16x32xbf16, #tpu.memory_space<vmem>>, vector<16x32xbf16>
    %c0_2 = arith.constant 0 : index
    %c0_3 = arith.constant 0 : index
    %4 = vector.load %arg5[%c0_2, %c0_3] : memref<32x96xbf16, #tpu.memory_space<vmem>>, vector<32x96xbf16>
    %cst = arith.constant dense<0.000000e+00> : vector<16x96xf32>
    %5 = tpu.matmul %3, %4, %cst {dimension_numbers = #tpu.dot_dimension_numbers<[1], [0], [0], [1], [0, 0, 1, 1], [], []>} : vector<16x32xbf16>, vector<32x96xbf16>, vector<16x96xf32> -> vector<16x96xf32>
    %c0_4 = arith.constant 0 : index
    %c0_5 = arith.constant 0 : index
    %6 = vector.load %arg6[%c0_4, %c0_5] : memref<1x96xf32, #tpu.memory_space<vmem>>, vector<1x96xf32>
    %7 = vector.broadcast %6 : vector<1x96xf32> to vector<16x96xf32>
    %8 = arith.addf %5, %7 : vector<16x96xf32>
    %9 = arith.truncf %8 : vector<16x96xf32> to vector<16x96xbf16>
    %c0_6 = arith.constant 0 : index
    %c0_7 = arith.constant 0 : index
    %10 = vector.load %arg7[%c0_6, %c0_7] : memref<16x96xbf16, #tpu.memory_space<vmem>>, vector<16x96xbf16>
    tpu.vector_store %arg7[%c0_6, %c0_7], %9 {strides = array<i32>} : memref<16x96xbf16, #tpu.memory_space<vmem>>, vector<16x96xbf16>,
    return
  }
  func.func @transform_0(%arg0: i32, %arg1: i32) -> (i32, i32) {
    %c0_i32 = arith.constant 0 : i32
    %c0_i32_0 = arith.constant 0 : i32
    return %arg0, %c0_i32 : i32, i32
  }
  func.func @transform_1(%arg0: i32, %arg1: i32) -> (i32, i32) {
    %c0_i32 = arith.constant 0 : i32
    %c0_i32_0 = arith.constant 0 : i32
    %c0_i32_1 = arith.constant 0 : i32
    return %c0_i32, %c0_i32_0 : i32, i32
  }
  func.func @transform_2(%arg0: i32, %arg1: i32) -> (i32, i32) {
    %c0_i32 = arith.constant 0 : i32
    %c0_i32_0 = arith.constant 0 : i32
    %c0_i32_1 = arith.constant 0 : i32
    return %c0_i32, %c0_i32_0 : i32, i32
  }
  func.func @transform_3(%arg0: i32, %arg1: i32) -> (i32, i32) {
    %c0_i32 = arith.constant 0 : i32
    %c0_i32_0 = arith.constant 0 : i32
    return %c0_i32, %arg1 : i32, i32
  }
  func.func @transform_4(%arg0: i32, %arg1: i32) -> (i32, i32) {
    %c0_i32 = arith.constant 0 : i32
    %c0_i32_0 = arith.constant 0 : i32
    return %c0_i32, %arg1 : i32, i32
  }
  func.func @transform_5(%arg0: i32, %arg1: i32) -> (i32, i32) {
    %c0_i32 = arith.constant 0 : i32
    return %arg0, %arg1 : i32, i32
  }
}

module attributes {stable_mosaic.version = 11 : i64} {
  func.func @_flash_attn_kernel(%arg0: i32, %arg1: i32, %arg2: memref<1xi32, #tpu.memory_space<smem>>, %arg3: memref<1xi32, #tpu.memory_space<smem>>, %arg4: memref<1x4x8x8xbf16, #tpu.memory_space<vmem>>, %arg5: memref<1x4x8x8xbf16, #tpu.memory_space<vmem>>, %arg6: memref<1x4x8x8xbf16, #tpu.memory_space<vmem>>, %arg7: memref<1x4x8x8xbf16, #tpu.memory_space<vmem>>, %arg8: memref<4x8x1xf32, #tpu.memory_space<vmem>>, %arg9: memref<4x8x1xf32, #tpu.memory_space<vmem>>, %arg10: memref<4x8x8xf32, #tpu.memory_space<vmem>>) attributes {dimension_semantics = [#tpu.dimension_semantics<parallel>, #tpu.dimension_semantics<arbitrary>], iteration_bounds = array<i64: 2, 1>, scalar_prefetch = 2 : i64, scratch_operands = 3 : i64, tpu.core_type = #tpu.core_type<tc>, window_params = [{transform_indices = @transform_0, window_bounds = array<i64: 1, 4, 8, 8>}, {transform_indices = @transform_1, window_bounds = array<i64: 1, 4, 8, 8>}, {transform_indices = @transform_2, window_bounds = array<i64: 1, 4, 8, 8>}, {transform_indices = @transform_3, window_bounds = array<i64: 1, 4, 8, 8>}]} {
    %0 = arith.index_cast %arg1 : i32 to index
    %1 = memref.load %arg2[%0] : memref<1xi32, #tpu.memory_space<smem>>
    %2 = arith.index_cast %arg1 : i32 to index
    %3 = memref.load %arg3[%2] : memref<1xi32, #tpu.memory_space<smem>>
    %c0_i32 = arith.constant 0 : i32
    %4 = arith.cmpi eq, %arg1, %c0_i32 : i32
    %c1_i32 = arith.constant 1 : i32
    %5 = arith.subi %arg1, %c1_i32 : i32
    %c0_i32_0 = arith.constant 0 : i32
    %6 = arith.maxsi %5, %c0_i32_0 : i32
    %7 = arith.index_cast %6 : i32 to index
    %8 = memref.load %arg2[%7] : memref<1xi32, #tpu.memory_space<smem>>
    %9 = arith.cmpi ne, %8, %1 : i32
    %10 = arith.ori %4, %9 : i1
    %c0_i32_1 = arith.constant 0 : i32
    %11 = arith.cmpi eq, %arg1, %c0_i32_1 : i32
    %c1_i32_2 = arith.constant 1 : i32
    %12 = arith.addi %arg1, %c1_i32_2 : i32
    %c0_i32_3 = arith.constant 0 : i32
    %13 = arith.minsi %12, %c0_i32_3 : i32
    %14 = arith.index_cast %13 : i32 to index
    %15 = memref.load %arg2[%14] : memref<1xi32, #tpu.memory_space<smem>>
    %16 = arith.cmpi ne, %15, %1 : i32
    %17 = arith.ori %11, %16 : i1
    %18 = arith.extui %10 : i1 to i32
    %c0_i32_4 = arith.constant 0 : i32
    %19 = arith.cmpi ne, %18, %c0_i32_4 : i32
    scf.if %19 {
      %cst_44 = arith.constant 0xFF800000 : f32
      %90 = vector.broadcast %cst_44 : f32 to vector<4x8x1xf32>
      %c0_45 = arith.constant 0 : index
      %c0_46 = arith.constant 0 : index
      %c0_47 = arith.constant 0 : index
      %91 = vector.load %arg8[%c0_45, %c0_46, %c0_47] : memref<4x8x1xf32, #tpu.memory_space<vmem>>, vector<4x8x1xf32>
      tpu.vector_store %arg8[%c0_45, %c0_46, %c0_47], %90 {strides = array<i32>} : memref<4x8x1xf32, #tpu.memory_space<vmem>>, vector<4x8x1xf32>,
      %cst_48 = arith.constant 0.000000e+00 : f32
      %92 = vector.broadcast %cst_48 : f32 to vector<4x8x1xf32>
      %c0_49 = arith.constant 0 : index
      %c0_50 = arith.constant 0 : index
      %c0_51 = arith.constant 0 : index
      %93 = vector.load %arg9[%c0_49, %c0_50, %c0_51] : memref<4x8x1xf32, #tpu.memory_space<vmem>>, vector<4x8x1xf32>
      tpu.vector_store %arg9[%c0_49, %c0_50, %c0_51], %92 {strides = array<i32>} : memref<4x8x1xf32, #tpu.memory_space<vmem>>, vector<4x8x1xf32>,
      %cst_52 = arith.constant 0.000000e+00 : f32
      %94 = vector.broadcast %cst_52 : f32 to vector<4x8x8xf32>
      %c0_53 = arith.constant 0 : index
      %c0_54 = arith.constant 0 : index
      %c0_55 = arith.constant 0 : index
      %95 = vector.load %arg10[%c0_53, %c0_54, %c0_55] : memref<4x8x8xf32, #tpu.memory_space<vmem>>, vector<4x8x8xf32>
      tpu.vector_store %arg10[%c0_53, %c0_54, %c0_55], %94 {strides = array<i32>} : memref<4x8x8xf32, #tpu.memory_space<vmem>>, vector<4x8x8xf32>,
    } else {
    }
    %c0 = arith.constant 0 : index
    %c0_5 = arith.constant 0 : index
    %c0_6 = arith.constant 0 : index
    %c0_7 = arith.constant 0 : index
    %20 = vector.load %arg4[%c0, %c0_5, %c0_6, %c0_7] : memref<1x4x8x8xbf16, #tpu.memory_space<vmem>>, vector<1x4x8x8xbf16>
    %21 = vector.shape_cast %20 : vector<1x4x8x8xbf16> to vector<4x8x8xbf16>
    %c0_8 = arith.constant 0 : index
    %c0_9 = arith.constant 0 : index
    %c0_10 = arith.constant 0 : index
    %c0_11 = arith.constant 0 : index
    %22 = vector.load %arg5[%c0_8, %c0_9, %c0_10, %c0_11] : memref<1x4x8x8xbf16, #tpu.memory_space<vmem>>, vector<1x4x8x8xbf16>
    %23 = vector.shape_cast %22 : vector<1x4x8x8xbf16> to vector<4x8x8xbf16>
    %c0_12 = arith.constant 0 : index
    %c0_13 = arith.constant 0 : index
    %c0_14 = arith.constant 0 : index
    %c0_15 = arith.constant 0 : index
    %24 = vector.load %arg6[%c0_12, %c0_13, %c0_14, %c0_15] : memref<1x4x8x8xbf16, #tpu.memory_space<vmem>>, vector<1x4x8x8xbf16>
    %25 = vector.shape_cast %24 : vector<1x4x8x8xbf16> to vector<4x8x8xbf16>
    "tpu.trace_start"() <{level = 10 : i32, message = "hqd,hkd->hqk"}> : () -> ()
    %cst = arith.constant dense<0.000000e+00> : vector<4x8x8xf32>
    %26 = tpu.matmul %21, %23, %cst {dimension_numbers = #tpu.dot_dimension_numbers<[2], [2], [1], [1], [0, 0, 0, 1, 1, 1], [0], [0]>} : vector<4x8x8xbf16>, vector<4x8x8xbf16>, vector<4x8x8xf32> -> vector<4x8x8xf32>
    "tpu.trace_stop"() : () -> ()
    %cst_16 = arith.constant 0.353553385 : f32
    %27 = vector.broadcast %cst_16 : f32 to vector<4x8x8xf32>
    %28 = arith.mulf %26, %27 : vector<4x8x8xf32>
    %c8_i32 = arith.constant 8 : i32
    %29 = arith.muli %1, %c8_i32 : i32
    %c8_i32_17 = arith.constant 8 : i32
    %30 = arith.muli %3, %c8_i32_17 : i32
    %31 = tpu.iota {dimensions = array<i32: 0>} : vector<8x8xi32>
    %32 = vector.broadcast %29 : i32 to vector<8x8xi32>
    %33 = arith.addi %32, %31 : vector<8x8xi32>
    %34 = tpu.iota {dimensions = array<i32: 1>} : vector<8x8xi32>
    %35 = vector.broadcast %30 : i32 to vector<8x8xi32>
    %36 = arith.addi %35, %34 : vector<8x8xi32>
    %37 = arith.cmpi sgt, %36, %33 : vector<8x8xi32>
    %38 = arith.subi %33, %36 : vector<8x8xi32>
    %c4_i32 = arith.constant 4 : i32
    %39 = vector.broadcast %c4_i32 : i32 to vector<8x8xi32>
    %40 = arith.cmpi sge, %38, %39 : vector<8x8xi32>
    %c2_i32 = arith.constant 2 : i32
    %41 = vector.broadcast %c2_i32 : i32 to vector<8x8xi32>
    %42 = arith.cmpi eq, %33, %41 : vector<8x8xi32>
    %c3_i32 = arith.constant 3 : i32
    %43 = vector.broadcast %c3_i32 : i32 to vector<8x8xi32>
    %44 = arith.cmpi eq, %33, %43 : vector<8x8xi32>
    %45 = arith.ori %42, %44 : vector<8x8xi1>
    %c4_i32_18 = arith.constant 4 : i32
    %46 = vector.broadcast %c4_i32_18 : i32 to vector<8x8xi32>
    %47 = arith.cmpi eq, %33, %46 : vector<8x8xi32>
    %48 = arith.ori %45, %47 : vector<8x8xi1>
    %c5_i32 = arith.constant 5 : i32
    %49 = vector.broadcast %c5_i32 : i32 to vector<8x8xi32>
    %50 = arith.cmpi eq, %33, %49 : vector<8x8xi32>
    %51 = arith.ori %48, %50 : vector<8x8xi1>
    %cst_19 = arith.constant dense<true> : vector<8x8xi1>
    %52 = arith.xori %51, %cst_19 : vector<8x8xi1>
    %53 = arith.andi %40, %52 : vector<8x8xi1>
    %54 = arith.ori %37, %53 : vector<8x8xi1>
    %55 = vector.shape_cast %54 : vector<8x8xi1> to vector<1x8x8xi1>
    %cst_20 = arith.constant -1.000000e+09 : f32
    %56 = vector.shape_cast %55 : vector<1x8x8xi1> to vector<1x8x8xi1>
    %57 = vector.broadcast %56 : vector<1x8x8xi1> to vector<4x8x8xi1>
    %58 = vector.broadcast %cst_20 : f32 to vector<4x8x8xf32>
    %59 = arith.select %57, %58, %28 : vector<4x8x8xi1>, vector<4x8x8xf32>
    %c0_21 = arith.constant 0 : index
    %c0_22 = arith.constant 0 : index
    %c0_23 = arith.constant 0 : index
    %60 = vector.load %arg8[%c0_21, %c0_22, %c0_23] : memref<4x8x1xf32, #tpu.memory_space<vmem>>, vector<4x8x1xf32>
    %cst_24 = arith.constant dense<0xFF800000> : vector<4x8xf32>
    %61 = vector.multi_reduction <maximumf>, %59, %cst_24 [2] : vector<4x8x8xf32> to vector<4x8xf32>
    %62 = vector.shape_cast %61 : vector<4x8xf32> to vector<4x8x1xf32>
    %63 = arith.maximumf %60, %62 : vector<4x8x1xf32>
    %64 = arith.subf %60, %63 : vector<4x8x1xf32>
    %65 = math.exp %64 : vector<4x8x1xf32>
    %66 = vector.broadcast %63 : vector<4x8x1xf32> to vector<4x8x8xf32>
    %67 = arith.subf %59, %66 : vector<4x8x8xf32>
    %68 = math.exp %67 : vector<4x8x8xf32>
    %69 = vector.shape_cast %54 : vector<8x8xi1> to vector<1x8x8xi1>
    %cst_25 = arith.constant 0.000000e+00 : f32
    %70 = vector.shape_cast %69 : vector<1x8x8xi1> to vector<1x8x8xi1>
    %71 = vector.broadcast %70 : vector<1x8x8xi1> to vector<4x8x8xi1>
    %72 = vector.broadcast %cst_25 : f32 to vector<4x8x8xf32>
    %73 = arith.select %71, %72, %68 : vector<4x8x8xi1>, vector<4x8x8xf32>
    %c0_26 = arith.constant 0 : index
    %c0_27 = arith.constant 0 : index
    %c0_28 = arith.constant 0 : index
    %74 = vector.load %arg9[%c0_26, %c0_27, %c0_28] : memref<4x8x1xf32, #tpu.memory_space<vmem>>, vector<4x8x1xf32>
    %75 = arith.mulf %65, %74 : vector<4x8x1xf32>
    %cst_29 = arith.constant dense<0.000000e+00> : vector<4x8xf32>
    %76 = vector.multi_reduction <add>, %73, %cst_29 [2] : vector<4x8x8xf32> to vector<4x8xf32>
    %77 = vector.shape_cast %76 : vector<4x8xf32> to vector<4x8x1xf32>
    %78 = arith.addf %75, %77 : vector<4x8x1xf32>
    %c0_30 = arith.constant 0 : index
    %c0_31 = arith.constant 0 : index
    %c0_32 = arith.constant 0 : index
    %79 = vector.load %arg9[%c0_30, %c0_31, %c0_32] : memref<4x8x1xf32, #tpu.memory_space<vmem>>, vector<4x8x1xf32>
    tpu.vector_store %arg9[%c0_30, %c0_31, %c0_32], %78 {strides = array<i32>} : memref<4x8x1xf32, #tpu.memory_space<vmem>>, vector<4x8x1xf32>,
    %c0_33 = arith.constant 0 : index
    %c0_34 = arith.constant 0 : index
    %c0_35 = arith.constant 0 : index
    %80 = vector.load %arg10[%c0_33, %c0_34, %c0_35] : memref<4x8x8xf32, #tpu.memory_space<vmem>>, vector<4x8x8xf32>
    %81 = vector.broadcast %65 : vector<4x8x1xf32> to vector<4x8x8xf32>
    %82 = arith.mulf %81, %80 : vector<4x8x8xf32>
    %83 = arith.truncf %73 : vector<4x8x8xf32> to vector<4x8x8xbf16>
    "tpu.trace_start"() <{level = 10 : i32, message = "hqk,hkd->hqd"}> : () -> ()
    %cst_36 = arith.constant dense<0.000000e+00> : vector<4x8x8xf32>
    %84 = tpu.matmul %83, %25, %cst_36 {dimension_numbers = #tpu.dot_dimension_numbers<[2], [1], [1], [2], [0, 0, 0, 1, 1, 2], [0], [0]>} : vector<4x8x8xbf16>, vector<4x8x8xbf16>, vector<4x8x8xf32> -> vector<4x8x8xf32>
    "tpu.trace_stop"() : () -> ()
    %85 = arith.addf %82, %84 : vector<4x8x8xf32>
    %c0_37 = arith.constant 0 : index
    %c0_38 = arith.constant 0 : index
    %c0_39 = arith.constant 0 : index
    %86 = vector.load %arg10[%c0_37, %c0_38, %c0_39] : memref<4x8x8xf32, #tpu.memory_space<vmem>>, vector<4x8x8xf32>
    tpu.vector_store %arg10[%c0_37, %c0_38, %c0_39], %85 {strides = array<i32>} : memref<4x8x8xf32, #tpu.memory_space<vmem>>, vector<4x8x8xf32>,
    %c0_40 = arith.constant 0 : index
    %c0_41 = arith.constant 0 : index
    %c0_42 = arith.constant 0 : index
    %87 = vector.load %arg8[%c0_40, %c0_41, %c0_42] : memref<4x8x1xf32, #tpu.memory_space<vmem>>, vector<4x8x1xf32>
    tpu.vector_store %arg8[%c0_40, %c0_41, %c0_42], %63 {strides = array<i32>} : memref<4x8x1xf32, #tpu.memory_space<vmem>>, vector<4x8x1xf32>,
    %88 = arith.extui %17 : i1 to i32
    %c0_i32_43 = arith.constant 0 : i32
    %89 = arith.cmpi ne, %88, %c0_i32_43 : i32
    scf.if %89 {
      %c0_44 = arith.constant 0 : index
      %c0_45 = arith.constant 0 : index
      %c0_46 = arith.constant 0 : index
      %90 = vector.load %arg10[%c0_44, %c0_45, %c0_46] : memref<4x8x8xf32, #tpu.memory_space<vmem>>, vector<4x8x8xf32>
      %c0_47 = arith.constant 0 : index
      %c0_48 = arith.constant 0 : index
      %c0_49 = arith.constant 0 : index
      %91 = vector.load %arg9[%c0_47, %c0_48, %c0_49] : memref<4x8x1xf32, #tpu.memory_space<vmem>>, vector<4x8x1xf32>
      %92 = tpu.reciprocal %91 {approx = true} : vector<4x8x1xf32> -> vector<4x8x1xf32>
      %93 = vector.broadcast %92 : vector<4x8x1xf32> to vector<4x8x8xf32>
      %94 = arith.mulf %90, %93 : vector<4x8x8xf32>
      %95 = arith.truncf %94 : vector<4x8x8xf32> to vector<4x8x8xbf16>
      %c0_50 = arith.constant 0 : index
      %c0_51 = arith.constant 0 : index
      %c0_52 = arith.constant 0 : index
      %c0_53 = arith.constant 0 : index
      %96 = vector.load %arg7[%c0_50, %c0_51, %c0_52, %c0_53] : memref<1x4x8x8xbf16, #tpu.memory_space<vmem>>, vector<1x4x8x8xbf16>
      %97 = vector.shape_cast %96 : vector<1x4x8x8xbf16> to vector<4x8x8xbf16>
      %98 = vector.shape_cast %95 : vector<4x8x8xbf16> to vector<1x4x8x8xbf16>
      tpu.vector_store %arg7[%c0_50, %c0_51, %c0_52, %c0_53], %98 {strides = array<i32>} : memref<1x4x8x8xbf16, #tpu.memory_space<vmem>>, vector<1x4x8x8xbf16>,
    } else {
    }
    return
  }
  func.func @transform_0(%arg0: i32, %arg1: i32, %arg2: memref<1xi32, #tpu.memory_space<smem>>, %arg3: memref<1xi32, #tpu.memory_space<smem>>) -> (i32, i32, i32, i32) {
    %0 = arith.index_cast %arg1 : i32 to index
    %1 = memref.load %arg2[%0] : memref<1xi32, #tpu.memory_space<smem>>
    %c0_i32 = arith.constant 0 : i32
    %c0_i32_0 = arith.constant 0 : i32
    %c0_i32_1 = arith.constant 0 : i32
    return %arg0, %c0_i32, %1, %c0_i32_0 : i32, i32, i32, i32
  }
  func.func @transform_1(%arg0: i32, %arg1: i32, %arg2: memref<1xi32, #tpu.memory_space<smem>>, %arg3: memref<1xi32, #tpu.memory_space<smem>>) -> (i32, i32, i32, i32) {
    %0 = arith.index_cast %arg1 : i32 to index
    %1 = memref.load %arg3[%0] : memref<1xi32, #tpu.memory_space<smem>>
    %c0_i32 = arith.constant 0 : i32
    %c0_i32_0 = arith.constant 0 : i32
    %c0_i32_1 = arith.constant 0 : i32
    return %arg0, %c0_i32, %1, %c0_i32_0 : i32, i32, i32, i32
  }
  func.func @transform_2(%arg0: i32, %arg1: i32, %arg2: memref<1xi32, #tpu.memory_space<smem>>, %arg3: memref<1xi32, #tpu.memory_space<smem>>) -> (i32, i32, i32, i32) {
    %0 = arith.index_cast %arg1 : i32 to index
    %1 = memref.load %arg3[%0] : memref<1xi32, #tpu.memory_space<smem>>
    %c0_i32 = arith.constant 0 : i32
    %c0_i32_0 = arith.constant 0 : i32
    %c0_i32_1 = arith.constant 0 : i32
    return %arg0, %c0_i32, %1, %c0_i32_0 : i32, i32, i32, i32
  }
  func.func @transform_3(%arg0: i32, %arg1: i32, %arg2: memref<1xi32, #tpu.memory_space<smem>>, %arg3: memref<1xi32, #tpu.memory_space<smem>>) -> (i32, i32, i32, i32) {
    %0 = arith.index_cast %arg1 : i32 to index
    %1 = memref.load %arg2[%0] : memref<1xi32, #tpu.memory_space<smem>>
    %c0_i32 = arith.constant 0 : i32
    %c0_i32_0 = arith.constant 0 : i32
    %c0_i32_1 = arith.constant 0 : i32
    return %arg0, %c0_i32, %1, %c0_i32_0 : i32, i32, i32, i32
  }
}

module attributes {stable_mosaic.version = 11 : i64} {
  func.func @_matmul_residual_kernel(%arg0: i32, %arg1: i32, %arg2: memref<16x32xbf16, #tpu.memory_space<vmem>>, %arg3: memref<32x32xbf16, #tpu.memory_space<vmem>>, %arg4: memref<1x32xf32, #tpu.memory_space<vmem>>, %arg5: memref<16x32xbf16, #tpu.memory_space<vmem>>, %arg6: memref<16x32xbf16, #tpu.memory_space<vmem>>) attributes {dimension_semantics = [#tpu.dimension_semantics<parallel>, #tpu.dimension_semantics<parallel>], iteration_bounds = array<i64: 1, 1>, scalar_prefetch = 0 : i64, scratch_operands = 0 : i64, tpu.core_type = #tpu.core_type<tc>, window_params = [{transform_indices = @transform_0, window_bounds = array<i64: 16, 32>}, {transform_indices = @transform_1, window_bounds = array<i64: 32, 32>}, {transform_indices = @transform_2, window_bounds = array<i64: 1, 32>}, {transform_indices = @transform_3, window_bounds = array<i64: 16, 32>}, {transform_indices = @transform_4, window_bounds = array<i64: 16, 32>}]} {
    %c0 = arith.constant 0 : index
    %c0_0 = arith.constant 0 : index
    %0 = vector.load %arg2[%c0, %c0_0] : memref<16x32xbf16, #tpu.memory_space<vmem>>, vector<16x32xbf16>
    %c0_1 = arith.constant 0 : index
    %c0_2 = arith.constant 0 : index
    %1 = vector.load %arg3[%c0_1, %c0_2] : memref<32x32xbf16, #tpu.memory_space<vmem>>, vector<32x32xbf16>
    %cst = arith.constant dense<0.000000e+00> : vector<16x32xf32>
    %2 = tpu.matmul %0, %1, %cst {dimension_numbers = #tpu.dot_dimension_numbers<[1], [0], [0], [1], [0, 0, 1, 1], [], []>} : vector<16x32xbf16>, vector<32x32xbf16>, vector<16x32xf32> -> vector<16x32xf32>
    %c0_3 = arith.constant 0 : index
    %c0_4 = arith.constant 0 : index
    %3 = vector.load %arg5[%c0_3, %c0_4] : memref<16x32xbf16, #tpu.memory_space<vmem>>, vector<16x32xbf16>
    %4 = arith.extf %3 : vector<16x32xbf16> to vector<16x32xf32>
    %5 = arith.addf %4, %2 : vector<16x32xf32>
    %c0_5 = arith.constant 0 : index
    %c0_6 = arith.constant 0 : index
    %6 = vector.load %arg4[%c0_5, %c0_6] : memref<1x32xf32, #tpu.memory_space<vmem>>, vector<1x32xf32>
    %7 = vector.broadcast %6 : vector<1x32xf32> to vector<16x32xf32>
    %8 = arith.addf %5, %7 : vector<16x32xf32>
    %9 = arith.truncf %8 : vector<16x32xf32> to vector<16x32xbf16>
    %c0_7 = arith.constant 0 : index
    %c0_8 = arith.constant 0 : index
    %10 = vector.load %arg6[%c0_7, %c0_8] : memref<16x32xbf16, #tpu.memory_space<vmem>>, vector<16x32xbf16>
    tpu.vector_store %arg6[%c0_7, %c0_8], %9 {strides = array<i32>} : memref<16x32xbf16, #tpu.memory_space<vmem>>, vector<16x32xbf16>,
    return
  }
  func.func @transform_0(%arg0: i32, %arg1: i32) -> (i32, i32) {
    %c0_i32 = arith.constant 0 : i32
    %c0_i32_0 = arith.constant 0 : i32
    return %arg0, %c0_i32 : i32, i32
  }
  func.func @transform_1(%arg0: i32, %arg1: i32) -> (i32, i32) {
    %c0_i32 = arith.constant 0 : i32
    %c0_i32_0 = arith.constant 0 : i32
    return %c0_i32, %arg1 : i32, i32
  }
  func.func @transform_2(%arg0: i32, %arg1: i32) -> (i32, i32) {
    %c0_i32 = arith.constant 0 : i32
    %c0_i32_0 = arith.constant 0 : i32
    return %c0_i32, %arg1 : i32, i32
  }
  func.func @transform_3(%arg0: i32, %arg1: i32) -> (i32, i32) {
    %c0_i32 = arith.constant 0 : i32
    return %arg0, %arg1 : i32, i32
  }
  func.func @transform_4(%arg0: i32, %arg1: i32) -> (i32, i32) {
    %c0_i32 = arith.constant 0 : i32
    return %arg0, %arg1 : i32, i32
  }
}

module attributes {stable_mosaic.version = 11 : i64} {
  func.func @_moe_kernel(%arg0: i32, %arg1: i32, %arg2: i32, %arg3: memref<1x2xi32, #tpu.memory_space<smem>>, %arg4: memref<16x32xbf16, #tpu.memory_space<vmem>>, %arg5: memref<1x32xf32, #tpu.memory_space<vmem>>, %arg6: memref<1x32xf32, #tpu.memory_space<vmem>>, %arg7: memref<16x1xi32, #tpu.memory_space<vmem>>, %arg8: memref<1x32x48xbf16, #tpu.memory_space<vmem>>, %arg9: memref<1x1x48xf32, #tpu.memory_space<vmem>>, %arg10: memref<1x32x48xbf16, #tpu.memory_space<vmem>>, %arg11: memref<1x1x48xf32, #tpu.memory_space<vmem>>, %arg12: memref<1x48x32xbf16, #tpu.memory_space<vmem>>, %arg13: memref<1x1x32xf32, #tpu.memory_space<vmem>>, %arg14: memref<16x32xbf16, #tpu.memory_space<vmem>>, %arg15: memref<16x32xbf16, #tpu.memory_space<vmem>>, %arg16: memref<16x32xf32, #tpu.memory_space<vmem>>) attributes {dimension_semantics = [#tpu.dimension_semantics<parallel>, #tpu.dimension_semantics<arbitrary>, #tpu.dimension_semantics<arbitrary>], iteration_bounds = array<i64: 1, 2, 1>, scalar_prefetch = 1 : i64, scratch_operands = 2 : i64, tpu.core_type = #tpu.core_type<tc>, window_params = [{transform_indices = @transform_0, window_bounds = array<i64: 16, 32>}, {pipeline_mode = #tpu.pipeline_mode<synchronous>, transform_indices = @transform_1, window_bounds = array<i64: 1, 32>}, {pipeline_mode = #tpu.pipeline_mode<synchronous>, transform_indices = @transform_2, window_bounds = array<i64: 1, 32>}, {transform_indices = @transform_3, window_bounds = array<i64: 16, 1>}, {transform_indices = @transform_4, window_bounds = array<i64: 1, 32, 48>}, {transform_indices = @transform_5, window_bounds = array<i64: 1, 1, 48>}, {transform_indices = @transform_6, window_bounds = array<i64: 1, 32, 48>}, {transform_indices = @transform_7, window_bounds = array<i64: 1, 1, 48>}, {transform_indices = @transform_8, window_bounds = array<i64: 1, 48, 32>}, {transform_indices = @transform_9, window_bounds = array<i64: 1, 1, 32>}, {transform_indices = @transform_10, window_bounds = array<i64: 16, 32>}]} {
    %c0_i32 = arith.constant 0 : i32
    %0 = arith.cmpi eq, %arg1, %c0_i32 : i32
    %c0_i32_0 = arith.constant 0 : i32
    %1 = arith.cmpi eq, %arg2, %c0_i32_0 : i32
    %2 = arith.andi %0, %1 : i1
    %3 = arith.extui %2 : i1 to i32
    %c0_i32_1 = arith.constant 0 : i32
    %4 = arith.cmpi ne, %3, %c0_i32_1 : i32
    scf.if %4 {
      %c0 = arith.constant 0 : index
      %c0_6 = arith.constant 0 : index
      %16 = vector.load %arg4[%c0, %c0_6] : memref<16x32xbf16, #tpu.memory_space<vmem>>, vector<16x32xbf16>
      %17 = arith.extf %16 : vector<16x32xbf16> to vector<16x32xf32>
      %cst = arith.constant dense<0.000000e+00> : vector<16xf32>
      %18 = vector.multi_reduction <add>, %17, %cst [1] : vector<16x32xf32> to vector<16xf32>
      %19 = vector.shape_cast %18 : vector<16xf32> to vector<16x1xf32>
      %cst_7 = arith.constant 3.200000e+01 : f32
      %20 = vector.broadcast %cst_7 : f32 to vector<16x1xf32>
      %21 = arith.divf %19, %20 : vector<16x1xf32>
      %22 = vector.broadcast %21 : vector<16x1xf32> to vector<16x32xf32>
      %23 = arith.subf %17, %22 : vector<16x32xf32>
      %24 = arith.mulf %23, %23 : vector<16x32xf32>
      %cst_8 = arith.constant dense<0.000000e+00> : vector<16xf32>
      %25 = vector.multi_reduction <add>, %24, %cst_8 [1] : vector<16x32xf32> to vector<16xf32>
      %26 = vector.shape_cast %25 : vector<16xf32> to vector<16x1xf32>
      %cst_9 = arith.constant 3.200000e+01 : f32
      %27 = vector.broadcast %cst_9 : f32 to vector<16x1xf32>
      %28 = arith.divf %26, %27 : vector<16x1xf32>
      %29 = vector.broadcast %21 : vector<16x1xf32> to vector<16x32xf32>
      %30 = arith.subf %17, %29 : vector<16x32xf32>
      %cst_10 = arith.constant 9.99999974E-6 : f32
      %31 = vector.broadcast %cst_10 : f32 to vector<16x1xf32>
      %32 = arith.addf %28, %31 : vector<16x1xf32>
      %33 = math.rsqrt %32 : vector<16x1xf32>
      %34 = vector.broadcast %33 : vector<16x1xf32> to vector<16x32xf32>
      %35 = arith.mulf %30, %34 : vector<16x32xf32>
      %c0_11 = arith.constant 0 : index
      %c0_12 = arith.constant 0 : index
      %36 = vector.load %arg5[%c0_11, %c0_12] : memref<1x32xf32, #tpu.memory_space<vmem>>, vector<1x32xf32>
      %37 = vector.broadcast %36 : vector<1x32xf32> to vector<16x32xf32>
      %38 = arith.mulf %35, %37 : vector<16x32xf32>
      %c0_13 = arith.constant 0 : index
      %c0_14 = arith.constant 0 : index
      %39 = vector.load %arg6[%c0_13, %c0_14] : memref<1x32xf32, #tpu.memory_space<vmem>>, vector<1x32xf32>
      %40 = vector.broadcast %39 : vector<1x32xf32> to vector<16x32xf32>
      %41 = arith.addf %38, %40 : vector<16x32xf32>
      %42 = arith.truncf %41 : vector<16x32xf32> to vector<16x32xbf16>
      %c0_15 = arith.constant 0 : index
      %c0_16 = arith.constant 0 : index
      %43 = vector.load %arg15[%c0_15, %c0_16] : memref<16x32xbf16, #tpu.memory_space<vmem>>, vector<16x32xbf16>
      tpu.vector_store %arg15[%c0_15, %c0_16], %42 {strides = array<i32>} : memref<16x32xbf16, #tpu.memory_space<vmem>>, vector<16x32xbf16>,
      %c0_17 = arith.constant 0 : index
      %c0_18 = arith.constant 0 : index
      %44 = vector.load %arg16[%c0_17, %c0_18] : memref<16x32xf32, #tpu.memory_space<vmem>>, vector<16x32xf32>
      tpu.vector_store %arg16[%c0_17, %c0_18], %17 {strides = array<i32>} : memref<16x32xf32, #tpu.memory_space<vmem>>, vector<16x32xf32>,
    } else {
    }
    %5 = arith.index_cast %arg0 : i32 to index
    %6 = arith.index_cast %arg1 : i32 to index
    %7 = memref.load %arg3[%5, %6] : memref<1x2xi32, #tpu.memory_space<smem>>
    %c0_i32_2 = arith.constant 0 : i32
    %8 = arith.cmpi sgt, %7, %c0_i32_2 : i32
    %9 = arith.extui %8 : i1 to i32
    %c0_i32_3 = arith.constant 0 : i32
    %10 = arith.cmpi ne, %9, %c0_i32_3 : i32
    scf.if %10 {
      %c0 = arith.constant 0 : index
      %c0_6 = arith.constant 0 : index
      %16 = vector.load %arg7[%c0, %c0_6] : memref<16x1xi32, #tpu.memory_space<vmem>>, vector<16x1xi32>
      %17 = vector.broadcast %arg1 : i32 to vector<16x1xi32>
      %18 = arith.cmpi eq, %16, %17 : vector<16x1xi32>
      %cst = arith.constant 1.000000e+00 : f32
      %cst_7 = arith.constant 0.000000e+00 : f32
      %19 = vector.broadcast %cst : f32 to vector<16x1xf32>
      %20 = vector.broadcast %cst_7 : f32 to vector<16x1xf32>
      %21 = arith.select %18, %19, %20 : vector<16x1xi1>, vector<16x1xf32>
      %c0_i32_8 = arith.constant 0 : i32
      %22 = arith.cmpi eq, %arg2, %c0_i32_8 : i32
      %23 = arith.extui %22 : i1 to i32
      %c0_i32_9 = arith.constant 0 : i32
      %24 = arith.cmpi ne, %23, %c0_i32_9 : i32
      scf.if %24 {
        %c0_38 = arith.constant 0 : index
        %c0_39 = arith.constant 0 : index
        %63 = vector.load %arg16[%c0_38, %c0_39] : memref<16x32xf32, #tpu.memory_space<vmem>>, vector<16x32xf32>
        %c0_40 = arith.constant 0 : index
        %c0_41 = arith.constant 0 : index
        %c0_42 = arith.constant 0 : index
        %64 = vector.load %arg13[%c0_40, %c0_41, %c0_42] : memref<1x1x32xf32, #tpu.memory_space<vmem>>, vector<1x1x32xf32>
        %65 = vector.shape_cast %64 : vector<1x1x32xf32> to vector<1x32xf32>
        %66 = vector.broadcast %21 : vector<16x1xf32> to vector<16x32xf32>
        %67 = vector.broadcast %65 : vector<1x32xf32> to vector<16x32xf32>
        %68 = arith.mulf %66, %67 : vector<16x32xf32>
        %69 = arith.addf %63, %68 : vector<16x32xf32>
        %c0_43 = arith.constant 0 : index
        %c0_44 = arith.constant 0 : index
        %70 = vector.load %arg16[%c0_43, %c0_44] : memref<16x32xf32, #tpu.memory_space<vmem>>, vector<16x32xf32>
        tpu.vector_store %arg16[%c0_43, %c0_44], %69 {strides = array<i32>} : memref<16x32xf32, #tpu.memory_space<vmem>>, vector<16x32xf32>,
      } else {
      }
      %c0_10 = arith.constant 0 : index
      %c0_11 = arith.constant 0 : index
      %25 = vector.load %arg15[%c0_10, %c0_11] : memref<16x32xbf16, #tpu.memory_space<vmem>>, vector<16x32xbf16>
      %c0_12 = arith.constant 0 : index
      %c0_13 = arith.constant 0 : index
      %c0_14 = arith.constant 0 : index
      %26 = vector.load %arg8[%c0_12, %c0_13, %c0_14] : memref<1x32x48xbf16, #tpu.memory_space<vmem>>, vector<1x32x48xbf16>
      %27 = vector.shape_cast %26 : vector<1x32x48xbf16> to vector<32x48xbf16>
      %cst_15 = arith.constant dense<0.000000e+00> : vector<16x48xf32>
      %28 = tpu.matmul %25, %27, %cst_15 {dimension_numbers = #tpu.dot_dimension_numbers<[1], [0], [0], [1], [0, 0, 1, 1], [], []>} : vector<16x32xbf16>, vector<32x48xbf16>, vector<16x48xf32> -> vector<16x48xf32>
      %c0_16 = arith.constant 0 : index
      %c0_17 = arith.constant 0 : index
      %c0_18 = arith.constant 0 : index
      %29 = vector.load %arg9[%c0_16, %c0_17, %c0_18] : memref<1x1x48xf32, #tpu.memory_space<vmem>>, vector<1x1x48xf32>
      %30 = vector.shape_cast %29 : vector<1x1x48xf32> to vector<1x48xf32>
      %31 = vector.broadcast %30 : vector<1x48xf32> to vector<16x48xf32>
      %32 = arith.addf %28, %31 : vector<16x48xf32>
      %c0_19 = arith.constant 0 : index
      %c0_20 = arith.constant 0 : index
      %c0_21 = arith.constant 0 : index
      %33 = vector.load %arg10[%c0_19, %c0_20, %c0_21] : memref<1x32x48xbf16, #tpu.memory_space<vmem>>, vector<1x32x48xbf16>
      %34 = vector.shape_cast %33 : vector<1x32x48xbf16> to vector<32x48xbf16>
      %cst_22 = arith.constant dense<0.000000e+00> : vector<16x48xf32>
      %35 = tpu.matmul %25, %34, %cst_22 {dimension_numbers = #tpu.dot_dimension_numbers<[1], [0], [0], [1], [0, 0, 1, 1], [], []>} : vector<16x32xbf16>, vector<32x48xbf16>, vector<16x48xf32> -> vector<16x48xf32>
      %c0_23 = arith.constant 0 : index
      %c0_24 = arith.constant 0 : index
      %c0_25 = arith.constant 0 : index
      %36 = vector.load %arg11[%c0_23, %c0_24, %c0_25] : memref<1x1x48xf32, #tpu.memory_space<vmem>>, vector<1x1x48xf32>
      %37 = vector.shape_cast %36 : vector<1x1x48xf32> to vector<1x48xf32>
      %38 = vector.broadcast %37 : vector<1x48xf32> to vector<16x48xf32>
      %39 = arith.addf %35, %38 : vector<16x48xf32>
      %40 = arith.mulf %39, %39 : vector<16x48xf32>
      %41 = arith.mulf %39, %40 : vector<16x48xf32>
      %cst_26 = arith.constant 4.471500e-02 : f32
      %42 = vector.broadcast %cst_26 : f32 to vector<16x48xf32>
      %43 = arith.mulf %42, %41 : vector<16x48xf32>
      %44 = arith.addf %39, %43 : vector<16x48xf32>
      %cst_27 = arith.constant 0.797884583 : f32
      %45 = vector.broadcast %cst_27 : f32 to vector<16x48xf32>
      %46 = arith.mulf %45, %44 : vector<16x48xf32>
      %47 = math.tanh %46 : vector<16x48xf32>
      %cst_28 = arith.constant 1.000000e+00 : f32
      %48 = vector.broadcast %cst_28 : f32 to vector<16x48xf32>
      %49 = arith.addf %48, %47 : vector<16x48xf32>
      %cst_29 = arith.constant 5.000000e-01 : f32
      %50 = vector.broadcast %cst_29 : f32 to vector<16x48xf32>
      %51 = arith.mulf %50, %49 : vector<16x48xf32>
      %52 = arith.mulf %39, %51 : vector<16x48xf32>
      %53 = arith.mulf %32, %52 : vector<16x48xf32>
      %c0_30 = arith.constant 0 : index
      %c0_31 = arith.constant 0 : index
      %54 = vector.load %arg16[%c0_30, %c0_31] : memref<16x32xf32, #tpu.memory_space<vmem>>, vector<16x32xf32>
      %55 = arith.truncf %53 : vector<16x48xf32> to vector<16x48xbf16>
      %c0_32 = arith.constant 0 : index
      %c0_33 = arith.constant 0 : index
      %c0_34 = arith.constant 0 : index
      %56 = vector.load %arg12[%c0_32, %c0_33, %c0_34] : memref<1x48x32xbf16, #tpu.memory_space<vmem>>, vector<1x48x32xbf16>
      %57 = vector.shape_cast %56 : vector<1x48x32xbf16> to vector<48x32xbf16>
      %cst_35 = arith.constant dense<0.000000e+00> : vector<16x32xf32>
      %58 = tpu.matmul %55, %57, %cst_35 {dimension_numbers = #tpu.dot_dimension_numbers<[1], [0], [0], [1], [0, 0, 1, 1], [], []>} : vector<16x48xbf16>, vector<48x32xbf16>, vector<16x32xf32> -> vector<16x32xf32>
      %59 = vector.broadcast %21 : vector<16x1xf32> to vector<16x32xf32>
      %60 = arith.mulf %59, %58 : vector<16x32xf32>
      %61 = arith.addf %54, %60 : vector<16x32xf32>
      %c0_36 = arith.constant 0 : index
      %c0_37 = arith.constant 0 : index
      %62 = vector.load %arg16[%c0_36, %c0_37] : memref<16x32xf32, #tpu.memory_space<vmem>>, vector<16x32xf32>
      tpu.vector_store %arg16[%c0_36, %c0_37], %61 {strides = array<i32>} : memref<16x32xf32, #tpu.memory_space<vmem>>, vector<16x32xf32>,
    } else {
    }
    %c1_i32 = arith.constant 1 : i32
    %11 = arith.cmpi eq, %arg1, %c1_i32 : i32
    %c0_i32_4 = arith.constant 0 : i32
    %12 = arith.cmpi eq, %arg2, %c0_i32_4 : i32
    %13 = arith.andi %11, %12 : i1
    %14 = arith.extui %13 : i1 to i32
    %c0_i32_5 = arith.constant 0 : i32
    %15 = arith.cmpi ne, %14, %c0_i32_5 : i32
    scf.if %15 {
      %c0 = arith.constant 0 : index
      %c0_6 = arith.constant 0 : index
      %16 = vector.load %arg16[%c0, %c0_6] : memref<16x32xf32, #tpu.memory_space<vmem>>, vector<16x32xf32>
      %17 = arith.truncf %16 : vector<16x32xf32> to vector<16x32xbf16>
      %c0_7 = arith.constant 0 : index
      %c0_8 = arith.constant 0 : index
      %18 = vector.load %arg14[%c0_7, %c0_8] : memref<16x32xbf16, #tpu.memory_space<vmem>>, vector<16x32xbf16>
      tpu.vector_store %arg14[%c0_7, %c0_8], %17 {strides = array<i32>} : memref<16x32xbf16, #tpu.memory_space<vmem>>, vector<16x32xbf16>,
    } else {
    }
    return
  }
  func.func @transform_0(%arg0: i32, %arg1: i32, %arg2: i32, %arg3: memref<1x2xi32, #tpu.memory_space<smem>>) -> (i32, i32) {
    %c0_i32 = arith.constant 0 : i32
    %c0_i32_0 = arith.constant 0 : i32
    return %arg0, %c0_i32 : i32, i32
  }
  func.func @transform_1(%arg0: i32, %arg1: i32, %arg2: i32, %arg3: memref<1x2xi32, #tpu.memory_space<smem>>) -> (i32, i32) {
    %c0_i32 = arith.constant 0 : i32
    %c0_i32_0 = arith.constant 0 : i32
    %c0_i32_1 = arith.constant 0 : i32
    return %c0_i32, %c0_i32_0 : i32, i32
  }
  func.func @transform_2(%arg0: i32, %arg1: i32, %arg2: i32, %arg3: memref<1x2xi32, #tpu.memory_space<smem>>) -> (i32, i32) {
    %c0_i32 = arith.constant 0 : i32
    %c0_i32_0 = arith.constant 0 : i32
    %c0_i32_1 = arith.constant 0 : i32
    return %c0_i32, %c0_i32_0 : i32, i32
  }
  func.func @transform_3(%arg0: i32, %arg1: i32, %arg2: i32, %arg3: memref<1x2xi32, #tpu.memory_space<smem>>) -> (i32, i32) {
    %c0_i32 = arith.constant 0 : i32
    %c0_i32_0 = arith.constant 0 : i32
    return %arg0, %c0_i32 : i32, i32
  }
  func.func @transform_4(%arg0: i32, %arg1: i32, %arg2: i32, %arg3: memref<1x2xi32, #tpu.memory_space<smem>>) -> (i32, i32, i32) {
    %c0_i32 = arith.constant 0 : i32
    %c0_i32_0 = arith.constant 0 : i32
    return %arg1, %c0_i32, %arg2 : i32, i32, i32
  }
  func.func @transform_5(%arg0: i32, %arg1: i32, %arg2: i32, %arg3: memref<1x2xi32, #tpu.memory_space<smem>>) -> (i32, i32, i32) {
    %c0_i32 = arith.constant 0 : i32
    %c0_i32_0 = arith.constant 0 : i32
    return %arg1, %c0_i32, %arg2 : i32, i32, i32
  }
  func.func @transform_6(%arg0: i32, %arg1: i32, %arg2: i32, %arg3: memref<1x2xi32, #tpu.memory_space<smem>>) -> (i32, i32, i32) {
    %c0_i32 = arith.constant 0 : i32
    %c0_i32_0 = arith.constant 0 : i32
    return %arg1, %c0_i32, %arg2 : i32, i32, i32
  }
  func.func @transform_7(%arg0: i32, %arg1: i32, %arg2: i32, %arg3: memref<1x2xi32, #tpu.memory_space<smem>>) -> (i32, i32, i32) {
    %c0_i32 = arith.constant 0 : i32
    %c0_i32_0 = arith.constant 0 : i32
    return %arg1, %c0_i32, %arg2 : i32, i32, i32
  }
  func.func @transform_8(%arg0: i32, %arg1: i32, %arg2: i32, %arg3: memref<1x2xi32, #tpu.memory_space<smem>>) -> (i32, i32, i32) {
    %c0_i32 = arith.constant 0 : i32
    %c0_i32_0 = arith.constant 0 : i32
    return %arg1, %arg2, %c0_i32 : i32, i32, i32
  }
  func.func @transform_9(%arg0: i32, %arg1: i32, %arg2: i32, %arg3: memref<1x2xi32, #tpu.memory_space<smem>>) -> (i32, i32, i32) {
    %c0_i32 = arith.constant 0 : i32
    %c0_i32_0 = arith.constant 0 : i32
    %c0_i32_1 = arith.constant 0 : i32
    return %arg1, %c0_i32, %c0_i32_0 : i32, i32, i32
  }
  func.func @transform_10(%arg0: i32, %arg1: i32, %arg2: i32, %arg3: memref<1x2xi32, #tpu.memory_space<smem>>) -> (i32, i32) {
    %c0_i32 = arith.constant 0 : i32
    %c0_i32_0 = arith.constant 0 : i32
    return %arg0, %c0_i32 : i32, i32
  }
}

module attributes {stable_mosaic.version = 11 : i64} {
  func.func @_ln_matmul_kernel(%arg0: i32, %arg1: i32, %arg2: memref<16x32xbf16, #tpu.memory_space<vmem>>, %arg3: memref<1x32xf32, #tpu.memory_space<vmem>>, %arg4: memref<1x32xf32, #tpu.memory_space<vmem>>, %arg5: memref<32x64xbf16, #tpu.memory_space<vmem>>, %arg6: memref<1x64xf32, #tpu.memory_space<vmem>>, %arg7: memref<16x64xf32, #tpu.memory_space<vmem>>, %arg8: memref<16x32xbf16, #tpu.memory_space<vmem>>) attributes {dimension_semantics = [#tpu.dimension_semantics<parallel>, #tpu.dimension_semantics<arbitrary>], iteration_bounds = array<i64: 1, 1>, scalar_prefetch = 0 : i64, scratch_operands = 1 : i64, tpu.core_type = #tpu.core_type<tc>, window_params = [{transform_indices = @transform_0, window_bounds = array<i64: 16, 32>}, {pipeline_mode = #tpu.pipeline_mode<synchronous>, transform_indices = @transform_1, window_bounds = array<i64: 1, 32>}, {pipeline_mode = #tpu.pipeline_mode<synchronous>, transform_indices = @transform_2, window_bounds = array<i64: 1, 32>}, {transform_indices = @transform_3, window_bounds = array<i64: 32, 64>}, {transform_indices = @transform_4, window_bounds = array<i64: 1, 64>}, {transform_indices = @transform_5, window_bounds = array<i64: 16, 64>}]} {
    %c0_i32 = arith.constant 0 : i32
    %0 = arith.cmpi eq, %arg1, %c0_i32 : i32
    %1 = arith.extui %0 : i1 to i32
    %c0_i32_0 = arith.constant 0 : i32
    %2 = arith.cmpi ne, %1, %c0_i32_0 : i32
    scf.if %2 {
      %c0_8 = arith.constant 0 : index
      %c0_9 = arith.constant 0 : index
      %10 = vector.load %arg2[%c0_8, %c0_9] : memref<16x32xbf16, #tpu.memory_space<vmem>>, vector<16x32xbf16>
      %11 = arith.extf %10 : vector<16x32xbf16> to vector<16x32xf32>
      %cst_10 = arith.constant dense<0.000000e+00> : vector<16xf32>
      %12 = vector.multi_reduction <add>, %11, %cst_10 [1] : vector<16x32xf32> to vector<16xf32>
      %13 = vector.shape_cast %12 : vector<16xf32> to vector<16x1xf32>
      %cst_11 = arith.constant 3.200000e+01 : f32
      %14 = vector.broadcast %cst_11 : f32 to vector<16x1xf32>
      %15 = arith.divf %13, %14 : vector<16x1xf32>
      %16 = vector.broadcast %15 : vector<16x1xf32> to vector<16x32xf32>
      %17 = arith.subf %11, %16 : vector<16x32xf32>
      %18 = arith.mulf %17, %17 : vector<16x32xf32>
      %cst_12 = arith.constant dense<0.000000e+00> : vector<16xf32>
      %19 = vector.multi_reduction <add>, %18, %cst_12 [1] : vector<16x32xf32> to vector<16xf32>
      %20 = vector.shape_cast %19 : vector<16xf32> to vector<16x1xf32>
      %cst_13 = arith.constant 3.200000e+01 : f32
      %21 = vector.broadcast %cst_13 : f32 to vector<16x1xf32>
      %22 = arith.divf %20, %21 : vector<16x1xf32>
      %23 = vector.broadcast %15 : vector<16x1xf32> to vector<16x32xf32>
      %24 = arith.subf %11, %23 : vector<16x32xf32>
      %cst_14 = arith.constant 9.99999974E-6 : f32
      %25 = vector.broadcast %cst_14 : f32 to vector<16x1xf32>
      %26 = arith.addf %22, %25 : vector<16x1xf32>
      %27 = math.rsqrt %26 : vector<16x1xf32>
      %28 = vector.broadcast %27 : vector<16x1xf32> to vector<16x32xf32>
      %29 = arith.mulf %24, %28 : vector<16x32xf32>
      %c0_15 = arith.constant 0 : index
      %c0_16 = arith.constant 0 : index
      %30 = vector.load %arg3[%c0_15, %c0_16] : memref<1x32xf32, #tpu.memory_space<vmem>>, vector<1x32xf32>
      %31 = vector.broadcast %30 : vector<1x32xf32> to vector<16x32xf32>
      %32 = arith.mulf %29, %31 : vector<16x32xf32>
      %c0_17 = arith.constant 0 : index
      %c0_18 = arith.constant 0 : index
      %33 = vector.load %arg4[%c0_17, %c0_18] : memref<1x32xf32, #tpu.memory_space<vmem>>, vector<1x32xf32>
      %34 = vector.broadcast %33 : vector<1x32xf32> to vector<16x32xf32>
      %35 = arith.addf %32, %34 : vector<16x32xf32>
      %36 = arith.truncf %35 : vector<16x32xf32> to vector<16x32xbf16>
      %c0_19 = arith.constant 0 : index
      %c0_20 = arith.constant 0 : index
      %37 = vector.load %arg8[%c0_19, %c0_20] : memref<16x32xbf16, #tpu.memory_space<vmem>>, vector<16x32xbf16>
      tpu.vector_store %arg8[%c0_19, %c0_20], %36 {strides = array<i32>} : memref<16x32xbf16, #tpu.memory_space<vmem>>, vector<16x32xbf16>,
    } else {
    }
    %c0 = arith.constant 0 : index
    %c0_1 = arith.constant 0 : index
    %3 = vector.load %arg8[%c0, %c0_1] : memref<16x32xbf16, #tpu.memory_space<vmem>>, vector<16x32xbf16>
    %c0_2 = arith.constant 0 : index
    %c0_3 = arith.constant 0 : index
    %4 = vector.load %arg5[%c0_2, %c0_3] : memref<32x64xbf16, #tpu.memory_space<vmem>>, vector<32x64xbf16>
    %cst = arith.constant dense<0.000000e+00> : vector<16x64xf32>
    %5 = tpu.matmul %3, %4, %cst {dimension_numbers = #tpu.dot_dimension_numbers<[1], [0], [0], [1], [0, 0, 1, 1], [], []>} : vector<16x32xbf16>, vector<32x64xbf16>, vector<16x64xf32> -> vector<16x64xf32>
    %c0_4 = arith.constant 0 : index
    %c0_5 = arith.constant 0 : index
    %6 = vector.load %arg6[%c0_4, %c0_5] : memref<1x64xf32, #tpu.memory_space<vmem>>, vector<1x64xf32>
    %7 = vector.broadcast %6 : vector<1x64xf32> to vector<16x64xf32>
    %8 = arith.addf %5, %7 : vector<16x64xf32>
    %c0_6 = arith.constant 0 : index
    %c0_7 = arith.constant 0 : index
    %9 = vector.load %arg7[%c0_6, %c0_7] : memref<16x64xf32, #tpu.memory_space<vmem>>, vector<16x64xf32>
    tpu.vector_store %arg7[%c0_6, %c0_7], %8 {strides = array<i32>} : memref<16x64xf32, #tpu.memory_space<vmem>>, vector<16x64xf32>,
    return
  }
  func.func @transform_0(%arg0: i32, %arg1: i32) -> (i32, i32) {
    %c0_i32 = arith.constant 0 : i32
    %c0_i32_0 = arith.constant 0 : i32
    return %arg0, %c0_i32 : i32, i32
  }
  func.func @transform_1(%arg0: i32, %arg1: i32) -> (i32, i32) {
    %c0_i32 = arith.constant 0 : i32
    %c0_i32_0 = arith.constant 0 : i32
    %c0_i32_1 = arith.constant 0 : i32
    return %c0_i32, %c0_i32_0 : i32, i32
  }
  func.func @transform_2(%arg0: i32, %arg1: i32) -> (i32, i32) {
    %c0_i32 = arith.constant 0 : i32
    %c0_i32_0 = arith.constant 0 : i32
    %c0_i32_1 = arith.constant 0 : i32
    return %c0_i32, %c0_i32_0 : i32, i32
  }
  func.func @transform_3(%arg0: i32, %arg1: i32) -> (i32, i32) {
    %c0_i32 = arith.constant 0 : i32
    %c0_i32_0 = arith.constant 0 : i32
    return %c0_i32, %arg1 : i32, i32
  }
  func.func @transform_4(%arg0: i32, %arg1: i32) -> (i32, i32) {
    %c0_i32 = arith.constant 0 : i32
    %c0_i32_0 = arith.constant 0 : i32
    return %c0_i32, %arg1 : i32, i32
  }
  func.func @transform_5(%arg0: i32, %arg1: i32) -> (i32, i32) {
    %c0_i32 = arith.constant 0 : i32
    return %arg0, %arg1 : i32, i32
  }
}

</mosaic_0001>

<llo_original>
// kernel: chat_model_forward.11
$region0: #{chat_model_forward.11}
  #allocation0 [shape = 'u32[]', space=smem, size = 0x4, offset = 0x4, fixed_abs, tag = 'smem constant byte address 0x4 - core index']
  #allocation1 [shape = 'u32[72,128]{1,0:T(1,128)}', space=vmem, size = 0x9000, scoped, tag = 'internal scratch']
  %s0 = inlined_call_operand.vmem [shape: bf16[16,32], index: 0, kind: input, shape index: {}]
  %s1 = inlined_call_operand.vmem [shape: bf16[32,32], index: 1, kind: input, shape index: {}]
  %s2 = inlined_call_operand.vmem [shape: f32[1,32], index: 2, kind: input, shape index: {}]
  %s3 = inlined_call_operand.vmem [shape: bf16[16,32], index: 3, kind: input, shape index: {}]
  %s4 = inlined_call_operand.vmem [shape: bf16[16,32], index: 4, kind: output, shape index: {}]
  %s5 = sld [smem:[#allocation0]]
  $region26: #{chat_model_forward.11} parent=0
    _
  %s7 = ssub.s32 1, %s5
  %s8 = scalar_select 0, %s7, %s5
  // Predicated region
  $region2: #{chat_model_forward.11} parent=0 // pred_check
    _
  $region3: #{chat_model_forward.11} parent=0 // pred_check_branch
    %10 = sbr.rel (0) target = $region5
  $region4: #{chat_model_forward.11} parent=0 // pred_region
    _
  $region5: #{chat_model_forward.11} parent=0 // pred_fallthru
    _
  // Predicated region
  $region6: #{chat_model_forward.11} parent=0 // pred_check
    _
  $region7: #{chat_model_forward.11} parent=0 // pred_check_branch
    %12 = sbr.rel (0) target = $region9
  $region8: #{chat_model_forward.11} parent=0 // pred_region
    _
  $region9: #{chat_model_forward.11} parent=0 // pred_fallthru
    _
  // Predicated region
  $region10: #{chat_model_forward.11} parent=0 // pred_check
    _
  $region11: #{chat_model_forward.11} parent=0 // pred_check_branch
    %14 = sbr.rel (0) target = $region13
  $region12: #{chat_model_forward.11} parent=0 // pred_region
    _
  $region13: #{chat_model_forward.11} parent=0 // pred_fallthru
    _
  // Predicated region
  $region14: #{chat_model_forward.11} parent=0 // pred_check
    _
  $region15: #{chat_model_forward.11} parent=0 // pred_check_branch
    %16 = sbr.rel (0) target = $region17
  $region16: #{chat_model_forward.11} parent=0 // pred_region
    _
  $region17: #{chat_model_forward.11} parent=0 // pred_fallthru
    _
  %v18 = vld [vmem:[%s0] sm:$0xf]
  %v19 = vld [vmem:[%s0 + $0x4] sm:$0xf]
  %v20 = vld [vmem:[%s1] sm:$0xf]
  %v21 = vld [vmem:[%s1 + $0x4] sm:$0xf]
  %v22 = vld [vmem:[%s1 + $0x8] sm:$0xf]
  %v23 = vld [vmem:[%s1 + $0xc] sm:$0xf]
  %v26 = vunpack.c.l.b16 %v18
  %v27 = vunpack.c.l.b16 %v19
  %v28 = vpack.c.b16 %v27, %v26
  %v33 = vunpack.c.l.b16 %v20
  %v34 = vunpack.c.l.b16 %v21
  %v35 = vunpack.c.l.b16 %v22
  %v36 = vunpack.c.l.b16 %v23
  %v37 = vpack.c.b16 %v34, %v33
  %v38 = vpack.c.b16 %v36, %v35
  %vm41 = vcmask 261120
  %v43 = vsel %vm41, %v28, 0
  %45 = vmatpush.bf16.msra.mxu0 0
  %46 = vmatpush.bf16.msra.mxu0 0
  %47 = vmatpush.bf16.msra.mxu0 0
  %48 = vmatpush.bf16.msra.mxu0 0
  %49 = vmatpush.bf16.msra.mxu0 0
  %50 = vmatpush.bf16.msra.mxu0 0
  %51 = vmatpush.bf16.msra.mxu0 %v38
  %52 = vmatpush.bf16.msra.mxu0 %v37
  %53 = vmatmul.bf16.gmra.mxu0 %v43
  %v54 = vpop.f32.mrf.mxu0
  %v55 = vadd.f32 0.0, %v54
  %v56 = vpop.f32.mrf.mxu0
  %v57 = vadd.f32 0.0, %v56
  %58 = vdwg.mxu0
  %v59 = vld [vmem:[%s3] sm:$0xf]
  %v60 = vld [vmem:[%s3 + $0x4] sm:$0xf]
  %v61 = vunpack.c.l.bf16 %v59
  %v62 = vunpack.c.l.bf16 %v60
  %v63 = vadd.f32 %v61, %v55
  %v64 = vadd.f32 %v62, %v57
  %v65 = vld [vmem:[%s2] sm:$0x1]
  %v67 = vperm.slane %v65, 0
  %v69 = vadd.f32 %v63, %v67
  %v70 = vadd.f32 %v64, %v67
  %v71 = vpack.c.bf16 %v69, %v69
  %v72 = vpack.c.bf16 %v70, %v70
  %vm73 = vcmask 257024
  %74 = vst.msk [vmem:[%s4] sm:$0xf] %vm73, %v71
  %75 = vst.msk [vmem:[%s4 + $0x4] sm:$0xf] %vm73, %v72
  // Predicated region
  $region18: #{chat_model_forward.11} parent=0 // pred_check
    _
  $region19: #{chat_model_forward.11} parent=0 // pred_check_branch
    %77 = sbr.rel (0) target = $region21
  $region20: #{chat_model_forward.11} parent=0 // pred_region
    _
  $region21: #{chat_model_forward.11} parent=0 // pred_fallthru
    _
  // Predicated region
  $region22: #{chat_model_forward.11} parent=0 // pred_check
    _
  $region23: #{chat_model_forward.11} parent=0 // pred_check_branch
    %79 = sbr.rel (0) target = $region25
  $region24: #{chat_model_forward.11} parent=0 // pred_region
    _
  $region25: #{chat_model_forward.11} parent=0 // pred_fallthru
    _

// kernel: chat_model_forward.9
$region0: #{chat_model_forward.9}
  #allocation0 [shape = 'u32[]', space=smem, size = 0x4, offset = 0x4, fixed_abs, tag = 'smem constant byte address 0x4 - core index']
  #allocation1 [shape = 'u32[72,128]{1,0:T(1,128)}', space=vmem, size = 0x9000, scoped, tag = 'internal scratch']
  #allocation2 [shape = 'bf16[16,32]{1,0:T(8,128)(2,1)}', space=vmem, size = 0x1000, scoped, tag = 'scratch operand']
  %s0 = inlined_call_operand.vmem [shape: bf16[16,32], index: 0, kind: input, shape index: {}]
  %s1 = inlined_call_operand.vmem [shape: f32[1,32], index: 1, kind: input, shape index: {}]
  %s2 = inlined_call_operand.vmem [shape: f32[1,32], index: 2, kind: input, shape index: {}]
  %s3 = inlined_call_operand.vmem [shape: bf16[32,96], index: 3, kind: input, shape index: {}]
  %s4 = inlined_call_operand.vmem [shape: f32[1,96], index: 4, kind: input, shape index: {}]
  %s5 = inlined_call_operand.vmem [shape: bf16[16,96], index: 5, kind: output, shape index: {}]
  %s6 = sld [smem:[#allocation0]]
  $region34: #{chat_model_forward.9} parent=0
    _
  %s8 = ssub.s32 1, %s6
  %s9 = scalar_select 0, %s8, %s6
  // Predicated region
  $region2: #{chat_model_forward.9} parent=0 // pred_check
    _
  $region3: #{chat_model_forward.9} parent=0 // pred_check_branch
    %11 = sbr.rel (0) target = $region5
  $region4: #{chat_model_forward.9} parent=0 // pred_region
    _
  $region5: #{chat_model_forward.9} parent=0 // pred_fallthru
    _
  // Predicated region
  $region6: #{chat_model_forward.9} parent=0 // pred_check
    _
  $region7: #{chat_model_forward.9} parent=0 // pred_check_branch
    %13 = sbr.rel (0) target = $region9
  $region8: #{chat_model_forward.9} parent=0 // pred_region
    _
  $region9: #{chat_model_forward.9} parent=0 // pred_fallthru
    _
  // Predicated region
  $region10: #{chat_model_forward.9} parent=0 // pred_check
    _
  $region11: #{chat_model_forward.9} parent=0 // pred_check_branch
    %15 = sbr.rel (0) target = $region13
  $region12: #{chat_model_forward.9} parent=0 // pred_region
    _
  $region13: #{chat_model_forward.9} parent=0 // pred_fallthru
    _
  // Predicated region
  $region14: #{chat_model_forward.9} parent=0 // pred_check
    _
  $region15: #{chat_model_forward.9} parent=0 // pred_check_branch
    %17 = sbr.rel (0) target = $region17
  $region16: #{chat_model_forward.9} parent=0 // pred_region
    _
  $region17: #{chat_model_forward.9} parent=0 // pred_fallthru
    _
  // Predicated region
  $region18: #{chat_model_forward.9} parent=0 // pred_check
    _
  $region19: #{chat_model_forward.9} parent=0 // pred_check_branch
    %19 = sbr.rel (0) target = $region21
  $region20: #{chat_model_forward.9} parent=0 // pred_region
    _
  $region21: #{chat_model_forward.9} parent=0 // pred_fallthru
    _
  %p21 = scmp.eq.s32.totalorder 0, 0
  // Predicated region
  $region22: #{chat_model_forward.9} parent=0 // pred_check
    %p22 = pneg %p21
  $region23: #{chat_model_forward.9} parent=0 // pred_check_branch
    %24 = sbr.rel (%p22) target = $region25
  $region24: #{chat_model_forward.9} parent=0 // pred_region
    %v25 = vld [vmem:[%s0] sm:$0xf]
    %v26 = vld [vmem:[%s0 + $0x4] sm:$0xf]
    %v27 = vunpack.c.l.bf16 %v25
    %v28 = vunpack.c.l.bf16 %v26
    %vm29 = vcmask 261120
    %v30 = vsel %vm29, %v27, 0.0
    %31 = vadd.xlane.f32.xlu0 %v30
    %v32 = vpop.xlane.xlu0 %31
    %v33 = vsel %vm29, %v28, 0.0
    %34 = vadd.xlane.f32.xlu0 %v33
    %v35 = vpop.xlane.xlu0 %34
    %v36 = vrcp.pop 32.0
    %v37 = vmul.f32 32.0, %v36
    %v38 = vsub.f32 1.0, %v37
    %v39 = vmul.f32 %v36, %v38
    %v40 = vadd.f32 %v36, %v39
    %vm41 = vweird.f32 %v36
    %v42 = vsel %vm41, %v36, %v40
    %v43 = vmul.f32 %v32, %v42
    %v44 = vmul.f32 %v35, %v42
    %v45 = vsub.f32 %v27, %v43
    %v46 = vsub.f32 %v28, %v44
    %v47 = vmul.f32 %v45, %v45
    %v48 = vmul.f32 %v46, %v46
    %v49 = vsel %vm29, %v47, 0.0
    %50 = vadd.xlane.f32.xlu0 %v49
    %v51 = vpop.xlane.xlu0 %50
    %v52 = vsel %vm29, %v48, 0.0
    %53 = vadd.xlane.f32.xlu0 %v52
    %v54 = vpop.xlane.xlu0 %53
    %v55 = vmul.f32 %v51, %v42
    %v56 = vmul.f32 %v54, %v42
    %v57 = vadd.f32 %v55, 1e-05
    %v58 = vadd.f32 %v56, 1e-05
    %v59 = vrsqrt.pop %v57
    %v60 = vmul.f32 %v59, %v57
    %v61 = vmul.f32 %v60, %v59
    %v62 = vmul.f32 0.5, %v61
    %v63 = vsub.f32 1.5, %v62
    %v64 = vmul.f32 %v59, %v63
    %vm65 = vweird.f32 %v57
    %vm66 = vweird.f32 %v59
    %vm67 = vmor %vm65, %vm66
    %v68 = vsel %vm67, %v59, %v64
    %v69 = vrsqrt.pop %v58
    %v70 = vmul.f32 %v69, %v58
    %v71 = vmul.f32 %v70, %v69
    %v72 = vmul.f32 0.5, %v71
    %v73 = vsub.f32 1.5, %v72
    %v74 = vmul.f32 %v69, %v73
    %vm75 = vweird.f32 %v58
    %vm76 = vweird.f32 %v69
    %vm77 = vmor %vm75, %vm76
    %v78 = vsel %vm77, %v69, %v74
    %v79 = vmul.f32 %v45, %v68
    %v80 = vmul.f32 %v46, %v78
    %v81 = vld [vmem:[%s1] sm:$0x1]
    %v83 = vperm.slane %v81, 0
    %v85 = vmul.f32 %v79, %v83
    %v86 = vmul.f32 %v80, %v83
    %v87 = vld [vmem:[%s2] sm:$0x1]
    %v89 = vperm.slane %v87, 0
    %v91 = vadd.f32 %v85, %v89
    %v92 = vadd.f32 %v86, %v89
    %v93 = vpack.c.bf16 %v91, %v91
    %v94 = vpack.c.bf16 %v92, %v92
    %vm95 = vcmask 257024
    %96 = vst.msk [vmem:[#allocation2] sm:$0xf] %vm95, %v93
    %97 = vst.msk [vmem:[#allocation2 + $0x4] sm:$0xf] %vm95, %v94
  $region25: #{chat_model_forward.9} parent=0 // pred_fallthru
    _
  %v98 = vld [vmem:[#allocation2] sm:$0xf]
  %v99 = vld [vmem:[#allocation2 + $0x4] sm:$0xf]
  %v100 = vld [vmem:[%s3] sm:$0xf]
  %v101 = vld [vmem:[%s3 + $0x4] sm:$0xf]
  %v102 = vld [vmem:[%s3 + $0x8] sm:$0xf]
  %v103 = vld [vmem:[%s3 + $0xc] sm:$0xf]
  %v104 = vld [vmem:[%s4] sm:$0x1]
  %v106 = vperm.slane %v104, 0
  %v110 = vunpack.c.l.b16 %v98
  %v111 = vunpack.c.l.b16 %v99
  %v112 = vpack.c.b16 %v111, %v110
  %v117 = vunpack.c.l.b16 %v100
  %v118 = vunpack.c.l.b16 %v101
  %v119 = vunpack.c.l.b16 %v102
  %v120 = vunpack.c.l.b16 %v103
  %v121 = vpack.c.b16 %v118, %v117
  %v122 = vpack.c.b16 %v120, %v119
  %vm125 = vcmask 261120
  %v127 = vsel %vm125, %v112, 0
  %129 = vmatpush.bf16.msra.mxu0 0
  %130 = vmatpush.bf16.msra.mxu0 0
  %131 = vmatpush.bf16.msra.mxu0 0
  %132 = vmatpush.bf16.msra.mxu0 0
  %133 = vmatpush.bf16.msra.mxu0 0
  %134 = vmatpush.bf16.msra.mxu0 0
  %135 = vmatpush.bf16.msra.mxu0 %v122
  %136 = vmatpush.bf16.msra.mxu0 %v121
  %137 = vmatmul.bf16.gmra.mxu0 %v127
  %v138 = vpop.f32.mrf.mxu0
  %v139 = vadd.f32 %v106, %v138
  %v140 = vpop.f32.mrf.mxu0
  %v141 = vadd.f32 %v106, %v140
  %142 = vdwg.mxu0
  %v143 = vpack.c.bf16 %v139, %v139
  %v144 = vpack.c.bf16 %v141, %v141
  %vm145 = vcmask 781312
  %146 = vst.msk [vmem:[%s5] sm:$0xf] %vm145, %v143
  %147 = vst.msk [vmem:[%s5 + $0x4] sm:$0xf] %vm145, %v144
  // Predicated region
  $region26: #{chat_model_forward.9} parent=0 // pred_check
    _
  $region27: #{chat_model_forward.9} parent=0 // pred_check_branch
    %149 = sbr.rel (0) target = $region29
  $region28: #{chat_model_forward.9} parent=0 // pred_region
    _
  $region29: #{chat_model_forward.9} parent=0 // pred_fallthru
    _
  // Predicated region
  $region30: #{chat_model_forward.9} parent=0 // pred_check
    _
  $region31: #{chat_model_forward.9} parent=0 // pred_check_branch
    %151 = sbr.rel (0) target = $region33
  $region32: #{chat_model_forward.9} parent=0 // pred_region
    _
  $region33: #{chat_model_forward.9} parent=0 // pred_fallthru
    _

// kernel: chat_model_forward.10
$region0: #{chat_model_forward.10}
  #allocation0 [shape = 'u32[]', space=smem, size = 0x4, offset = 0x4, fixed_abs, tag = 'smem constant byte address 0x4 - core index']
  #allocation1 [shape = 'u32[72,128]{1,0:T(1,128)}', space=vmem, size = 0x9000, scoped, tag = 'internal scratch']
  #allocation2 [shape = 'f32[4,8,1]{2,1,0:T(8,128)}', space=vmem, size = 0x4000, scoped, tag = 'scratch operand']
  #allocation3 [shape = 'f32[4,8,1]{2,1,0:T(8,128)}', space=vmem, size = 0x4000, scoped, tag = 'scratch operand']
  #allocation4 [shape = 'f32[4,8,8]{2,1,0:T(8,128)}', space=vmem, size = 0x4000, scoped, tag = 'scratch operand']
  #allocation5 [shape = 's32[1]{0}', space=sflag, size = 0x4, scoped, tag = 'scoped memory for chat_model_forward.10']
  #allocation6 [shape = 's32[1]{0:T(128)S(6)}', space=smem, size = 0x200, scoped, tag = 'prefetched SMEM operand 0']
  #allocation7 [shape = 's32[1]{0:T(128)S(6)}', space=smem, size = 0x200, scoped, tag = 'prefetched SMEM operand 1']
  %s0 = inlined_call_operand.<no memory space> [shape: s32[1], index: 0, kind: input, shape index: {}, may-alias: {0,1}]
  %s1 = inlined_call_operand.<no memory space> [shape: s32[1], index: 1, kind: input, shape index: {}, may-alias: {0,1}]
  %s2 = inlined_call_operand.vmem [shape: bf16[2,4,8,8], index: 2, kind: input, shape index: {}]
  %s3 = inlined_call_operand.vmem [shape: bf16[2,4,8,8], index: 3, kind: input, shape index: {}]
  %s4 = inlined_call_operand.vmem [shape: bf16[2,4,8,8], index: 4, kind: input, shape index: {}]
  %s5 = inlined_call_operand.vmem [shape: bf16[2,4,8,8], index: 5, kind: output, shape index: {}]
  %s6 = sld [smem:[#allocation0]]
  $region53: #{chat_model_forward.10} parent=0
    _
  %s8 = ssub.s32 1, %s6
  %s9 = scalar_select 0, %s8, %s6
  %10 = sst [smem:[#allocation6]] %s0
  %11 = sst [smem:[#allocation7]] %s1
  loop: start=0, step=1, limit=4
  $region2: #{chat_model_forward.10} parent=0 // loop_pre_header
    _
  $region3: #{chat_model_forward.10} parent=0 // loop_header
    %s13 = sphi 0, %s17
    %p14 = scmp.ge.s32.totalorder %s13, 4
    %s20 = sphi 0, %s32
    %s21 = sphi 0, %s28
    %s22 = sphi 0, %s20
    %s23 = sphi 0, %s21
    %s24 = sphi 0, %s22
    %s25 = sphi 0, %s23
    %s39 = sphi 0, %s41
    %s42 = sphi 0, %s39
    %s43 = sphi 0, %s42
    %s59 = sphi 0, %s43
    %s69 = sphi 0, %s71
    %s72 = sphi 0, %s69
    %s73 = sphi 0, %s72
    %s89 = sphi 0, %s73
    %s99 = sphi 0, %s101
    %s102 = sphi 0, %s99
    %s103 = sphi 0, %s102
    %s119 = sphi 0, %s103
    %s129 = sphi 0, %s131
    %s132 = sphi 0, %s129
    %s133 = sphi 0, %s132
    %s149 = sphi 0, %s133
  $region4: #{chat_model_forward.10} parent=0 // loop_header_branch
    %16 = sbr.rel (%p14) target = $region8
  $region5: #{chat_model_forward.10} parent=0 // loop_body
    %s18 = ssub.s32 %s13, 1
    %s19 = ssub.s32 %s13, 2
    %s26 = sadd.s32 1, %s21
    %p27 = scmp.ge.s32.totalorder %s26, 1
    %s28 = scalar_select %p27, 0, %s26
    %s29 = sadd.s32 1, %s20
    %s30 = scalar_select %p27, %s29, %s20
    %p31 = scmp.ge.s32.totalorder %s30, 2
    %s32 = scalar_select %p31, 0, %s30
    %s33 = sld [smem:[#allocation6 + %s21]]
    %s34 = sld [smem:[#allocation6 + %s28]]
    %s35 = ssub.s32 %s20, %s32
    %s36 = ssub.s32 %s33, %s34
    %s37 = sor.u32 %s35, %s36
    %p38 = scmp.eq.s32.totalorder %s37, 0
    %s40 = sadd.s32 %s39, 1
    %s41 = scalar_select %p38, %s39, %s40
    %p44 = pneg %p38
    %p45 = scmp.eq.s32.totalorder %s13, 1
    %p46 = por %p44, %p45
    %p47 = scmp.ne.s32.totalorder %s39, %s42
    %p48 = scmp.eq.s32.totalorder %s13, 0
    %p49 = por %p47, %p48
    %p50 = scmp.ne.s32.totalorder %s39, %s42
    %p51 = scmp.eq.s32.totalorder %s18, 1
    %p52 = por %p50, %p51
    %p53 = scmp.ne.s32.totalorder %s42, %s43
    %p54 = scmp.eq.s32.totalorder %s18, 0
    %p55 = por %p53, %p54
    %p56 = scmp.ne.s32.totalorder %s42, %s43
    %p57 = scmp.eq.s32.totalorder %s19, 1
    %p58 = por %p56, %p57
    %p60 = scmp.ne.s32.totalorder %s43, %s59
    %p61 = scmp.eq.s32.totalorder %s19, 0
    %p62 = por %p60, %p61
    %s63 = sld [smem:[#allocation7 + %s21]]
    %s64 = sld [smem:[#allocation7 + %s28]]
    %s65 = ssub.s32 %s20, %s32
    %s66 = ssub.s32 %s63, %s64
    %s67 = sor.u32 %s65, %s66
    %p68 = scmp.eq.s32.totalorder %s67, 0
    %s70 = sadd.s32 %s69, 1
    %s71 = scalar_select %p68, %s69, %s70
    %p74 = pneg %p68
    %p75 = scmp.eq.s32.totalorder %s13, 1
    %p76 = por %p74, %p75
    %p77 = scmp.ne.s32.totalorder %s69, %s72
    %p78 = scmp.eq.s32.totalorder %s13, 0
    %p79 = por %p77, %p78
    %p80 = scmp.ne.s32.totalorder %s69, %s72
    %p81 = scmp.eq.s32.totalorder %s18, 1
    %p82 = por %p80, %p81
    %p83 = scmp.ne.s32.totalorder %s72, %s73
    %p84 = scmp.eq.s32.totalorder %s18, 0
    %p85 = por %p83, %p84
    %p86 = scmp.ne.s32.totalorder %s72, %s73
    %p87 = scmp.eq.s32.totalorder %s19, 1
    %p88 = por %p86, %p87
    %p90 = scmp.ne.s32.totalorder %s73, %s89
    %p91 = scmp.eq.s32.totalorder %s19, 0
    %p92 = por %p90, %p91
    %s93 = sld [smem:[#allocation7 + %s21]]
    %s94 = sld [smem:[#allocation7 + %s28]]
    %s95 = ssub.s32 %s20, %s32
    %s96 = ssub.s32 %s93, %s94
    %s97 = sor.u32 %s95, %s96
    %p98 = scmp.eq.s32.totalorder %s97, 0
    %s100 = sadd.s32 %s99, 1
    %s101 = scalar_select %p98, %s99, %s100
    %p104 = pneg %p98
    %p105 = scmp.eq.s32.totalorder %s13, 1
    %p106 = por %p104, %p105
    %p107 = scmp.ne.s32.totalorder %s99, %s102
    %p108 = scmp.eq.s32.totalorder %s13, 0
    %p109 = por %p107, %p108
    %p110 = scmp.ne.s32.totalorder %s99, %s102
    %p111 = scmp.eq.s32.totalorder %s18, 1
    %p112 = por %p110, %p111
    %p113 = scmp.ne.s32.totalorder %s102, %s103
    %p114 = scmp.eq.s32.totalorder %s18, 0
    %p115 = por %p113, %p114
    %p116 = scmp.ne.s32.totalorder %s102, %s103
    %p117 = scmp.eq.s32.totalorder %s19, 1
    %p118 = por %p116, %p117
    %p120 = scmp.ne.s32.totalorder %s103, %s119
    %p121 = scmp.eq.s32.totalorder %s19, 0
    %p122 = por %p120, %p121
    %s123 = sld [smem:[#allocation6 + %s21]]
    %s124 = sld [smem:[#allocation6 + %s28]]
    %s125 = ssub.s32 %s20, %s32
    %s126 = ssub.s32 %s123, %s124
    %s127 = sor.u32 %s125, %s126
    %p128 = scmp.eq.s32.totalorder %s127, 0
    %s130 = sadd.s32 %s129, 1
    %s131 = scalar_select %p128, %s129, %s130
    %p134 = pneg %p128
    %p135 = scmp.eq.s32.totalorder %s13, 1
    %p136 = por %p134, %p135
    %p137 = scmp.ne.s32.totalorder %s129, %s132
    %p138 = scmp.eq.s32.totalorder %s13, 0
    %p139 = por %p137, %p138
    %p140 = scmp.ne.s32.totalorder %s129, %s132
    %p141 = scmp.eq.s32.totalorder %s18, 1
    %p142 = por %p140, %p141
    %p143 = scmp.ne.s32.totalorder %s132, %s133
    %p144 = scmp.eq.s32.totalorder %s18, 0
    %p145 = por %p143, %p144
    %p146 = scmp.ne.s32.totalorder %s132, %s133
    %p147 = scmp.eq.s32.totalorder %s19, 1
    %p148 = por %p146, %p147
    %p150 = scmp.ne.s32.totalorder %s133, %s149
    %p151 = scmp.eq.s32.totalorder %s19, 0
    %p152 = por %p150, %p151
    %p153 = scmp.le.s32.totalorder 1, %s13
    %p154 = scmp.lt.s32.totalorder %s13, 3
    %p155 = pnand %p153, %p154
    %p156 = pneg %p155
    // Predicated region
    $region9: #{chat_model_forward.10} parent=5 // pred_check
      _
    $region10: #{chat_model_forward.10} parent=5 // pred_check_branch
      %158 = sbr.rel (%p155) target = $region12
    $region11: #{chat_model_forward.10} parent=5 // pred_region
      %s159 = ssub.s32 %s13, 1
    $region12: #{chat_model_forward.10} parent=5 // pred_fallthru
      _
    %p160 = scmp.lt.s32.totalorder %s13, 2
    // Predicated region
    $region13: #{chat_model_forward.10} parent=5 // pred_check
      %p161 = pneg %p160
    $region14: #{chat_model_forward.10} parent=5 // pred_check_branch
      %163 = sbr.rel (%p161) target = $region16
    $region15: #{chat_model_forward.10} parent=5 // pred_region
      // Predicated region
      $region17: #{chat_model_forward.10} parent=15 // pred_check
        %p164 = pneg %p49
      $region18: #{chat_model_forward.10} parent=15 // pred_check_branch
        %166 = sbr.rel (%p164) target = $region20
      $region19: #{chat_model_forward.10} parent=15 // pred_region
        %s167 = sld [smem:[#allocation6 + %s21]]
        %p168 = scmp.lt.s32.totalorder %s20, 1
        %s169 = scalar_select %p168, %s20, 1
        %p170 = scmp.lt.s32.totalorder %s167, 0
        %s171 = scalar_select %p170, %s167, 0
        %s172 = smul.addr %s169, 4
        %s173 = sadd.s32 %s171, %s172
        %s174 = smul.addr %s173, 4
        %s175 = scalar_lea.vmem %s2, %s174
        %s176 = sld [smem:[#allocation6 + %s21]]
      $region20: #{chat_model_forward.10} parent=15 // pred_fallthru
        _
      // Predicated region
      $region21: #{chat_model_forward.10} parent=15 // pred_check
        %p177 = pneg %p79
      $region22: #{chat_model_forward.10} parent=15 // pred_check_branch
        %179 = sbr.rel (%p177) target = $region24
      $region23: #{chat_model_forward.10} parent=15 // pred_region
        %s180 = sld [smem:[#allocation7 + %s21]]
        %p181 = scmp.lt.s32.totalorder %s20, 1
        %s182 = scalar_select %p181, %s20, 1
        %p183 = scmp.lt.s32.totalorder %s180, 0
        %s184 = scalar_select %p183, %s180, 0
        %s185 = smul.addr %s182, 4
        %s186 = sadd.s32 %s184, %s185
        %s187 = smul.addr %s186, 4
        %s188 = scalar_lea.vmem %s3, %s187
        %s189 = sld [smem:[#allocation7 + %s21]]
      $region24: #{chat_model_forward.10} parent=15 // pred_fallthru
        _
      // Predicated region
      $region25: #{chat_model_forward.10} parent=15 // pred_check
        %p190 = pneg %p109
      $region26: #{chat_model_forward.10} parent=15 // pred_check_branch
        %192 = sbr.rel (%p190) target = $region28
      $region27: #{chat_model_forward.10} parent=15 // pred_region
        %s193 = sld [smem:[#allocation7 + %s21]]
        %p194 = scmp.lt.s32.totalorder %s20, 1
        %s195 = scalar_select %p194, %s20, 1
        %p196 = scmp.lt.s32.totalorder %s193, 0
        %s197 = scalar_select %p196, %s193, 0
        %s198 = smul.addr %s195, 4
        %s199 = sadd.s32 %s197, %s198
        %s200 = smul.addr %s199, 4
        %s201 = scalar_lea.vmem %s4, %s200
        %s202 = sld [smem:[#allocation7 + %s21]]
      $region28: #{chat_model_forward.10} parent=15 // pred_fallthru
        _
    $region16: #{chat_model_forward.10} parent=5 // pred_fallthru
      _
    %p203 = scmp.le.s32.totalorder 1, %s13
    %p204 = scmp.lt.s32.totalorder %s13, 3
    %p205 = pnand %p203, %p204
    %p206 = pneg %p205
    // Predicated region
    $region29: #{chat_model_forward.10} parent=5 // pred_check
      _
    $region30: #{chat_model_forward.10} parent=5 // pred_check_branch
      %208 = sbr.rel (%p205) target = $region32
    $region31: #{chat_model_forward.10} parent=5 // pred_region
      %s209 = ssub.s32 %s13, 1
      %s210 = sld [smem:[#allocation6 + %s23]]
      %p211 = scmp.lt.s32.totalorder %s22, 1
      %s212 = scalar_select %p211, %s22, 1
      %p213 = scmp.lt.s32.totalorder %s210, 0
      %s214 = scalar_select %p213, %s210, 0
      %s215 = smul.addr %s212, 4
      %s216 = sadd.s32 %s214, %s215
      %s217 = smul.addr %s216, 4
      %s218 = scalar_lea.vmem %s2, %s217
      %p219 = pneg %p55
      %p220 = pneg %p52
      %s221 = sld [smem:[#allocation7 + %s23]]
      %p222 = scmp.lt.s32.totalorder %s22, 1
      %s223 = scalar_select %p222, %s22, 1
      %p224 = scmp.lt.s32.totalorder %s221, 0
      %s225 = scalar_select %p224, %s221, 0
      %s226 = smul.addr %s223, 4
      %s227 = sadd.s32 %s225, %s226
      %s228 = smul.addr %s227, 4
      %s229 = scalar_lea.vmem %s3, %s228
      %p230 = pneg %p85
      %p231 = pneg %p82
      %s232 = sld [smem:[#allocation7 + %s23]]
      %p233 = scmp.lt.s32.totalorder %s22, 1
      %s234 = scalar_select %p233, %s22, 1
      %p235 = scmp.lt.s32.totalorder %s232, 0
      %s236 = scalar_select %p235, %s232, 0
      %s237 = smul.addr %s234, 4
      %s238 = sadd.s32 %s236, %s237
      %s239 = smul.addr %s238, 4
      %s240 = scalar_lea.vmem %s4, %s239
      %p241 = pneg %p115
      %p242 = pneg %p112
      %p243 = pneg %p145
      %p244 = pneg %p142
      %s245 = sld [smem:[#allocation6 + %s23]]
      %p246 = scmp.lt.s32.totalorder %s22, 1
      %s247 = scalar_select %p246, %s22, 1
      %p248 = scmp.lt.s32.totalorder %s245, 0
      %s249 = scalar_select %p248, %s245, 0
      %s250 = smul.addr %s247, 4
      %s251 = sadd.s32 %s249, %s250
      %s252 = smul.addr %s251, 4
      %s253 = scalar_lea.vmem %s5, %s252
      %s254 = sld [smem:[#allocation6 + %s23]]
      %p255 = scmp.lt.s32.totalorder %s22, 1
      %s256 = scalar_select %p255, %s22, 1
      %p257 = scmp.lt.s32.totalorder %s254, 0
      %s258 = scalar_select %p257, %s254, 0
      %s259 = smul.addr %s256, 4
      %s260 = sadd.s32 %s258, %s259
      %s261 = smul.addr %s260, 4
      %s262 = scalar_lea.vmem %s2, %s261
      %s263 = sld [smem:[#allocation6 + %s23]]
      %s264 = sld [smem:[#allocation7 + %s23]]
      %p265 = scmp.lt.s32.totalorder %s22, 1
      %s266 = scalar_select %p265, %s22, 1
      %p267 = scmp.lt.s32.totalorder %s264, 0
      %s268 = scalar_select %p267, %s264, 0
      %s269 = smul.addr %s266, 4
      %s270 = sadd.s32 %s268, %s269
      %s271 = smul.addr %s270, 4
      %s272 = scalar_lea.vmem %s3, %s271
      %s273 = sld [smem:[#allocation7 + %s23]]
      %s274 = sld [smem:[#allocation7 + %s23]]
      %p275 = scmp.lt.s32.totalorder %s22, 1
      %s276 = scalar_select %p275, %s22, 1
      %p277 = scmp.lt.s32.totalorder %s274, 0
      %s278 = scalar_select %p277, %s274, 0
      %s279 = smul.addr %s276, 4
      %s280 = sadd.s32 %s278, %s279
      %s281 = smul.addr %s280, 4
      %s282 = scalar_lea.vmem %s4, %s281
      %s283 = sld [smem:[#allocation7 + %s23]]
      %s284 = sld [smem:[#allocation6 + %s23]]
      %p285 = scmp.lt.s32.totalorder %s22, 1
      %s286 = scalar_select %p285, %s22, 1
      %p287 = scmp.lt.s32.totalorder %s284, 0
      %s288 = scalar_select %p287, %s284, 0
      %s289 = smul.addr %s286, 4
      %s290 = sadd.s32 %s288, %s289
      %s291 = smul.addr %s290, 4
      %s292 = scalar_lea.vmem %s5, %s291
      %s293 = sld [smem:[#allocation6 + %s23]]
      %s295 = sld [smem:[#allocation6 + %s23]]
      %s296 = sld [smem:[#allocation7 + %s23]]
      %p297 = scmp.eq.s32.totalorder %s23, 0
      %s298 = ssub.s32 %s23, 1
      %p299 = scmp.gt.s32.totalorder %s298, 0
      %s300 = scalar_select %p299, %s298, 0
      %s301 = sld [smem:[#allocation6 + %s300]]
      %p302 = scmp.ne.s32.totalorder %s301, %s295
      %p303 = por %p297, %p302
      %s304 = sadd.s32 %s23, 1
      %p305 = scmp.lt.s32.totalorder %s304, 0
      %s306 = scalar_select %p305, %s304, 0
      %s307 = sld [smem:[#allocation6 + %s306]]
      %p308 = scmp.ne.s32.totalorder %s307, %s295
      %p309 = por %p297, %p308
      // Predicated region
      $region33: #{chat_model_forward.10} parent=31 // pred_check
        %p310 = pneg %p303
      $region34: #{chat_model_forward.10} parent=31 // pred_check_branch
        %312 = sbr.rel (%p310) target = $region36
      $region35: #{chat_model_forward.10} parent=31 // pred_region
        %vm313 = vcmask 7168
        %314 = vst.msk [vmem:[#allocation2] sm:$0xff] %vm313, -inf
        %315 = vst.msk [vmem:[#allocation2 + $0x8] sm:$0xff] %vm313, -inf
        %316 = vst.msk [vmem:[#allocation2 + $0x10] sm:$0xff] %vm313, -inf
        %317 = vst.msk [vmem:[#allocation2 + $0x18] sm:$0xff] %vm313, -inf
        %318 = vst.msk [vmem:[#allocation3] sm:$0xff] %vm313, 0.0
        %319 = vst.msk [vmem:[#allocation3 + $0x8] sm:$0xff] %vm313, 0.0
        %320 = vst.msk [vmem:[#allocation3 + $0x10] sm:$0xff] %vm313, 0.0
        %321 = vst.msk [vmem:[#allocation3 + $0x18] sm:$0xff] %vm313, 0.0
        %vm322 = vcmask 64512
        %323 = vst.msk [vmem:[#allocation4] sm:$0xff] %vm322, 0.0
        %324 = vst.msk [vmem:[#allocation4 + $0x8] sm:$0xff] %vm322, 0.0
        %325 = vst.msk [vmem:[#allocation4 + $0x10] sm:$0xff] %vm322, 0.0
        %326 = vst.msk [vmem:[#allocation4 + $0x18] sm:$0xff] %vm322, 0.0
      $region36: #{chat_model_forward.10} parent=31 // pred_fallthru
        _
      %v327 = vld [vmem:[%s262] sm:$0xf]
      %v328 = vld [vmem:[%s262 + $0x4] sm:$0xf]
      %v329 = vld [vmem:[%s262 + $0x8] sm:$0xf]
      %v330 = vld [vmem:[%s262 + $0xc] sm:$0xf]
      %v331 = vld [vmem:[%s272] sm:$0xf]
      %v332 = vld [vmem:[%s272 + $0x4] sm:$0xf]
      %v333 = vld [vmem:[%s272 + $0x8] sm:$0xf]
      %v334 = vld [vmem:[%s272 + $0xc] sm:$0xf]
      %v335 = vld [vmem:[%s282] sm:$0xf]
      %v336 = vld [vmem:[%s282 + $0x4] sm:$0xf]
      %v337 = vld [vmem:[%s282 + $0x8] sm:$0xf]
      %v338 = vld [vmem:[%s282 + $0xc] sm:$0xf]
      %vm339 = vcmask 64512
      %v341 = vsel %vm339, %v327, 0
      %v344 = vsel %vm339, %v331, 0
      %346 = vmatpush.bf16.xpose.msra.mxu0 0
      %347 = vmatpush.bf16.xpose.msra.mxu0 0
      %348 = vmatpush.bf16.xpose.msra.mxu0 0
      %349 = vmatpush.bf16.xpose.msra.mxu0 0
      %350 = vmatpush.bf16.xpose.msra.mxu0 0
      %351 = vmatpush.bf16.xpose.msra.mxu0 0
      %352 = vmatpush.bf16.xpose.msra.mxu0 0
      %353 = vmatpush.bf16.xpose.msra.mxu0 %v344
      %354 = vmatmul.bf16.gmra.mxu0 %v341
      %v355 = vpop.f32.mrf.mxu0
      %v356 = vadd.f32 0.0, %v355
      %v357 = vpop.f32.mrf.mxu0
      %358 = vdwg.mxu0
      %v360 = vsel %vm339, %v328, 0
      %v363 = vsel %vm339, %v332, 0
      %365 = vmatpush.bf16.xpose.msra.mxu0 0
      %366 = vmatpush.bf16.xpose.msra.mxu0 0
      %367 = vmatpush.bf16.xpose.msra.mxu0 0
      %368 = vmatpush.bf16.xpose.msra.mxu0 0
      %369 = vmatpush.bf16.xpose.msra.mxu0 0
      %370 = vmatpush.bf16.xpose.msra.mxu0 0
      %371 = vmatpush.bf16.xpose.msra.mxu0 0
      %372 = vmatpush.bf16.xpose.msra.mxu0 %v363
      %373 = vmatmul.bf16.gmra.mxu0 %v360
      %v374 = vpop.f32.mrf.mxu0
      %v375 = vadd.f32 0.0, %v374
      %v376 = vpop.f32.mrf.mxu0
      %377 = vdwg.mxu0
      %v379 = vsel %vm339, %v329, 0
      %v382 = vsel %vm339, %v333, 0
      %384 = vmatpush.bf16.xpose.msra.mxu0 0
      %385 = vmatpush.bf16.xpose.msra.mxu0 0
      %386 = vmatpush.bf16.xpose.msra.mxu0 0
      %387 = vmatpush.bf16.xpose.msra.mxu0 0
      %388 = vmatpush.bf16.xpose.msra.mxu0 0
      %389 = vmatpush.bf16.xpose.msra.mxu0 0
      %390 = vmatpush.bf16.xpose.msra.mxu0 0
      %391 = vmatpush.bf16.xpose.msra.mxu0 %v382
      %392 = vmatmul.bf16.gmra.mxu0 %v379
      %v393 = vpop.f32.mrf.mxu0
      %v394 = vadd.f32 0.0, %v393
      %v395 = vpop.f32.mrf.mxu0
      %396 = vdwg.mxu0
      %v398 = vsel %vm339, %v330, 0
      %v401 = vsel %vm339, %v334, 0
      %403 = vmatpush.bf16.xpose.msra.mxu0 0
      %404 = vmatpush.bf16.xpose.msra.mxu0 0
      %405 = vmatpush.bf16.xpose.msra.mxu0 0
      %406 = vmatpush.bf16.xpose.msra.mxu0 0
      %407 = vmatpush.bf16.xpose.msra.mxu0 0
      %408 = vmatpush.bf16.xpose.msra.mxu0 0
      %409 = vmatpush.bf16.xpose.msra.mxu0 0
      %410 = vmatpush.bf16.xpose.msra.mxu0 %v401
      %411 = vmatmul.bf16.gmra.mxu0 %v398
      %v412 = vpop.f32.mrf.mxu0
      %v413 = vadd.f32 0.0, %v412
      %v414 = vpop.f32.mrf.mxu0
      %415 = vdwg.mxu0
      %v416 = vmul.f32 %v356, 0.35355338
      %v417 = vmul.f32 %v375, 0.35355338
      %v418 = vmul.f32 %v394, 0.35355338
      %v419 = vmul.f32 %v413, 0.35355338
      %s420 = smul.u32 %s295, 8
      %s421 = smul.u32 %s296, 8
      %v422 = vlaneseq
      %v423 = vshrl.u32 %v422, 7
      %v424 = vstv %s420
      %v425 = vadd.s32 %v424, %v423
      %v426 = vlaneseq
      %v427 = vand.u32 %v426, 127
      %v428 = vstv %s421
      %v429 = vadd.s32 %v428, %v427
      %vm430 = vcmp.gt.s32.totalorder %v429, %v425
      %v431 = vsub.s32 %v425, %v429
      %vm432 = vcmp.ge.s32.totalorder %v431, 4
      %vm433 = vcmp.eq.s32.totalorder %v425, 2
      %vm434 = vcmp.eq.s32.totalorder %v425, 3
      %vm435 = vmor %vm433, %vm434
      %vm436 = vcmp.eq.s32.totalorder %v425, 4
      %vm437 = vmor %vm435, %vm436
      %vm438 = vcmp.eq.s32.totalorder %v425, 5
      %vm439 = vmor %vm437, %vm438
      %vm440 = vmxor %vm439, 1
      %vm441 = vmand %vm432, %vm440
      %vm442 = vmor %vm430, %vm441
      %v443 = vsel %vm442, 1, 0
      %vm444 = vcmp.eq.s32.totalorder %v443, 1
      %v445 = vsel %vm444, -1e+09, %v416
      %v446 = vsel %vm444, -1e+09, %v417
      %v447 = vsel %vm444, -1e+09, %v418
      %v448 = vsel %vm444, -1e+09, %v419
      %v449 = vld [vmem:[#allocation2] sm:$0xff]
      %v450 = vld [vmem:[#allocation2 + $0x8] sm:$0xff]
      %v451 = vld [vmem:[#allocation2 + $0x10] sm:$0xff]
      %v452 = vld [vmem:[#allocation2 + $0x18] sm:$0xff]
      %v453 = vsel %vm339, %v445, -inf
      %454 = vmax.xlane.f32.xlu0 %v453
      %v455 = vpop.xlane.xlu0 %454
      %v456 = vsel %vm339, %v446, -inf
      %457 = vmax.xlane.f32.xlu0 %v456
      %v458 = vpop.xlane.xlu0 %457
      %v459 = vsel %vm339, %v447, -inf
      %460 = vmax.xlane.f32.xlu0 %v459
      %v461 = vpop.xlane.xlu0 %460
      %v462 = vsel %vm339, %v448, -inf
      %463 = vmax.xlane.f32.xlu0 %v462
      %v464 = vpop.xlane.xlu0 %463
      %v465 = vmax.f32 %v449, %v455
      %v466 = vmax.f32 %v450, %v458
      %v467 = vmax.f32 %v451, %v461
      %v468 = vmax.f32 %v452, %v464
      %v469 = vsub.f32 %v449, %v465
      %v470 = vsub.f32 %v450, %v466
      %v471 = vsub.f32 %v451, %v467
      %v472 = vsub.f32 %v452, %v468
      %v473 = vmul.f32 %v469, 1.442695
      %v474 = vpow.pop %v473
      %v475 = vmul.f32 %v470, 1.442695
      %v476 = vpow.pop %v475
      %v477 = vmul.f32 %v471, 1.442695
      %v478 = vpow.pop %v477
      %v479 = vmul.f32 %v472, 1.442695
      %v480 = vpow.pop %v479
      %482 = vset.pattern.permute.xlu0 0
      %483 = vperm.xlu0 %482, %v465
      %v484 = vpop.permute.xlu0 %483
      %487 = vset.pattern.permute.xlu0 0
      %488 = vperm.xlu0 %487, %v466
      %v489 = vpop.permute.xlu0 %488
      %492 = vset.pattern.permute.xlu0 0
      %493 = vperm.xlu0 %492, %v467
      %v494 = vpop.permute.xlu0 %493
      %497 = vset.pattern.permute.xlu0 0
      %498 = vperm.xlu0 %497, %v468
      %v499 = vpop.permute.xlu0 %498
      %v501 = vsub.f32 %v445, %v484
      %v502 = vsub.f32 %v446, %v489
      %v503 = vsub.f32 %v447, %v494
      %v504 = vsub.f32 %v448, %v499
      %v505 = vmul.f32 %v501, 1.442695
      %v506 = vpow.pop %v505
      %v507 = vmul.f32 %v502, 1.442695
      %v508 = vpow.pop %v507
      %v509 = vmul.f32 %v503, 1.442695
      %v510 = vpow.pop %v509
      %v511 = vmul.f32 %v504, 1.442695
      %v512 = vpow.pop %v511
      %v513 = vsel %vm444, 0.0, %v506
      %v514 = vsel %vm444, 0.0, %v508
      %v515 = vsel %vm444, 0.0, %v510
      %v516 = vsel %vm444, 0.0, %v512
      %v517 = vld [vmem:[#allocation3] sm:$0xff]
      %v518 = vld [vmem:[#allocation3 + $0x8] sm:$0xff]
      %v519 = vld [vmem:[#allocation3 + $0x10] sm:$0xff]
      %v520 = vld [vmem:[#allocation3 + $0x18] sm:$0xff]
      %v521 = vmul.f32 %v474, %v517
      %v522 = vmul.f32 %v476, %v518
      %v523 = vmul.f32 %v478, %v519
      %v524 = vmul.f32 %v480, %v520
      %v525 = vsel %vm339, %v513, 0.0
      %526 = vadd.xlane.f32.xlu0 %v525
      %v527 = vpop.xlane.xlu0 %526
      %v528 = vsel %vm339, %v514, 0.0
      %529 = vadd.xlane.f32.xlu0 %v528
      %v530 = vpop.xlane.xlu0 %529
      %v531 = vsel %vm339, %v515, 0.0
      %532 = vadd.xlane.f32.xlu0 %v531
      %v533 = vpop.xlane.xlu0 %532
      %v534 = vsel %vm339, %v516, 0.0
      %535 = vadd.xlane.f32.xlu0 %v534
      %v536 = vpop.xlane.xlu0 %535
      %v537 = vadd.f32 %v521, %v527
      %v538 = vadd.f32 %v522, %v530
      %v539 = vadd.f32 %v523, %v533
      %v540 = vadd.f32 %v524, %v536
      %vm541 = vcmask 7168
      %542 = vst.msk [vmem:[#allocation3] sm:$0xff] %vm541, %v537
      %543 = vst.msk [vmem:[#allocation3 + $0x8] sm:$0xff] %vm541, %v538
      %544 = vst.msk [vmem:[#allocation3 + $0x10] sm:$0xff] %vm541, %v539
      %545 = vst.msk [vmem:[#allocation3 + $0x18] sm:$0xff] %vm541, %v540
      %v546 = vld [vmem:[#allocation4] sm:$0xff]
      %v547 = vld [vmem:[#allocation4 + $0x8] sm:$0xff]
      %v548 = vld [vmem:[#allocation4 + $0x10] sm:$0xff]
      %v549 = vld [vmem:[#allocation4 + $0x18] sm:$0xff]
      %551 = vset.pattern.permute.xlu0 0
      %552 = vperm.xlu0 %551, %v474
      %v553 = vpop.permute.xlu0 %552
      %556 = vset.pattern.permute.xlu0 0
      %557 = vperm.xlu0 %556, %v476
      %v558 = vpop.permute.xlu0 %557
      %561 = vset.pattern.permute.xlu0 0
      %562 = vperm.xlu0 %561, %v478
      %v563 = vpop.permute.xlu0 %562
      %566 = vset.pattern.permute.xlu0 0
      %567 = vperm.xlu0 %566, %v480
      %v568 = vpop.permute.xlu0 %567
      %v570 = vmul.f32 %v553, %v546
      %v571 = vmul.f32 %v558, %v547
      %v572 = vmul.f32 %v563, %v548
      %v573 = vmul.f32 %v568, %v549
      %v574 = vpack.c.bf16 %v513, %v513
      %v575 = vpack.c.bf16 %v514, %v514
      %v576 = vpack.c.bf16 %v515, %v515
      %v577 = vpack.c.bf16 %v516, %v516
      %v579 = vsel %vm339, %v574, 0
      %vm581 = vcmask 1043456
      %v583 = vsel %vm581, %v335, 0
      %585 = vmatpush.bf16.msra.mxu0 0
      %586 = vmatpush.bf16.msra.mxu0 0
      %587 = vmatpush.bf16.msra.mxu0 0
      %588 = vmatpush.bf16.msra.mxu0 0
      %589 = vmatpush.bf16.msra.mxu0 0
      %590 = vmatpush.bf16.msra.mxu0 0
      %591 = vmatpush.bf16.msra.mxu0 0
      %592 = vmatpush.bf16.msra.mxu0 %v583
      %593 = vmatmul.bf16.gmra.mxu0 %v579
      %v594 = vpop.f32.mrf.mxu0
      %v595 = vadd.f32 0.0, %v594
      %v596 = vpop.f32.mrf.mxu0
      %597 = vdwg.mxu0
      %v599 = vsel %vm339, %v575, 0
      %v602 = vsel %vm581, %v336, 0
      %604 = vmatpush.bf16.msra.mxu0 0
      %605 = vmatpush.bf16.msra.mxu0 0
      %606 = vmatpush.bf16.msra.mxu0 0
      %607 = vmatpush.bf16.msra.mxu0 0
      %608 = vmatpush.bf16.msra.mxu0 0
      %609 = vmatpush.bf16.msra.mxu0 0
      %610 = vmatpush.bf16.msra.mxu0 0
      %611 = vmatpush.bf16.msra.mxu0 %v602
      %612 = vmatmul.bf16.gmra.mxu0 %v599
      %v613 = vpop.f32.mrf.mxu0
      %v614 = vadd.f32 0.0, %v613
      %v615 = vpop.f32.mrf.mxu0
      %616 = vdwg.mxu0
      %v618 = vsel %vm339, %v576, 0
      %v621 = vsel %vm581, %v337, 0
      %623 = vmatpush.bf16.msra.mxu0 0
      %624 = vmatpush.bf16.msra.mxu0 0
      %625 = vmatpush.bf16.msra.mxu0 0
      %626 = vmatpush.bf16.msra.mxu0 0
      %627 = vmatpush.bf16.msra.mxu0 0
      %628 = vmatpush.bf16.msra.mxu0 0
      %629 = vmatpush.bf16.msra.mxu0 0
      %630 = vmatpush.bf16.msra.mxu0 %v621
      %631 = vmatmul.bf16.gmra.mxu0 %v618
      %v632 = vpop.f32.mrf.mxu0
      %v633 = vadd.f32 0.0, %v632
      %v634 = vpop.f32.mrf.mxu0
      %635 = vdwg.mxu0
      %v637 = vsel %vm339, %v577, 0
      %v640 = vsel %vm581, %v338, 0
      %642 = vmatpush.bf16.msra.mxu0 0
      %643 = vmatpush.bf16.msra.mxu0 0
      %644 = vmatpush.bf16.msra.mxu0 0
      %645 = vmatpush.bf16.msra.mxu0 0
      %646 = vmatpush.bf16.msra.mxu0 0
      %647 = vmatpush.bf16.msra.mxu0 0
      %648 = vmatpush.bf16.msra.mxu0 0
      %649 = vmatpush.bf16.msra.mxu0 %v640
      %650 = vmatmul.bf16.gmra.mxu0 %v637
      %v651 = vpop.f32.mrf.mxu0
      %v652 = vadd.f32 0.0, %v651
      %v653 = vpop.f32.mrf.mxu0
      %654 = vdwg.mxu0
      %v655 = vadd.f32 %v570, %v595
      %v656 = vadd.f32 %v571, %v614
      %v657 = vadd.f32 %v572, %v633
      %v658 = vadd.f32 %v573, %v652
      %659 = vst.msk [vmem:[#allocation4] sm:$0xff] %vm339, %v655
      %660 = vst.msk [vmem:[#allocation4 + $0x8] sm:$0xff] %vm339, %v656
      %661 = vst.msk [vmem:[#allocation4 + $0x10] sm:$0xff] %vm339, %v657
      %662 = vst.msk [vmem:[#allocation4 + $0x18] sm:$0xff] %vm339, %v658
      %663 = vst.msk [vmem:[#allocation2] sm:$0xff] %vm541, %v465
      %664 = vst.msk [vmem:[#allocation2 + $0x8] sm:$0xff] %vm541, %v466
      %665 = vst.msk [vmem:[#allocation2 + $0x10] sm:$0xff] %vm541, %v467
      %666 = vst.msk [vmem:[#allocation2 + $0x18] sm:$0xff] %vm541, %v468
      // Predicated region
      $region37: #{chat_model_forward.10} parent=31 // pred_check
        %p667 = pneg %p309
      $region38: #{chat_model_forward.10} parent=31 // pred_check_branch
        %669 = sbr.rel (%p667) target = $region40
      $region39: #{chat_model_forward.10} parent=31 // pred_region
        %v670 = vld [vmem:[#allocation4] sm:$0xff]
        %v671 = vld [vmem:[#allocation4 + $0x8] sm:$0xff]
        %v672 = vld [vmem:[#allocation4 + $0x10] sm:$0xff]
        %v673 = vld [vmem:[#allocation4 + $0x18] sm:$0xff]
        %v674 = vld [vmem:[#allocation3] sm:$0xff]
        %v675 = vld [vmem:[#allocation3 + $0x8] sm:$0xff]
        %v676 = vld [vmem:[#allocation3 + $0x10] sm:$0xff]
        %v677 = vld [vmem:[#allocation3 + $0x18] sm:$0xff]
        %v678 = vrcp.pop %v674
        %v679 = vrcp.pop %v675
        %v680 = vrcp.pop %v676
        %v681 = vrcp.pop %v677
        %683 = vset.pattern.permute.xlu0 0
        %684 = vperm.xlu0 %683, %v678
        %v685 = vpop.permute.xlu0 %684
        %688 = vset.pattern.permute.xlu0 0
        %689 = vperm.xlu0 %688, %v679
        %v690 = vpop.permute.xlu0 %689
        %693 = vset.pattern.permute.xlu0 0
        %694 = vperm.xlu0 %693, %v680
        %v695 = vpop.permute.xlu0 %694
        %698 = vset.pattern.permute.xlu0 0
        %699 = vperm.xlu0 %698, %v681
        %v700 = vpop.permute.xlu0 %699
        %v702 = vmul.f32 %v670, %v685
        %v703 = vmul.f32 %v671, %v690
        %v704 = vmul.f32 %v672, %v695
        %v705 = vmul.f32 %v673, %v700
        %v706 = vpack.c.bf16 %v702, %v702
        %v707 = vpack.c.bf16 %v703, %v703
        %v708 = vpack.c.bf16 %v704, %v704
        %v709 = vpack.c.bf16 %v705, %v705
        %vm710 = vcmask 60416
        %711 = vst.msk [vmem:[%s292] sm:$0xf] %vm710, %v706
        %712 = vst.msk [vmem:[%s292 + $0x4] sm:$0xf] %vm710, %v707
        %713 = vst.msk [vmem:[%s292 + $0x8] sm:$0xf] %vm710, %v708
        %714 = vst.msk [vmem:[%s292 + $0xc] sm:$0xf] %vm710, %v709
      $region40: #{chat_model_forward.10} parent=31 // pred_fallthru
        _
      %s715 = sld [smem:[#allocation6 + %s23]]
      %p716 = scmp.lt.s32.totalorder %s22, 1
      %s717 = scalar_select %p716, %s22, 1
      %p718 = scmp.lt.s32.totalorder %s715, 0
      %s719 = scalar_select %p718, %s715, 0
      %s720 = smul.addr %s717, 4
      %s721 = sadd.s32 %s719, %s720
      %s722 = smul.addr %s721, 4
      %s723 = scalar_lea.vmem %s5, %s722
      // Predicated region
      $region41: #{chat_model_forward.10} parent=31 // pred_check
        %p724 = pneg %p142
      $region42: #{chat_model_forward.10} parent=31 // pred_check_branch
        %726 = sbr.rel (%p724) target = $region44
      $region43: #{chat_model_forward.10} parent=31 // pred_region
        %s727 = sld [smem:[#allocation6 + %s23]]
      $region44: #{chat_model_forward.10} parent=31 // pred_fallthru
        _
    $region32: #{chat_model_forward.10} parent=5 // pred_fallthru
      _
    %p728 = scmp.le.s32.totalorder 2, %s13
    // Predicated region
    $region45: #{chat_model_forward.10} parent=5 // pred_check
      %p729 = pneg %p728
    $region46: #{chat_model_forward.10} parent=5 // pred_check_branch
      %731 = sbr.rel (%p729) target = $region48
    $region47: #{chat_model_forward.10} parent=5 // pred_region
      %s732 = ssub.s32 %s13, 2
      // Predicated region
      $region49: #{chat_model_forward.10} parent=47 // pred_check
        %p733 = pneg %p148
      $region50: #{chat_model_forward.10} parent=47 // pred_check_branch
        %735 = sbr.rel (%p733) target = $region52
      $region51: #{chat_model_forward.10} parent=47 // pred_region
        %s736 = sld [smem:[#allocation6 + %s25]]
        %p737 = scmp.lt.s32.totalorder %s24, 1
        %s738 = scalar_select %p737, %s24, 1
        %p739 = scmp.lt.s32.totalorder %s736, 0
        %s740 = scalar_select %p739, %s736, 0
        %s741 = smul.addr %s738, 4
        %s742 = sadd.s32 %s740, %s741
        %s743 = smul.addr %s742, 4
        %s744 = scalar_lea.vmem %s5, %s743
      $region52: #{chat_model_forward.10} parent=47 // pred_fallthru
        _
    $region48: #{chat_model_forward.10} parent=5 // pred_fallthru
      _
  $region6: #{chat_model_forward.10} parent=0 // loop_footer
    %s17 = sadd.s32 1, %s13
  $region7: #{chat_model_forward.10} parent=0 // loop_footer_branch
    %12 = sbr.rel target = $region3
  $region8: #{chat_model_forward.10} parent=0 // loop_exit
    _

// kernel: chat_model_forward.17
$region0: #{chat_model_forward.17}
  #allocation0 [shape = 'u32[]', space=smem, size = 0x4, offset = 0x4, fixed_abs, tag = 'smem constant byte address 0x4 - core index']
  #allocation1 [shape = 'u32[72,128]{1,0:T(1,128)}', space=vmem, size = 0x9000, scoped, tag = 'internal scratch']
  #allocation2 [shape = 'bf16[16,32]{1,0:T(8,128)(2,1)}', space=vmem, size = 0x1000, scoped, tag = 'scratch operand']
  %s0 = inlined_call_operand.vmem [shape: bf16[16,32], index: 0, kind: input, shape index: {}]
  %s1 = inlined_call_operand.vmem [shape: f32[1,32], index: 1, kind: input, shape index: {}]
  %s2 = inlined_call_operand.vmem [shape: f32[1,32], index: 2, kind: input, shape index: {}]
  %s3 = inlined_call_operand.vmem [shape: bf16[32,64], index: 3, kind: input, shape index: {}]
  %s4 = inlined_call_operand.vmem [shape: f32[1,64], index: 4, kind: input, shape index: {}]
  %s5 = inlined_call_operand.hbm [shape: f32[16,64], index: 5, kind: output, shape index: {}]
  %s6 = sld [smem:[#allocation0]]
  $region34: #{chat_model_forward.17} parent=0
    _
  %s8 = ssub.s32 1, %s6
  %s9 = scalar_select 0, %s8, %s6
  $region1: #{chat_model_forward.17} parent=0
    #allocation3 [shape = 'u8[8192]{0}', space=vmem, size = 0x2000, scoped, tag = 'output window, operand 0, single buffered']
    #allocation4 [shape = 's32[1]{0}', space=sflag, size = 0x4, scoped, tag = 'scoped memory for chat_model_forward.17']
    %10 = vsyncpa [#allocation4], 0
    // Predicated region
    $region2: #{chat_model_forward.17} parent=1 // pred_check
      _
    $region3: #{chat_model_forward.17} parent=1 // pred_check_branch
      %12 = sbr.rel (0) target = $region5
    $region4: #{chat_model_forward.17} parent=1 // pred_region
      _
    $region5: #{chat_model_forward.17} parent=1 // pred_fallthru
      _
    // Predicated region
    $region6: #{chat_model_forward.17} parent=1 // pred_check
      _
    $region7: #{chat_model_forward.17} parent=1 // pred_check_branch
      %14 = sbr.rel (0) target = $region9
    $region8: #{chat_model_forward.17} parent=1 // pred_region
      _
    $region9: #{chat_model_forward.17} parent=1 // pred_fallthru
      _
    // Predicated region
    $region10: #{chat_model_forward.17} parent=1 // pred_check
      _
    $region11: #{chat_model_forward.17} parent=1 // pred_check_branch
      %16 = sbr.rel (0) target = $region13
    $region12: #{chat_model_forward.17} parent=1 // pred_region
      _
    $region13: #{chat_model_forward.17} parent=1 // pred_fallthru
      _
    // Predicated region
    $region14: #{chat_model_forward.17} parent=1 // pred_check
      _
    $region15: #{chat_model_forward.17} parent=1 // pred_check_branch
      %18 = sbr.rel (0) target = $region17
    $region16: #{chat_model_forward.17} parent=1 // pred_region
      _
    $region17: #{chat_model_forward.17} parent=1 // pred_fallthru
      _
    // Predicated region
    $region18: #{chat_model_forward.17} parent=1 // pred_check
      _
    $region19: #{chat_model_forward.17} parent=1 // pred_check_branch
      %20 = sbr.rel (0) target = $region21
    $region20: #{chat_model_forward.17} parent=1 // pred_region
      _
    $region21: #{chat_model_forward.17} parent=1 // pred_fallthru
      _
    %p22 = scmp.eq.s32.totalorder 0, 0
    // Predicated region
    $region22: #{chat_model_forward.17} parent=1 // pred_check
      %p23 = pneg %p22
    $region23: #{chat_model_forward.17} parent=1 // pred_check_branch
      %25 = sbr.rel (%p23) target = $region25
    $region24: #{chat_model_forward.17} parent=1 // pred_region
      %v26 = vld [vmem:[%s0] sm:$0xf]
      %v27 = vld [vmem:[%s0 + $0x4] sm:$0xf]
      %v28 = vunpack.c.l.bf16 %v26
      %v29 = vunpack.c.l.bf16 %v27
      %vm30 = vcmask 261120
      %v31 = vsel %vm30, %v28, 0.0
      %32 = vadd.xlane.f32.xlu0 %v31
      %v33 = vpop.xlane.xlu0 %32
      %v34 = vsel %vm30, %v29, 0.0
      %35 = vadd.xlane.f32.xlu0 %v34
      %v36 = vpop.xlane.xlu0 %35
      %v37 = vrcp.pop 32.0
      %v38 = vmul.f32 32.0, %v37
      %v39 = vsub.f32 1.0, %v38
      %v40 = vmul.f32 %v37, %v39
      %v41 = vadd.f32 %v37, %v40
      %vm42 = vweird.f32 %v37
      %v43 = vsel %vm42, %v37, %v41
      %v44 = vmul.f32 %v33, %v43
      %v45 = vmul.f32 %v36, %v43
      %v46 = vsub.f32 %v28, %v44
      %v47 = vsub.f32 %v29, %v45
      %v48 = vmul.f32 %v46, %v46
      %v49 = vmul.f32 %v47, %v47
      %v50 = vsel %vm30, %v48, 0.0
      %51 = vadd.xlane.f32.xlu0 %v50
      %v52 = vpop.xlane.xlu0 %51
      %v53 = vsel %vm30, %v49, 0.0
      %54 = vadd.xlane.f32.xlu0 %v53
      %v55 = vpop.xlane.xlu0 %54
      %v56 = vmul.f32 %v52, %v43
      %v57 = vmul.f32 %v55, %v43
      %v58 = vadd.f32 %v56, 1e-05
      %v59 = vadd.f32 %v57, 1e-05
      %v60 = vrsqrt.pop %v58
      %v61 = vmul.f32 %v60, %v58
      %v62 = vmul.f32 %v61, %v60
      %v63 = vmul.f32 0.5, %v62
      %v64 = vsub.f32 1.5, %v63
      %v65 = vmul.f32 %v60, %v64
      %vm66 = vweird.f32 %v58
      %vm67 = vweird.f32 %v60
      %vm68 = vmor %vm66, %vm67
      %v69 = vsel %vm68, %v60, %v65
      %v70 = vrsqrt.pop %v59
      %v71 = vmul.f32 %v70, %v59
      %v72 = vmul.f32 %v71, %v70
      %v73 = vmul.f32 0.5, %v72
      %v74 = vsub.f32 1.5, %v73
      %v75 = vmul.f32 %v70, %v74
      %vm76 = vweird.f32 %v59
      %vm77 = vweird.f32 %v70
      %vm78 = vmor %vm76, %vm77
      %v79 = vsel %vm78, %v70, %v75
      %v80 = vmul.f32 %v46, %v69
      %v81 = vmul.f32 %v47, %v79
      %v82 = vld [vmem:[%s1] sm:$0x1]
      %v84 = vperm.slane %v82, 0
      %v86 = vmul.f32 %v80, %v84
      %v87 = vmul.f32 %v81, %v84
      %v88 = vld [vmem:[%s2] sm:$0x1]
      %v90 = vperm.slane %v88, 0
      %v92 = vadd.f32 %v86, %v90
      %v93 = vadd.f32 %v87, %v90
      %v94 = vpack.c.bf16 %v92, %v92
      %v95 = vpack.c.bf16 %v93, %v93
      %vm96 = vcmask 257024
      %97 = vst.msk [vmem:[#allocation2] sm:$0xf] %vm96, %v94
      %98 = vst.msk [vmem:[#allocation2 + $0x4] sm:$0xf] %vm96, %v95
    $region25: #{chat_model_forward.17} parent=1 // pred_fallthru
      _
    %v99 = vld [vmem:[#allocation2] sm:$0xf]
    %v100 = vld [vmem:[#allocation2 + $0x4] sm:$0xf]
    %v101 = vld [vmem:[%s3] sm:$0xf]
    %v102 = vld [vmem:[%s3 + $0x4] sm:$0xf]
    %v103 = vld [vmem:[%s3 + $0x8] sm:$0xf]
    %v104 = vld [vmem:[%s3 + $0xc] sm:$0xf]
    %v105 = vld [vmem:[%s4] sm:$0x1]
    %v107 = vperm.slane %v105, 0
    %v111 = vunpack.c.l.b16 %v99
    %v112 = vunpack.c.l.b16 %v100
    %v113 = vpack.c.b16 %v112, %v111
    %v118 = vunpack.c.l.b16 %v101
    %v119 = vunpack.c.l.b16 %v102
    %v120 = vunpack.c.l.b16 %v103
    %v121 = vunpack.c.l.b16 %v104
    %v122 = vpack.c.b16 %v119, %v118
    %v123 = vpack.c.b16 %v121, %v120
    %vm126 = vcmask 261120
    %v128 = vsel %vm126, %v113, 0
    %130 = vmatpush.bf16.msra.mxu0 0
    %131 = vmatpush.bf16.msra.mxu0 0
    %132 = vmatpush.bf16.msra.mxu0 0
    %133 = vmatpush.bf16.msra.mxu0 0
    %134 = vmatpush.bf16.msra.mxu0 0
    %135 = vmatpush.bf16.msra.mxu0 0
    %136 = vmatpush.bf16.msra.mxu0 %v123
    %137 = vmatpush.bf16.msra.mxu0 %v122
    %138 = vmatmul.bf16.gmra.mxu0 %v128
    %v139 = vpop.f32.mrf.mxu0
    %v140 = vadd.f32 %v107, %v139
    %v141 = vpop.f32.mrf.mxu0
    %v142 = vadd.f32 %v107, %v141
    %143 = vdwg.mxu0
    %vm144 = vcmask 523264
    %145 = vst.msk [vmem:[#allocation3] sm:$0xff] %vm144, %v140
    %146 = vst.msk [vmem:[#allocation3 + $0x8] sm:$0xff] %vm144, %v142
    // Predicated region
    $region26: #{chat_model_forward.17} parent=1 // pred_check
      _
    $region27: #{chat_model_forward.17} parent=1 // pred_check_branch
      %148 = sbr.rel (0) target = $region29
    $region28: #{chat_model_forward.17} parent=1 // pred_region
      %150 = vsyncadd [#allocation4], 0
      %s151 = sshll.u32 [#allocation3], 4
      %s152 = int_to_ptr.vmem [resolvable:$true] %s151
      %s153 = sshll.u32 %s5, 4
      %s154 = int_to_ptr.hbm [resolvable:$true] %s153
      %159 = dma.vmem_to_hbm [thread:$0]  %s152, 256, %s154, [#allocation4], 128, 128, 8
    $region29: #{chat_model_forward.17} parent=1 // pred_fallthru
      _
    // Predicated region
    $region30: #{chat_model_forward.17} parent=1 // pred_check
      _
    $region31: #{chat_model_forward.17} parent=1 // pred_check_branch
      %161 = sbr.rel (0) target = $region33
    $region32: #{chat_model_forward.17} parent=1 // pred_region
      %163 = dma.done [#allocation4], 256
    $region33: #{chat_model_forward.17} parent=1 // pred_fallthru
      _
    %164 = vsyncpa [#allocation4], 1

// kernel: chat_model_forward.12
$region0: #{chat_model_forward.12}
  #allocation0 [shape = 'u32[]', space=smem, size = 0x4, offset = 0x4, fixed_abs, tag = 'smem constant byte address 0x4 - core index']
  #allocation1 [shape = 'u32[72,128]{1,0:T(1,128)}', space=vmem, size = 0x9000, scoped, tag = 'internal scratch']
  #allocation2 [shape = 'bf16[16,32]{1,0:T(8,128)(2,1)}', space=vmem, size = 0x1000, scoped, tag = 'scratch operand']
  #allocation3 [shape = 'f32[16,32]{1,0:T(8,128)}', space=vmem, size = 0x2000, scoped, tag = 'scratch operand']
  #allocation4 [shape = 's32[1]{0}', space=sflag, size = 0x4, scoped, tag = 'scoped memory for chat_model_forward.12']
  #allocation5 [shape = 'u8[512]{0}', space=smem, size = 0x200, scoped, tag = 'prefetched SMEM operand 0']
  %s0 = inlined_call_operand.vmem [shape: s32[1,2], index: 0, kind: input, shape index: {}]
  %s1 = inlined_call_operand.vmem [shape: bf16[16,32], index: 1, kind: input, shape index: {}]
  %s2 = inlined_call_operand.vmem [shape: f32[1,32], index: 2, kind: input, shape index: {}]
  %s3 = inlined_call_operand.vmem [shape: f32[1,32], index: 3, kind: input, shape index: {}]
  %s4 = inlined_call_operand.vmem [shape: s32[16,1], index: 4, kind: input, shape index: {}]
  %s5 = inlined_call_operand.vmem [shape: bf16[2,32,48], index: 5, kind: input, shape index: {}]
  %s6 = inlined_call_operand.vmem [shape: f32[2,1,48], index: 6, kind: input, shape index: {}]
  %s7 = inlined_call_operand.vmem [shape: bf16[2,32,48], index: 7, kind: input, shape index: {}]
  %s8 = inlined_call_operand.vmem [shape: f32[2,1,48], index: 8, kind: input, shape index: {}]
  %s9 = inlined_call_operand.vmem [shape: bf16[2,48,32], index: 9, kind: input, shape index: {}]
  %s10 = inlined_call_operand.vmem [shape: f32[2,1,32], index: 10, kind: input, shape index: {}]
  %s11 = inlined_call_operand.vmem [shape: bf16[16,32], index: 11, kind: output, shape index: {}]
  %s12 = sld [smem:[#allocation0]]
  $region89: #{chat_model_forward.12} parent=0
    _
  %s14 = ssub.s32 1, %s12
  %s15 = scalar_select 0, %s14, %s12
  %s17 = sshll.u32 %s0, 4
  %s18 = int_to_ptr.vmem [resolvable:$true] %s17
  %20 = dma.vmem_to_smem %s18, 16, [#allocation5], [#allocation4]
  %22 = dma.done [#allocation4], 16
  %23 = sfence
  loop: start=0, step=1, limit=4
  $region2: #{chat_model_forward.12} parent=0 // loop_pre_header
    _
  $region3: #{chat_model_forward.12} parent=0 // loop_header
    %s25 = sphi 0, %s29
    %p26 = scmp.ge.s32.totalorder %s25, 4
    %s32 = sphi 0, %s51
    %s33 = sphi 0, %s47
    %s34 = sphi 0, %s43
    %s35 = sphi 0, %s32
    %s36 = sphi 0, %s33
    %s37 = sphi 0, %s34
    %s38 = sphi 0, %s35
    %s39 = sphi 0, %s36
    %s40 = sphi 0, %s37
    %s54 = sphi 0, %s56
    %s57 = sphi 0, %s54
    %s58 = sphi 0, %s57
    %s74 = sphi 0, %s58
    %s78 = sphi 0, %s78
    %s80 = sphi 0, %s78
    %s81 = sphi 0, %s80
    %s95 = sphi 0, %s81
    %s99 = sphi 0, %s99
    %s101 = sphi 0, %s99
    %s102 = sphi 0, %s101
    %s116 = sphi 0, %s102
    %s122 = sphi 0, %s124
    %s125 = sphi 0, %s122
    %s126 = sphi 0, %s125
    %s142 = sphi 0, %s126
    %s150 = sphi 0, %s152
    %s153 = sphi 0, %s150
    %s154 = sphi 0, %s153
    %s170 = sphi 0, %s154
    %s178 = sphi 0, %s180
    %s181 = sphi 0, %s178
    %s182 = sphi 0, %s181
    %s198 = sphi 0, %s182
    %s206 = sphi 0, %s208
    %s209 = sphi 0, %s206
    %s210 = sphi 0, %s209
    %s226 = sphi 0, %s210
    %s234 = sphi 0, %s236
    %s237 = sphi 0, %s234
    %s238 = sphi 0, %s237
    %s254 = sphi 0, %s238
    %s262 = sphi 0, %s264
    %s265 = sphi 0, %s262
    %s266 = sphi 0, %s265
    %s282 = sphi 0, %s266
    %s288 = sphi 0, %s290
    %s291 = sphi 0, %s288
    %s292 = sphi 0, %s291
    %s308 = sphi 0, %s292
    %s314 = sphi 0, %s316
    %s317 = sphi 0, %s314
    %s318 = sphi 0, %s317
    %s334 = sphi 0, %s318
  $region4: #{chat_model_forward.12} parent=0 // loop_header_branch
    %28 = sbr.rel (%p26) target = $region8
  $region5: #{chat_model_forward.12} parent=0 // loop_body
    %s30 = ssub.s32 %s25, 1
    %s31 = ssub.s32 %s25, 2
    %s41 = sadd.s32 1, %s34
    %p42 = scmp.ge.s32.totalorder %s41, 1
    %s43 = scalar_select %p42, 0, %s41
    %s44 = sadd.s32 1, %s33
    %s45 = scalar_select %p42, %s44, %s33
    %p46 = scmp.ge.s32.totalorder %s45, 2
    %s47 = scalar_select %p46, 0, %s45
    %s48 = sadd.s32 1, %s32
    %s49 = scalar_select %p46, %s48, %s32
    %p50 = scmp.ge.s32.totalorder %s49, 1
    %s51 = scalar_select %p50, 0, %s49
    %s52 = ssub.s32 %s32, %s51
    %p53 = scmp.eq.s32.totalorder %s52, 0
    %s55 = sadd.s32 %s54, 1
    %s56 = scalar_select %p53, %s54, %s55
    %p59 = pneg %p53
    %p60 = scmp.eq.s32.totalorder %s25, 1
    %p61 = por %p59, %p60
    %p62 = scmp.ne.s32.totalorder %s54, %s57
    %p63 = scmp.eq.s32.totalorder %s25, 0
    %p64 = por %p62, %p63
    %p65 = scmp.ne.s32.totalorder %s54, %s57
    %p66 = scmp.eq.s32.totalorder %s30, 1
    %p67 = por %p65, %p66
    %p68 = scmp.ne.s32.totalorder %s57, %s58
    %p69 = scmp.eq.s32.totalorder %s30, 0
    %p70 = por %p68, %p69
    %p71 = scmp.ne.s32.totalorder %s57, %s58
    %p72 = scmp.eq.s32.totalorder %s31, 1
    %p73 = por %p71, %p72
    %p75 = scmp.ne.s32.totalorder %s58, %s74
    %p76 = scmp.eq.s32.totalorder %s31, 0
    %p77 = por %p75, %p76
    %s79 = sadd.s32 %s78, 1
    %p82 = scmp.eq.s32.totalorder %s25, 1
    %p83 = scmp.ne.s32.totalorder %s78, %s80
    %p84 = scmp.eq.s32.totalorder %s25, 0
    %p85 = por %p83, %p84
    %p86 = scmp.ne.s32.totalorder %s78, %s80
    %p87 = scmp.eq.s32.totalorder %s30, 1
    %p88 = por %p86, %p87
    %p89 = scmp.ne.s32.totalorder %s80, %s81
    %p90 = scmp.eq.s32.totalorder %s30, 0
    %p91 = por %p89, %p90
    %p92 = scmp.ne.s32.totalorder %s80, %s81
    %p93 = scmp.eq.s32.totalorder %s31, 1
    %p94 = por %p92, %p93
    %p96 = scmp.ne.s32.totalorder %s81, %s95
    %p97 = scmp.eq.s32.totalorder %s31, 0
    %p98 = por %p96, %p97
    %s100 = sadd.s32 %s99, 1
    %p103 = scmp.eq.s32.totalorder %s25, 1
    %p104 = scmp.ne.s32.totalorder %s99, %s101
    %p105 = scmp.eq.s32.totalorder %s25, 0
    %p106 = por %p104, %p105
    %p107 = scmp.ne.s32.totalorder %s99, %s101
    %p108 = scmp.eq.s32.totalorder %s30, 1
    %p109 = por %p107, %p108
    %p110 = scmp.ne.s32.totalorder %s101, %s102
    %p111 = scmp.eq.s32.totalorder %s30, 0
    %p112 = por %p110, %p111
    %p113 = scmp.ne.s32.totalorder %s101, %s102
    %p114 = scmp.eq.s32.totalorder %s31, 1
    %p115 = por %p113, %p114
    %p117 = scmp.ne.s32.totalorder %s102, %s116
    %p118 = scmp.eq.s32.totalorder %s31, 0
    %p119 = por %p117, %p118
    %s120 = ssub.s32 %s32, %s51
    %p121 = scmp.eq.s32.totalorder %s120, 0
    %s123 = sadd.s32 %s122, 1
    %s124 = scalar_select %p121, %s122, %s123
    %p127 = pneg %p121
    %p128 = scmp.eq.s32.totalorder %s25, 1
    %p129 = por %p127, %p128
    %p130 = scmp.ne.s32.totalorder %s122, %s125
    %p131 = scmp.eq.s32.totalorder %s25, 0
    %p132 = por %p130, %p131
    %p133 = scmp.ne.s32.totalorder %s122, %s125
    %p134 = scmp.eq.s32.totalorder %s30, 1
    %p135 = por %p133, %p134
    %p136 = scmp.ne.s32.totalorder %s125, %s126
    %p137 = scmp.eq.s32.totalorder %s30, 0
    %p138 = por %p136, %p137
    %p139 = scmp.ne.s32.totalorder %s125, %s126
    %p140 = scmp.eq.s32.totalorder %s31, 1
    %p141 = por %p139, %p140
    %p143 = scmp.ne.s32.totalorder %s126, %s142
    %p144 = scmp.eq.s32.totalorder %s31, 0
    %p145 = por %p143, %p144
    %s146 = ssub.s32 %s33, %s47
    %s147 = ssub.s32 %s34, %s43
    %s148 = sor.u32 %s146, %s147
    %p149 = scmp.eq.s32.totalorder %s148, 0
    %s151 = sadd.s32 %s150, 1
    %s152 = scalar_select %p149, %s150, %s151
    %p155 = pneg %p149
    %p156 = scmp.eq.s32.totalorder %s25, 1
    %p157 = por %p155, %p156
    %p158 = scmp.ne.s32.totalorder %s150, %s153
    %p159 = scmp.eq.s32.totalorder %s25, 0
    %p160 = por %p158, %p159
    %p161 = scmp.ne.s32.totalorder %s150, %s153
    %p162 = scmp.eq.s32.totalorder %s30, 1
    %p163 = por %p161, %p162
    %p164 = scmp.ne.s32.totalorder %s153, %s154
    %p165 = scmp.eq.s32.totalorder %s30, 0
    %p166 = por %p164, %p165
    %p167 = scmp.ne.s32.totalorder %s153, %s154
    %p168 = scmp.eq.s32.totalorder %s31, 1
    %p169 = por %p167, %p168
    %p171 = scmp.ne.s32.totalorder %s154, %s170
    %p172 = scmp.eq.s32.totalorder %s31, 0
    %p173 = por %p171, %p172
    %s174 = ssub.s32 %s33, %s47
    %s175 = ssub.s32 %s34, %s43
    %s176 = sor.u32 %s174, %s175
    %p177 = scmp.eq.s32.totalorder %s176, 0
    %s179 = sadd.s32 %s178, 1
    %s180 = scalar_select %p177, %s178, %s179
    %p183 = pneg %p177
    %p184 = scmp.eq.s32.totalorder %s25, 1
    %p185 = por %p183, %p184
    %p186 = scmp.ne.s32.totalorder %s178, %s181
    %p187 = scmp.eq.s32.totalorder %s25, 0
    %p188 = por %p186, %p187
    %p189 = scmp.ne.s32.totalorder %s178, %s181
    %p190 = scmp.eq.s32.totalorder %s30, 1
    %p191 = por %p189, %p190
    %p192 = scmp.ne.s32.totalorder %s181, %s182
    %p193 = scmp.eq.s32.totalorder %s30, 0
    %p194 = por %p192, %p193
    %p195 = scmp.ne.s32.totalorder %s181, %s182
    %p196 = scmp.eq.s32.totalorder %s31, 1
    %p197 = por %p195, %p196
    %p199 = scmp.ne.s32.totalorder %s182, %s198
    %p200 = scmp.eq.s32.totalorder %s31, 0
    %p201 = por %p199, %p200
    %s202 = ssub.s32 %s33, %s47
    %s203 = ssub.s32 %s34, %s43
    %s204 = sor.u32 %s202, %s203
    %p205 = scmp.eq.s32.totalorder %s204, 0
    %s207 = sadd.s32 %s206, 1
    %s208 = scalar_select %p205, %s206, %s207
    %p211 = pneg %p205
    %p212 = scmp.eq.s32.totalorder %s25, 1
    %p213 = por %p211, %p212
    %p214 = scmp.ne.s32.totalorder %s206, %s209
    %p215 = scmp.eq.s32.totalorder %s25, 0
    %p216 = por %p214, %p215
    %p217 = scmp.ne.s32.totalorder %s206, %s209
    %p218 = scmp.eq.s32.totalorder %s30, 1
    %p219 = por %p217, %p218
    %p220 = scmp.ne.s32.totalorder %s209, %s210
    %p221 = scmp.eq.s32.totalorder %s30, 0
    %p222 = por %p220, %p221
    %p223 = scmp.ne.s32.totalorder %s209, %s210
    %p224 = scmp.eq.s32.totalorder %s31, 1
    %p225 = por %p223, %p224
    %p227 = scmp.ne.s32.totalorder %s210, %s226
    %p228 = scmp.eq.s32.totalorder %s31, 0
    %p229 = por %p227, %p228
    %s230 = ssub.s32 %s33, %s47
    %s231 = ssub.s32 %s34, %s43
    %s232 = sor.u32 %s230, %s231
    %p233 = scmp.eq.s32.totalorder %s232, 0
    %s235 = sadd.s32 %s234, 1
    %s236 = scalar_select %p233, %s234, %s235
    %p239 = pneg %p233
    %p240 = scmp.eq.s32.totalorder %s25, 1
    %p241 = por %p239, %p240
    %p242 = scmp.ne.s32.totalorder %s234, %s237
    %p243 = scmp.eq.s32.totalorder %s25, 0
    %p244 = por %p242, %p243
    %p245 = scmp.ne.s32.totalorder %s234, %s237
    %p246 = scmp.eq.s32.totalorder %s30, 1
    %p247 = por %p245, %p246
    %p248 = scmp.ne.s32.totalorder %s237, %s238
    %p249 = scmp.eq.s32.totalorder %s30, 0
    %p250 = por %p248, %p249
    %p251 = scmp.ne.s32.totalorder %s237, %s238
    %p252 = scmp.eq.s32.totalorder %s31, 1
    %p253 = por %p251, %p252
    %p255 = scmp.ne.s32.totalorder %s238, %s254
    %p256 = scmp.eq.s32.totalorder %s31, 0
    %p257 = por %p255, %p256
    %s258 = ssub.s32 %s33, %s47
    %s259 = ssub.s32 %s34, %s43
    %s260 = sor.u32 %s258, %s259
    %p261 = scmp.eq.s32.totalorder %s260, 0
    %s263 = sadd.s32 %s262, 1
    %s264 = scalar_select %p261, %s262, %s263
    %p267 = pneg %p261
    %p268 = scmp.eq.s32.totalorder %s25, 1
    %p269 = por %p267, %p268
    %p270 = scmp.ne.s32.totalorder %s262, %s265
    %p271 = scmp.eq.s32.totalorder %s25, 0
    %p272 = por %p270, %p271
    %p273 = scmp.ne.s32.totalorder %s262, %s265
    %p274 = scmp.eq.s32.totalorder %s30, 1
    %p275 = por %p273, %p274
    %p276 = scmp.ne.s32.totalorder %s265, %s266
    %p277 = scmp.eq.s32.totalorder %s30, 0
    %p278 = por %p276, %p277
    %p279 = scmp.ne.s32.totalorder %s265, %s266
    %p280 = scmp.eq.s32.totalorder %s31, 1
    %p281 = por %p279, %p280
    %p283 = scmp.ne.s32.totalorder %s266, %s282
    %p284 = scmp.eq.s32.totalorder %s31, 0
    %p285 = por %p283, %p284
    %s286 = ssub.s32 %s33, %s47
    %p287 = scmp.eq.s32.totalorder %s286, 0
    %s289 = sadd.s32 %s288, 1
    %s290 = scalar_select %p287, %s288, %s289
    %p293 = pneg %p287
    %p294 = scmp.eq.s32.totalorder %s25, 1
    %p295 = por %p293, %p294
    %p296 = scmp.ne.s32.totalorder %s288, %s291
    %p297 = scmp.eq.s32.totalorder %s25, 0
    %p298 = por %p296, %p297
    %p299 = scmp.ne.s32.totalorder %s288, %s291
    %p300 = scmp.eq.s32.totalorder %s30, 1
    %p301 = por %p299, %p300
    %p302 = scmp.ne.s32.totalorder %s291, %s292
    %p303 = scmp.eq.s32.totalorder %s30, 0
    %p304 = por %p302, %p303
    %p305 = scmp.ne.s32.totalorder %s291, %s292
    %p306 = scmp.eq.s32.totalorder %s31, 1
    %p307 = por %p305, %p306
    %p309 = scmp.ne.s32.totalorder %s292, %s308
    %p310 = scmp.eq.s32.totalorder %s31, 0
    %p311 = por %p309, %p310
    %s312 = ssub.s32 %s32, %s51
    %p313 = scmp.eq.s32.totalorder %s312, 0
    %s315 = sadd.s32 %s314, 1
    %s316 = scalar_select %p313, %s314, %s315
    %p319 = pneg %p313
    %p320 = scmp.eq.s32.totalorder %s25, 1
    %p321 = por %p319, %p320
    %p322 = scmp.ne.s32.totalorder %s314, %s317
    %p323 = scmp.eq.s32.totalorder %s25, 0
    %p324 = por %p322, %p323
    %p325 = scmp.ne.s32.totalorder %s314, %s317
    %p326 = scmp.eq.s32.totalorder %s30, 1
    %p327 = por %p325, %p326
    %p328 = scmp.ne.s32.totalorder %s317, %s318
    %p329 = scmp.eq.s32.totalorder %s30, 0
    %p330 = por %p328, %p329
    %p331 = scmp.ne.s32.totalorder %s317, %s318
    %p332 = scmp.eq.s32.totalorder %s31, 1
    %p333 = por %p331, %p332
    %p335 = scmp.ne.s32.totalorder %s318, %s334
    %p336 = scmp.eq.s32.totalorder %s31, 0
    %p337 = por %p335, %p336
    %p338 = scmp.le.s32.totalorder 1, %s25
    %p339 = scmp.lt.s32.totalorder %s25, 3
    %p340 = pnand %p338, %p339
    %p341 = pneg %p340
    // Predicated region
    $region9: #{chat_model_forward.12} parent=5 // pred_check
      _
    $region10: #{chat_model_forward.12} parent=5 // pred_check_branch
      %343 = sbr.rel (%p340) target = $region12
    $region11: #{chat_model_forward.12} parent=5 // pred_region
      %s344 = ssub.s32 %s25, 1
      // Predicated region
      $region13: #{chat_model_forward.12} parent=11 // pred_check
        %p345 = pneg %p70
      $region14: #{chat_model_forward.12} parent=11 // pred_check_branch
        %347 = sbr.rel (%p345) target = $region16
      $region15: #{chat_model_forward.12} parent=11 // pred_region
        %s348 = smul.u32 2, %s35
        %p349 = scmp.lt.s32.totalorder %s348, 1
        %s350 = scalar_select %p349, %s348, 1
        %s351 = smul.addr %s350, 4
        %s352 = scalar_lea.vmem %s1, %s351
        %s353 = smul.u32 2, %s35
      $region16: #{chat_model_forward.12} parent=11 // pred_fallthru
        _
      // Predicated region
      $region17: #{chat_model_forward.12} parent=11 // pred_check
        %p354 = pneg %p91
      $region18: #{chat_model_forward.12} parent=11 // pred_check_branch
        %356 = sbr.rel (%p354) target = $region20
      $region19: #{chat_model_forward.12} parent=11 // pred_region
        _
      $region20: #{chat_model_forward.12} parent=11 // pred_fallthru
        _
      // Predicated region
      $region21: #{chat_model_forward.12} parent=11 // pred_check
        %p357 = pneg %p112
      $region22: #{chat_model_forward.12} parent=11 // pred_check_branch
        %359 = sbr.rel (%p357) target = $region24
      $region23: #{chat_model_forward.12} parent=11 // pred_region
        _
      $region24: #{chat_model_forward.12} parent=11 // pred_fallthru
        _
      // Predicated region
      $region25: #{chat_model_forward.12} parent=11 // pred_check
        %p360 = pneg %p138
      $region26: #{chat_model_forward.12} parent=11 // pred_check_branch
        %362 = sbr.rel (%p360) target = $region28
      $region27: #{chat_model_forward.12} parent=11 // pred_region
        %s363 = smul.u32 2, %s35
        %p364 = scmp.lt.s32.totalorder %s363, 1
        %s365 = scalar_select %p364, %s363, 1
        %s366 = smul.addr %s365, 8
        %s367 = scalar_lea.vmem %s4, %s366
        %s368 = smul.u32 2, %s35
      $region28: #{chat_model_forward.12} parent=11 // pred_fallthru
        _
    $region12: #{chat_model_forward.12} parent=5 // pred_fallthru
      _
    %p369 = scmp.lt.s32.totalorder %s25, 2
    // Predicated region
    $region29: #{chat_model_forward.12} parent=5 // pred_check
      %p370 = pneg %p369
    $region30: #{chat_model_forward.12} parent=5 // pred_check_branch
      %372 = sbr.rel (%p370) target = $region32
    $region31: #{chat_model_forward.12} parent=5 // pred_region
      // Predicated region
      $region33: #{chat_model_forward.12} parent=31 // pred_check
        %p373 = pneg %p160
      $region34: #{chat_model_forward.12} parent=31 // pred_check_branch
        %375 = sbr.rel (%p373) target = $region36
      $region35: #{chat_model_forward.12} parent=31 // pred_region
        %p376 = scmp.lt.s32.totalorder %s33, 1
        %s377 = scalar_select %p376, %s33, 1
        %p378 = scmp.lt.s32.totalorder %s34, 0
        %s379 = scalar_select %p378, %s34, 0
        %s380 = smul.addr %s377, 4
        %s381 = sadd.s32 %s379, %s380
        %s382 = smul.addr %s381, 4
        %s383 = scalar_lea.vmem %s5, %s382
      $region36: #{chat_model_forward.12} parent=31 // pred_fallthru
        _
      // Predicated region
      $region37: #{chat_model_forward.12} parent=31 // pred_check
        %p384 = pneg %p188
      $region38: #{chat_model_forward.12} parent=31 // pred_check_branch
        %386 = sbr.rel (%p384) target = $region40
      $region39: #{chat_model_forward.12} parent=31 // pred_region
        %p387 = scmp.lt.s32.totalorder %s33, 1
        %s388 = scalar_select %p387, %s33, 1
        %p389 = scmp.lt.s32.totalorder %s34, 0
        %s390 = scalar_select %p389, %s34, 0
        %s391 = sadd.s32 %s390, %s388
        %s392 = scalar_lea.vmem %s6, %s391
      $region40: #{chat_model_forward.12} parent=31 // pred_fallthru
        _
      // Predicated region
      $region41: #{chat_model_forward.12} parent=31 // pred_check
        %p393 = pneg %p216
      $region42: #{chat_model_forward.12} parent=31 // pred_check_branch
        %395 = sbr.rel (%p393) target = $region44
      $region43: #{chat_model_forward.12} parent=31 // pred_region
        %p396 = scmp.lt.s32.totalorder %s33, 1
        %s397 = scalar_select %p396, %s33, 1
        %p398 = scmp.lt.s32.totalorder %s34, 0
        %s399 = scalar_select %p398, %s34, 0
        %s400 = smul.addr %s397, 4
        %s401 = sadd.s32 %s399, %s400
        %s402 = smul.addr %s401, 4
        %s403 = scalar_lea.vmem %s7, %s402
      $region44: #{chat_model_forward.12} parent=31 // pred_fallthru
        _
      // Predicated region
      $region45: #{chat_model_forward.12} parent=31 // pred_check
        %p404 = pneg %p244
      $region46: #{chat_model_forward.12} parent=31 // pred_check_branch
        %406 = sbr.rel (%p404) target = $region48
      $region47: #{chat_model_forward.12} parent=31 // pred_region
        %p407 = scmp.lt.s32.totalorder %s33, 1
        %s408 = scalar_select %p407, %s33, 1
        %p409 = scmp.lt.s32.totalorder %s34, 0
        %s410 = scalar_select %p409, %s34, 0
        %s411 = sadd.s32 %s410, %s408
        %s412 = scalar_lea.vmem %s8, %s411
      $region48: #{chat_model_forward.12} parent=31 // pred_fallthru
        _
      // Predicated region
      $region49: #{chat_model_forward.12} parent=31 // pred_check
        %p413 = pneg %p272
      $region50: #{chat_model_forward.12} parent=31 // pred_check_branch
        %415 = sbr.rel (%p413) target = $region52
      $region51: #{chat_model_forward.12} parent=31 // pred_region
        %s416 = smul.u32 6, %s34
        %p417 = scmp.lt.s32.totalorder %s33, 1
        %s418 = scalar_select %p417, %s33, 1
        %p419 = scmp.lt.s32.totalorder %s416, 5
        %s420 = scalar_select %p419, %s416, 5
        %s421 = smul.addr %s418, 6
        %s422 = sadd.s32 %s420, %s421
        %s423 = smul.addr %s422, 4
        %s424 = scalar_lea.vmem %s9, %s423
        %s425 = smul.u32 6, %s34
      $region52: #{chat_model_forward.12} parent=31 // pred_fallthru
        _
      // Predicated region
      $region53: #{chat_model_forward.12} parent=31 // pred_check
        %p426 = pneg %p298
      $region54: #{chat_model_forward.12} parent=31 // pred_check_branch
        %428 = sbr.rel (%p426) target = $region56
      $region55: #{chat_model_forward.12} parent=31 // pred_region
        %p429 = scmp.lt.s32.totalorder %s33, 1
        %s430 = scalar_select %p429, %s33, 1
        %s431 = scalar_lea.vmem %s10, %s430
      $region56: #{chat_model_forward.12} parent=31 // pred_fallthru
        _
    $region32: #{chat_model_forward.12} parent=5 // pred_fallthru
      _
    %p432 = scmp.le.s32.totalorder 1, %s25
    %p433 = scmp.lt.s32.totalorder %s25, 3
    %p434 = pnand %p432, %p433
    %p435 = pneg %p434
    // Predicated region
    $region57: #{chat_model_forward.12} parent=5 // pred_check
      _
    $region58: #{chat_model_forward.12} parent=5 // pred_check_branch
      %437 = sbr.rel (%p434) target = $region60
    $region59: #{chat_model_forward.12} parent=5 // pred_region
      %s438 = ssub.s32 %s25, 1
      %s439 = smul.u32 2, %s35
      %p440 = scmp.lt.s32.totalorder %s439, 1
      %s441 = scalar_select %p440, %s439, 1
      %s442 = smul.addr %s441, 4
      %s443 = scalar_lea.vmem %s1, %s442
      %p444 = pneg %p70
      %p445 = pneg %p67
      %p446 = pneg %p91
      %p447 = pneg %p88
      %p448 = pneg %p112
      %p449 = pneg %p109
      %s450 = smul.u32 2, %s35
      %p451 = scmp.lt.s32.totalorder %s450, 1
      %s452 = scalar_select %p451, %s450, 1
      %s453 = smul.addr %s452, 8
      %s454 = scalar_lea.vmem %s4, %s453
      %p455 = pneg %p138
      %p456 = pneg %p135
      %p457 = scmp.lt.s32.totalorder %s36, 1
      %s458 = scalar_select %p457, %s36, 1
      %p459 = scmp.lt.s32.totalorder %s37, 0
      %s460 = scalar_select %p459, %s37, 0
      %s461 = smul.addr %s458, 4
      %s462 = sadd.s32 %s460, %s461
      %s463 = smul.addr %s462, 4
      %s464 = scalar_lea.vmem %s5, %s463
      %p465 = pneg %p166
      %p466 = pneg %p163
      %p467 = scmp.lt.s32.totalorder %s36, 1
      %s468 = scalar_select %p467, %s36, 1
      %p469 = scmp.lt.s32.totalorder %s37, 0
      %s470 = scalar_select %p469, %s37, 0
      %s471 = sadd.s32 %s470, %s468
      %s472 = scalar_lea.vmem %s6, %s471
      %p473 = pneg %p194
      %p474 = pneg %p191
      %p475 = scmp.lt.s32.totalorder %s36, 1
      %s476 = scalar_select %p475, %s36, 1
      %p477 = scmp.lt.s32.totalorder %s37, 0
      %s478 = scalar_select %p477, %s37, 0
      %s479 = smul.addr %s476, 4
      %s480 = sadd.s32 %s478, %s479
      %s481 = smul.addr %s480, 4
      %s482 = scalar_lea.vmem %s7, %s481
      %p483 = pneg %p222
      %p484 = pneg %p219
      %p485 = scmp.lt.s32.totalorder %s36, 1
      %s486 = scalar_select %p485, %s36, 1
      %p487 = scmp.lt.s32.totalorder %s37, 0
      %s488 = scalar_select %p487, %s37, 0
      %s489 = sadd.s32 %s488, %s486
      %s490 = scalar_lea.vmem %s8, %s489
      %p491 = pneg %p250
      %p492 = pneg %p247
      %s493 = smul.u32 6, %s37
      %p494 = scmp.lt.s32.totalorder %s36, 1
      %s495 = scalar_select %p494, %s36, 1
      %p496 = scmp.lt.s32.totalorder %s493, 5
      %s497 = scalar_select %p496, %s493, 5
      %s498 = smul.addr %s495, 6
      %s499 = sadd.s32 %s497, %s498
      %s500 = smul.addr %s499, 4
      %s501 = scalar_lea.vmem %s9, %s500
      %p502 = pneg %p278
      %p503 = pneg %p275
      %p504 = scmp.lt.s32.totalorder %s36, 1
      %s505 = scalar_select %p504, %s36, 1
      %s506 = scalar_lea.vmem %s10, %s505
      %p507 = pneg %p304
      %p508 = pneg %p301
      %p509 = pneg %p330
      %p510 = pneg %p327
      %s511 = smul.u32 2, %s35
      %p512 = scmp.lt.s32.totalorder %s511, 1
      %s513 = scalar_select %p512, %s511, 1
      %s514 = smul.addr %s513, 4
      %s515 = scalar_lea.vmem %s11, %s514
      %s516 = smul.u32 2, %s35
      %p517 = scmp.lt.s32.totalorder %s516, 1
      %s518 = scalar_select %p517, %s516, 1
      %s519 = smul.addr %s518, 4
      %s520 = scalar_lea.vmem %s1, %s519
      %s521 = smul.u32 2, %s35
      %s522 = smul.u32 2, %s35
      %p523 = scmp.lt.s32.totalorder %s522, 1
      %s524 = scalar_select %p523, %s522, 1
      %s525 = smul.addr %s524, 8
      %s526 = scalar_lea.vmem %s4, %s525
      %s527 = smul.u32 2, %s35
      %p528 = scmp.lt.s32.totalorder %s36, 1
      %s529 = scalar_select %p528, %s36, 1
      %p530 = scmp.lt.s32.totalorder %s37, 0
      %s531 = scalar_select %p530, %s37, 0
      %s532 = smul.addr %s529, 4
      %s533 = sadd.s32 %s531, %s532
      %s534 = smul.addr %s533, 4
      %s535 = scalar_lea.vmem %s5, %s534
      %p536 = scmp.lt.s32.totalorder %s36, 1
      %s537 = scalar_select %p536, %s36, 1
      %p538 = scmp.lt.s32.totalorder %s37, 0
      %s539 = scalar_select %p538, %s37, 0
      %s540 = sadd.s32 %s539, %s537
      %s541 = scalar_lea.vmem %s6, %s540
      %p542 = scmp.lt.s32.totalorder %s36, 1
      %s543 = scalar_select %p542, %s36, 1
      %p544 = scmp.lt.s32.totalorder %s37, 0
      %s545 = scalar_select %p544, %s37, 0
      %s546 = smul.addr %s543, 4
      %s547 = sadd.s32 %s545, %s546
      %s548 = smul.addr %s547, 4
      %s549 = scalar_lea.vmem %s7, %s548
      %p550 = scmp.lt.s32.totalorder %s36, 1
      %s551 = scalar_select %p550, %s36, 1
      %p552 = scmp.lt.s32.totalorder %s37, 0
      %s553 = scalar_select %p552, %s37, 0
      %s554 = sadd.s32 %s553, %s551
      %s555 = scalar_lea.vmem %s8, %s554
      %s556 = smul.u32 6, %s37
      %p557 = scmp.lt.s32.totalorder %s36, 1
      %s558 = scalar_select %p557, %s36, 1
      %p559 = scmp.lt.s32.totalorder %s556, 5
      %s560 = scalar_select %p559, %s556, 5
      %s561 = smul.addr %s558, 6
      %s562 = sadd.s32 %s560, %s561
      %s563 = smul.addr %s562, 4
      %s564 = scalar_lea.vmem %s9, %s563
      %s565 = smul.u32 6, %s37
      %p566 = scmp.lt.s32.totalorder %s36, 1
      %s567 = scalar_select %p566, %s36, 1
      %s568 = scalar_lea.vmem %s10, %s567
      %s569 = smul.u32 2, %s35
      %p570 = scmp.lt.s32.totalorder %s569, 1
      %s571 = scalar_select %p570, %s569, 1
      %s572 = smul.addr %s571, 4
      %s573 = scalar_lea.vmem %s11, %s572
      %s574 = smul.u32 2, %s35
      %p576 = scmp.eq.s32.totalorder %s36, 0
      %p577 = scmp.eq.s32.totalorder %s37, 0
      %p578 = pnand %p576, %p577
      %p579 = pneg %p578
      // Predicated region
      $region61: #{chat_model_forward.12} parent=59 // pred_check
        _
      $region62: #{chat_model_forward.12} parent=59 // pred_check_branch
        %581 = sbr.rel (%p578) target = $region64
      $region63: #{chat_model_forward.12} parent=59 // pred_region
        %v582 = vld [vmem:[%s520] sm:$0xf]
        %v583 = vld [vmem:[%s520 + $0x4] sm:$0xf]
        %v584 = vunpack.c.l.bf16 %v582
        %v585 = vunpack.c.l.bf16 %v583
        %vm586 = vcmask 261120
        %v587 = vsel %vm586, %v584, 0.0
        %588 = vadd.xlane.f32.xlu0 %v587
        %v589 = vpop.xlane.xlu0 %588
        %v590 = vsel %vm586, %v585, 0.0
        %591 = vadd.xlane.f32.xlu0 %v590
        %v592 = vpop.xlane.xlu0 %591
        %v593 = vrcp.pop 32.0
        %v594 = vmul.f32 32.0, %v593
        %v595 = vsub.f32 1.0, %v594
        %v596 = vmul.f32 %v593, %v595
        %v597 = vadd.f32 %v593, %v596
        %vm598 = vweird.f32 %v593
        %v599 = vsel %vm598, %v593, %v597
        %v600 = vmul.f32 %v589, %v599
        %v601 = vmul.f32 %v592, %v599
        %v602 = vsub.f32 %v584, %v600
        %v603 = vsub.f32 %v585, %v601
        %v604 = vmul.f32 %v602, %v602
        %v605 = vmul.f32 %v603, %v603
        %v606 = vsel %vm586, %v604, 0.0
        %607 = vadd.xlane.f32.xlu0 %v606
        %v608 = vpop.xlane.xlu0 %607
        %v609 = vsel %vm586, %v605, 0.0
        %610 = vadd.xlane.f32.xlu0 %v609
        %v611 = vpop.xlane.xlu0 %610
        %v612 = vmul.f32 %v608, %v599
        %v613 = vmul.f32 %v611, %v599
        %v614 = vadd.f32 %v612, 1e-05
        %v615 = vadd.f32 %v613, 1e-05
        %v616 = vrsqrt.pop %v614
        %v617 = vmul.f32 %v616, %v614
        %v618 = vmul.f32 %v617, %v616
        %v619 = vmul.f32 0.5, %v618
        %v620 = vsub.f32 1.5, %v619
        %v621 = vmul.f32 %v616, %v620
        %vm622 = vweird.f32 %v614
        %vm623 = vweird.f32 %v616
        %vm624 = vmor %vm622, %vm623
        %v625 = vsel %vm624, %v616, %v621
        %v626 = vrsqrt.pop %v615
        %v627 = vmul.f32 %v626, %v615
        %v628 = vmul.f32 %v627, %v626
        %v629 = vmul.f32 0.5, %v628
        %v630 = vsub.f32 1.5, %v629
        %v631 = vmul.f32 %v626, %v630
        %vm632 = vweird.f32 %v615
        %vm633 = vweird.f32 %v626
        %vm634 = vmor %vm632, %vm633
        %v635 = vsel %vm634, %v626, %v631
        %v636 = vmul.f32 %v602, %v625
        %v637 = vmul.f32 %v603, %v635
        %v638 = vld [vmem:[%s2] sm:$0x1]
        %v640 = vperm.slane %v638, 0
        %v642 = vmul.f32 %v636, %v640
        %v643 = vmul.f32 %v637, %v640
        %v644 = vld [vmem:[%s3] sm:$0x1]
        %v646 = vperm.slane %v644, 0
        %v648 = vadd.f32 %v642, %v646
        %v649 = vadd.f32 %v643, %v646
        %v650 = vpack.c.bf16 %v648, %v648
        %v651 = vpack.c.bf16 %v649, %v649
        %vm652 = vcmask 257024
        %653 = vst.msk [vmem:[#allocation2] sm:$0xf] %vm652, %v650
        %654 = vst.msk [vmem:[#allocation2 + $0x4] sm:$0xf] %vm652, %v651
        %655 = vst.msk [vmem:[#allocation3] sm:$0xff] %vm586, %v584
        %656 = vst.msk [vmem:[#allocation3 + $0x8] sm:$0xff] %vm586, %v585
      $region64: #{chat_model_forward.12} parent=59 // pred_fallthru
        _
      %s657 = sshra.s32 %s36, 7
      %s658 = sand.u32 %s36, 127
      %s659 = sadd.s32 %s657, %s35
      %s660 = smul.u32 %s659, 128
      %s661 = sshra.s32 %s36, 7
      %s662 = sand.u32 %s36, 127
      %s663 = sadd.s32 %s660, %s662
      %s664 = sld [smem:[#allocation5 + %s663]]
      %p665 = scmp.gt.s32.totalorder %s664, 0
      // Predicated region
      $region65: #{chat_model_forward.12} parent=59 // pred_check
        %p666 = pneg %p665
      $region66: #{chat_model_forward.12} parent=59 // pred_check_branch
        %668 = sbr.rel (%p666) target = $region68
      $region67: #{chat_model_forward.12} parent=59 // pred_region
        %v669 = vld [vmem:[%s526] sm:$0xff]
        %v670 = vld [vmem:[%s526 + $0x8] sm:$0xff]
        %v671 = vstv %s36
        %vm672 = vcmp.eq.s32.totalorder %v669, %v671
        %vm673 = vcmp.eq.s32.totalorder %v670, %v671
        %v674 = vsel %vm672, 1.0, 0.0
        %v675 = vsel %vm673, 1.0, 0.0
        // Predicated region
        $region69: #{chat_model_forward.12} parent=67 // pred_check
          %p676 = pneg %p577
        $region70: #{chat_model_forward.12} parent=67 // pred_check_branch
          %678 = sbr.rel (%p676) target = $region72
        $region71: #{chat_model_forward.12} parent=67 // pred_region
          %v679 = vld [vmem:[#allocation3] sm:$0xff]
          %v680 = vld [vmem:[#allocation3 + $0x8] sm:$0xff]
          %v681 = vld [vmem:[%s568] sm:$0x1]
          %683 = vset.pattern.permute.xlu0 0
          %684 = vperm.xlu0 %683, %v674
          %v685 = vpop.permute.xlu0 %684
          %688 = vset.pattern.permute.xlu0 0
          %689 = vperm.xlu0 %688, %v675
          %v690 = vpop.permute.xlu0 %689
          %v693 = vperm.slane %v681, 0
          %v695 = vmul.f32 %v685, %v693
          %v696 = vmul.f32 %v690, %v693
          %v697 = vadd.f32 %v679, %v695
          %v698 = vadd.f32 %v680, %v696
          %vm699 = vcmask 261120
          %700 = vst.msk [vmem:[#allocation3] sm:$0xff] %vm699, %v697
          %701 = vst.msk [vmem:[#allocation3 + $0x8] sm:$0xff] %vm699, %v698
        $region72: #{chat_model_forward.12} parent=67 // pred_fallthru
          _
        %v702 = vld [vmem:[#allocation2] sm:$0xf]
        %v703 = vld [vmem:[#allocation2 + $0x4] sm:$0xf]
        %v704 = vld [vmem:[%s535] sm:$0xf]
        %v705 = vld [vmem:[%s535 + $0x4] sm:$0xf]
        %v706 = vld [vmem:[%s535 + $0x8] sm:$0xf]
        %v707 = vld [vmem:[%s535 + $0xc] sm:$0xf]
        %v708 = vld [vmem:[%s541] sm:$0x1]
        %v710 = vperm.slane %v708, 0
        %v714 = vunpack.c.l.b16 %v702
        %v715 = vunpack.c.l.b16 %v703
        %v716 = vpack.c.b16 %v715, %v714
        %v721 = vunpack.c.l.b16 %v704
        %v722 = vunpack.c.l.b16 %v705
        %v723 = vunpack.c.l.b16 %v706
        %v724 = vunpack.c.l.b16 %v707
        %v725 = vpack.c.b16 %v722, %v721
        %v726 = vpack.c.b16 %v724, %v723
        %vm729 = vcmask 261120
        %v731 = vsel %vm729, %v716, 0
        %733 = vmatpush.bf16.msra.mxu0 0
        %734 = vmatpush.bf16.msra.mxu0 0
        %735 = vmatpush.bf16.msra.mxu0 0
        %736 = vmatpush.bf16.msra.mxu0 0
        %737 = vmatpush.bf16.msra.mxu0 0
        %738 = vmatpush.bf16.msra.mxu0 0
        %739 = vmatpush.bf16.msra.mxu0 %v726
        %740 = vmatpush.bf16.msra.mxu0 %v725
        %741 = vmatmul.bf16.gmra.mxu0 %v731
        %v742 = vpop.f32.mrf.mxu0
        %v743 = vadd.f32 %v710, %v742
        %v744 = vpop.f32.mrf.mxu0
        %v745 = vadd.f32 %v710, %v744
        %746 = vdwg.mxu0
        %v747 = vld [vmem:[%s549] sm:$0xf]
        %v748 = vld [vmem:[%s549 + $0x4] sm:$0xf]
        %v749 = vld [vmem:[%s549 + $0x8] sm:$0xf]
        %v750 = vld [vmem:[%s549 + $0xc] sm:$0xf]
        %v751 = vld [vmem:[%s555] sm:$0x1]
        %v753 = vperm.slane %v751, 0
        %v759 = vunpack.c.l.b16 %v747
        %v760 = vunpack.c.l.b16 %v748
        %v761 = vunpack.c.l.b16 %v749
        %v762 = vunpack.c.l.b16 %v750
        %v763 = vpack.c.b16 %v760, %v759
        %v764 = vpack.c.b16 %v762, %v761
        %767 = vmatpush.bf16.msra.mxu0 0
        %768 = vmatpush.bf16.msra.mxu0 0
        %769 = vmatpush.bf16.msra.mxu0 0
        %770 = vmatpush.bf16.msra.mxu0 0
        %771 = vmatpush.bf16.msra.mxu0 0
        %772 = vmatpush.bf16.msra.mxu0 0
        %773 = vmatpush.bf16.msra.mxu0 %v764
        %774 = vmatpush.bf16.msra.mxu0 %v763
        %775 = vmatmul.bf16.gmra.mxu0 %v731
        %v776 = vpop.f32.mrf.mxu0
        %v777 = vadd.f32 %v753, %v776
        %v778 = vpop.f32.mrf.mxu0
        %v779 = vadd.f32 %v753, %v778
        %780 = vdwg.mxu0
        %v781 = vmul.f32 %v777, %v777
        %v782 = vmul.f32 %v779, %v779
        %v783 = vmul.f32 %v777, %v781
        %v784 = vmul.f32 %v779, %v782
        %v785 = vmul.f32 %v783, 0.044715
        %v786 = vmul.f32 %v784, 0.044715
        %v787 = vadd.f32 %v777, %v785
        %v788 = vadd.f32 %v779, %v786
        %v789 = vmul.f32 %v787, 0.7978846
        %v790 = vmul.f32 %v788, 0.7978846
        %v791 = vtanh.pop %v789
        %v792 = vtanh.pop %v790
        %v793 = vadd.f32 %v791, 1.0
        %v794 = vadd.f32 %v792, 1.0
        %v795 = vmul.f32 %v793, 0.5
        %v796 = vmul.f32 %v794, 0.5
        %v797 = vmul.f32 %v777, %v795
        %v798 = vmul.f32 %v779, %v796
        %v799 = vmul.f32 %v743, %v797
        %v800 = vmul.f32 %v745, %v798
        %v801 = vld [vmem:[#allocation3] sm:$0xff]
        %v802 = vld [vmem:[#allocation3 + $0x8] sm:$0xff]
        %v803 = vpack.c.bf16 %v800, %v799
        %v804 = vld [vmem:[%s564] sm:$0xf]
        %v805 = vld [vmem:[%s564 + $0x4] sm:$0xf]
        %v806 = vld [vmem:[%s564 + $0x8] sm:$0xf]
        %v807 = vld [vmem:[%s564 + $0xc] sm:$0xf]
        %v808 = vld [vmem:[%s564 + $0x10] sm:$0xf]
        %v809 = vld [vmem:[%s564 + $0x14] sm:$0xf]
        %v816 = vunpack.c.l.b16 %v804
        %v817 = vunpack.c.l.b16 %v805
        %v818 = vunpack.c.l.b16 %v806
        %v819 = vunpack.c.l.b16 %v807
        %v820 = vunpack.c.l.b16 %v808
        %v821 = vunpack.c.l.b16 %v809
        %v822 = vpack.c.b16 %v817, %v816
        %v823 = vpack.c.b16 %v819, %v818
        %v824 = vpack.c.b16 %v821, %v820
        %vm828 = vcmask 392192
        %v830 = vsel %vm828, %v803, 0
        %832 = vmatpush.bf16.msra.mxu0 0
        %833 = vmatpush.bf16.msra.mxu0 0
        %834 = vmatpush.bf16.msra.mxu0 0
        %835 = vmatpush.bf16.msra.mxu0 0
        %836 = vmatpush.bf16.msra.mxu0 0
        %837 = vmatpush.bf16.msra.mxu0 %v824
        %838 = vmatpush.bf16.msra.mxu0 %v823
        %839 = vmatpush.bf16.msra.mxu0 %v822
        %840 = vmatmul.bf16.gmra.mxu0 %v830
        %v841 = vpop.f32.mrf.mxu0
        %v842 = vadd.f32 0.0, %v841
        %v843 = vpop.f32.mrf.mxu0
        %v844 = vadd.f32 0.0, %v843
        %845 = vdwg.mxu0
        %847 = vset.pattern.permute.xlu0 0
        %848 = vperm.xlu0 %847, %v674
        %v849 = vpop.permute.xlu0 %848
        %852 = vset.pattern.permute.xlu0 0
        %853 = vperm.xlu0 %852, %v675
        %v854 = vpop.permute.xlu0 %853
        %v856 = vmul.f32 %v849, %v842
        %v857 = vmul.f32 %v854, %v844
        %v858 = vadd.f32 %v801, %v856
        %v859 = vadd.f32 %v802, %v857
        %860 = vst.msk [vmem:[#allocation3] sm:$0xff] %vm729, %v858
        %861 = vst.msk [vmem:[#allocation3 + $0x8] sm:$0xff] %vm729, %v859
      $region68: #{chat_model_forward.12} parent=59 // pred_fallthru
        _
      %p862 = scmp.eq.s32.totalorder %s36, 1
      %p863 = pnand %p862, %p577
      %p864 = pneg %p863
      // Predicated region
      $region73: #{chat_model_forward.12} parent=59 // pred_check
        _
      $region74: #{chat_model_forward.12} parent=59 // pred_check_branch
        %866 = sbr.rel (%p863) target = $region76
      $region75: #{chat_model_forward.12} parent=59 // pred_region
        %v867 = vld [vmem:[#allocation3] sm:$0xff]
        %v868 = vld [vmem:[#allocation3 + $0x8] sm:$0xff]
        %v869 = vpack.c.bf16 %v867, %v867
        %v870 = vpack.c.bf16 %v868, %v868
        %vm871 = vcmask 257024
        %872 = vst.msk [vmem:[%s573] sm:$0xf] %vm871, %v869
        %873 = vst.msk [vmem:[%s573 + $0x4] sm:$0xf] %vm871, %v870
      $region76: #{chat_model_forward.12} parent=59 // pred_fallthru
        _
      %s874 = smul.u32 2, %s35
      %p875 = scmp.lt.s32.totalorder %s874, 1
      %s876 = scalar_select %p875, %s874, 1
      %s877 = smul.addr %s876, 4
      %s878 = scalar_lea.vmem %s11, %s877
      // Predicated region
      $region77: #{chat_model_forward.12} parent=59 // pred_check
        %p879 = pneg %p327
      $region78: #{chat_model_forward.12} parent=59 // pred_check_branch
        %881 = sbr.rel (%p879) target = $region80
      $region79: #{chat_model_forward.12} parent=59 // pred_region
        %s882 = smul.u32 2, %s35
      $region80: #{chat_model_forward.12} parent=59 // pred_fallthru
        _
      // Predicated region
      $region81: #{chat_model_forward.12} parent=59 // pred_check
        %p883 = pneg %p327
      $region82: #{chat_model_forward.12} parent=59 // pred_check_branch
        %885 = sbr.rel (%p883) target = $region84
      $region83: #{chat_model_forward.12} parent=59 // pred_region
        %s886 = smul.u32 2, %s35
        %p887 = scmp.lt.s32.totalorder %s886, 1
        %s888 = scalar_select %p887, %s886, 1
        %s889 = smul.addr %s888, 4
        %s890 = scalar_lea.vmem %s11, %s889
      $region84: #{chat_model_forward.12} parent=59 // pred_fallthru
        _
    $region60: #{chat_model_forward.12} parent=5 // pred_fallthru
      _
    %p891 = scmp.le.s32.totalorder 2, %s25
    // Predicated region
    $region85: #{chat_model_forward.12} parent=5 // pred_check
      %p892 = pneg %p891
    $region86: #{chat_model_forward.12} parent=5 // pred_check_branch
      %894 = sbr.rel (%p892) target = $region88
    $region87: #{chat_model_forward.12} parent=5 // pred_region
      %s895 = ssub.s32 %s25, 2
    $region88: #{chat_model_forward.12} parent=5 // pred_fallthru
      _
  $region6: #{chat_model_forward.12} parent=0 // loop_footer
    %s29 = sadd.s32 1, %s25
  $region7: #{chat_model_forward.12} parent=0 // loop_footer_branch
    %24 = sbr.rel target = $region3
  $region8: #{chat_model_forward.12} parent=0 // loop_exit
    _

</llo_original>
